<compile_context>
chip_gen: v5e
topology: v5e:2x2
jax: 0.10.0
libtpu: 0.0.40
codegen_flags: <defaults>
</compile_context>

<pallas_src>
import math
from functools import partial

import jax
import jax.numpy as jnp
from jax.experimental import pallas as pl
from jax.experimental.pallas import tpu as pltpu


WEIGHT_DTYPE = jnp.bfloat16      # HBM storage dtype for layer matmul weights
NEG_INF = -1e30


# ----------------------------------------------------------------------------
# Glue: img_to_patch (pure reshape/permute, stays in plain JAX)
# ----------------------------------------------------------------------------
def img_to_patch(x, patch_size):
    B, C, H, W = x.shape
    x = x.reshape(B, C, H // patch_size, patch_size, W // patch_size, patch_size)
    x = jnp.transpose(x, (0, 2, 4, 1, 3, 5))
    return x.reshape(B, (H // patch_size) * (W // patch_size),
                     C * patch_size * patch_size)


# ----------------------------------------------------------------------------
# In-kernel helpers
# ----------------------------------------------------------------------------
def _mm_f32(a, w):
    """Full-precision matmul (patch embed, classifier head)."""
    return jnp.dot(a, w, preferred_element_type=jnp.float32)


def _mm_bf16(a, w_bf16):
    """bf16 MXU fast path: f32 activation cast to bf16, bf16 weight, f32 acc."""
    return jnp.dot(a.astype(jnp.bfloat16), w_bf16.astype(jnp.bfloat16),
                   preferred_element_type=jnp.float32)


def _bmm_bf16(eq, a, b):
    """Batched (per (batch, head)) contraction, bf16 operands, f32 accumulate."""
    return jnp.einsum(eq, a.astype(jnp.bfloat16), b.astype(jnp.bfloat16),
                      preferred_element_type=jnp.float32)


def _layernorm(v, g, b, eps=1e-5):
    mu = jnp.mean(v, axis=-1, keepdims=True)
    var = jnp.mean((v - mu) ** 2, axis=-1, keepdims=True)
    return (v - mu) * jax.lax.rsqrt(var + eps) * g + b


# ----------------------------------------------------------------------------
# Fused ViT kernel: one grid step = (batch block, transformer layer)
# ----------------------------------------------------------------------------
def _vit_kernel(patches_ref, w_in_ref, clspos_ref,
                ln1_g, ln1_b, wq, bq, wk, bk, wv, bv, wo, bo,
                ln2_g, ln2_b, w1, b1, w2, b2,
                hg, hb, hw, hbias,
                out_ref, x_scr, *, num_heads, seq_len, batch_block, seq_pad):
    l = pl.program_id(1)
    Bb, Tp = batch_block, seq_pad
    M, E = x_scr.shape                               # M = Bb * Tp
    Dh = E // num_heads
    scale = 1.0 / math.sqrt(Dh)

    # --- layer 0: patch embedding + cls token + positional encoding --------
    # patches row 0 of each batch element is a zero row reserved for the CLS
    # token; rows >= seq_len are zero padding.  clspos_ref holds cls+pos
    # (row 0), b_in+pos (patch rows), zeros elsewhere.  The patches block
    # index is constant across l, so Pallas does not re-fetch it per layer.
    @pl.when(l == 0)
    def _embed():
        P = patches_ref.shape[-1]
        pf = patches_ref[...].reshape(M, P)                       # (M, P)
        emb = _mm_f32(pf, w_in_ref[...])                          # (M, E) f32
        x_scr[...] = (emb.reshape(Bb, Tp, E)
                      + clspos_ref[...][None, :, :]).reshape(M, E)

    x = x_scr[...]                                   # (M, E) f32, VMEM resident

    # --- multi-head self attention ------------------------------------------
    xn = _layernorm(x, ln1_g[0], ln1_b[0])
    q = _mm_bf16(xn, wq[0]) + bq[0]                  # (M, E) f32
    k = _mm_bf16(xn, wk[0]) + bk[0]
    v = _mm_bf16(xn, wv[0]) + bv[0]

    def to_heads(t):                                 # (M, E) -> (Bb*H, Tp, Dh)
        return (t.reshape(Bb, Tp, num_heads, Dh)
                 .transpose(0, 2, 1, 3)
                 .reshape(Bb * num_heads, Tp, Dh))

    qh, kh, vh = to_heads(q), to_heads(k), to_heads(v)

    # TODO(synk): at real sequence lengths (T~200+) switch this dense
    # (G, Tp, Tp) softmax to a flash-style per-query-tile inner loop.
    s = _bmm_bf16("gqd,gkd->gqk", qh, kh) * scale    # (Bb*H, Tp, Tp) f32
    key_mask = jax.lax.broadcasted_iota(jnp.int32, (Tp, Tp), 1) < seq_len
    s = jnp.where(key_mask[None, :, :], s, NEG_INF)  # mask padded key columns
    s = s - jnp.max(s, axis=-1, keepdims=True)
    p = jnp.exp(s)
    p = p * pl.reciprocal(jnp.sum(p, axis=-1, keepdims=True), approx=True)

    ctx = _bmm_bf16("gqk,gkd->gqd", p, vh)           # (Bb*H, Tp, Dh) f32
    ctx = (ctx.reshape(Bb, num_heads, Tp, Dh)
              .transpose(0, 2, 1, 3)
              .reshape(M, E))
    x = x + _mm_bf16(ctx, wo[0]) + bo[0]

    # --- feed-forward MLP ----------------------------------------------------
    xn2 = _layernorm(x, ln2_g[0], ln2_b[0])
    h1 = _mm_bf16(xn2, w1[0]) + b1[0]
    # TODO(synk): tanh-approximate GELU; PyTorch nn.GELU() is exact erf GELU
    # (expect ~1e-3 level divergence on logits).
    h1 = jax.nn.gelu(h1, approximate=True)
    x = x + _mm_bf16(h1, w2[0]) + b2[0]
    x_scr[...] = x

    # --- classification head on all CLS rows of the batch block -------------
    @pl.when(l == pl.num_programs(1) - 1)
    def _head():
        cls = x.reshape(Bb, Tp, E)[:, 0, :]          # (Bb, E)
        cn = _layernorm(cls, hg[...], hb[...])
        out_ref[...] = _mm_f32(cn, hw[...]) + hbias[...]   # (Bb, Cp) lane-dense


# ----------------------------------------------------------------------------
# Full VisionTransformer forward
# ----------------------------------------------------------------------------
def vit_forward(img, params, patch_size, num_heads):
    patches = img_to_patch(img, patch_size)          # (B, T, C*ps^2)
    B, Tpatch, P = patches.shape
    E = params["w_in"].shape[1]
    L = len(params["layers"])
    C = params["head_w"].shape[1]
    seq = Tpatch + 1                                 # +1 CLS token
    Tp = ((seq + 7) // 8) * 8                        # sublane-align sequence

    # Batch block size: target M = Bb*Tp ~ 128-256 rows for the MXU.
    Bb = max(1, min(B, max(1, 256 // Tp)))
    B_pad = ((B + Bb - 1) // Bb) * Bb

    # Row 0 = CLS slot (zero row); rows >= seq and batch rows >= B are zeros.
    patches_p = jnp.pad(patches, ((0, B_pad - B), (1, Tp - seq), (0, 0)))

    # Pre-combine cls token, input-layer bias and positional encoding.
    pos = params["pos_embedding"][0, :seq]           # (seq, E)
    cls_row = params["cls_token"][0, 0] + pos[0]     # (E,)
    patch_rows = params["b_in"] + pos[1:]            # (Tpatch, E)
    clspos = jnp.concatenate([cls_row[None, :], patch_rows], axis=0)
    clspos = jnp.pad(clspos, ((0, Tp - seq), (0, 0)))          # (Tp, E)

    # Stack per-layer weights along a leading L axis; split wqkv host-side
    # into q/k/v; store matmul weights in bf16 (halves HBM streaming).
    Ls = params["layers"]

    def stack(xs, dtype=None):
        a = jnp.stack(xs, axis=0)
        return a if dtype is None else a.astype(dtype)

    layer_args = [
        stack([lp["ln1_g"] for lp in Ls]),
        stack([lp["ln1_b"] for lp in Ls]),
        stack([lp["wqkv"][:, :E] for lp in Ls], WEIGHT_DTYPE),
        stack([lp["bqkv"][:, :E] for lp in Ls]),
        stack([lp["wqkv"][:, E:2 * E] for lp in Ls], WEIGHT_DTYPE),
        stack([lp["bqkv"][:, E:2 * E] for lp in Ls]),
        stack([lp["wqkv"][:, 2 * E:] for lp in Ls], WEIGHT_DTYPE),
        stack([lp["bqkv"][:, 2 * E:] for lp in Ls]),
        stack([lp["wo"] for lp in Ls], WEIGHT_DTYPE),
        stack([lp["bo"] for lp in Ls]),
        stack([lp["ln2_g"] for lp in Ls]),
        stack([lp["ln2_b"] for lp in Ls]),
        stack([lp["w1"] for lp in Ls], WEIGHT_DTYPE),
        stack([lp["b1"] for lp in Ls]),
        stack([lp["w2"] for lp in Ls], WEIGHT_DTYPE),
        stack([lp["b2"] for lp in Ls]),
    ]

    # Head: pad num_classes to a 128-lane multiple for a lane-dense output.
    Cp = ((C + 127) // 128) * 128
    head_args = [params["head_ln_g"], params["head_ln_b"],
                 jnp.pad(params["head_w"], ((0, 0), (0, Cp - C))),
                 jnp.pad(params["head_b"], ((0, 0), (0, Cp - C)))]

    def lspec(a):                                    # layer-stacked weights
        nd = a.ndim
        return pl.BlockSpec((1,) + a.shape[1:],
                            lambda b, l, _nd=nd: (l,) + (0,) * (_nd - 1))

    def cspec(a):                                    # constants (full block)
        nd = a.ndim
        return pl.BlockSpec(a.shape, lambda b, l, _nd=nd: (0,) * _nd)

    # Explicit VMEM budget: 2x (double-buffered) per-layer weight block +
    # 2x patch/output blocks + constants + activation scratch + margin.
    def nbytes(a):
        return int(a.size) * a.dtype.itemsize
    per_layer_bytes = sum(nbytes(a) // L for a in layer_args)
    const_bytes = (nbytes(params["w_in"]) + nbytes(clspos)
                   + sum(nbytes(a) for a in head_args))
    block_bytes = Bb * Tp * P * 4 + Bb * Cp * 4
    scratch_bytes = Bb * Tp * E * 4
    vmem_limit = int(min(128 * 2**20,
                         max(32 * 2**20,
                             2 * per_layer_bytes + 2 * block_bytes
                             + const_bytes + scratch_bytes + (8 << 20))))

    out = pl.pallas_call(
        partial(_vit_kernel, num_heads=num_heads, seq_len=seq,
                batch_block=Bb, seq_pad=Tp),
        out_shape=jax.ShapeDtypeStruct((B_pad, Cp), jnp.float32),
        grid=(B_pad // Bb, L),
        in_specs=[pl.BlockSpec((Bb, Tp, P), lambda b, l: (b, 0, 0)),
                  cspec(params["w_in"]), cspec(clspos)]
                 + [lspec(a) for a in layer_args]
                 + [cspec(a) for a in head_args],
        out_specs=pl.BlockSpec((Bb, Cp), lambda b, l: (b, 0)),
        scratch_shapes=[pltpu.VMEM((Bb * Tp, E), jnp.float32)],  # resident acts
        compiler_params=pltpu.CompilerParams(
            dimension_semantics=("parallel", "arbitrary"),
            vmem_limit_bytes=vmem_limit),
    )(patches_p, params["w_in"], clspos, *layer_args, *head_args)
    return out[:B, :C]                               # (B, num_classes)


# ----------------------------------------------------------------------------
# Deterministic parameter init (synthetic; pre-transposed "x @ W" layouts)
# ----------------------------------------------------------------------------
def init_params(key, *, embed_dim, hidden_dim, num_channels, num_layers,
                num_classes, patch_size, num_patches):
    P = num_channels * patch_size ** 2
    keys = iter(jax.random.split(key, 6 + 8 * num_layers))

    def nrm(shape, scale=0.02):
        return (scale * jax.random.normal(next(keys), shape)).astype(jnp.float32)

    params = {
        "w_in": nrm((P, embed_dim)),                 # (in, out)
        "b_in": nrm((1, embed_dim)),
        "cls_token": nrm((1, 1, embed_dim), scale=1.0),
        "pos_embedding": nrm((1, 1 + num_patches, embed_dim), scale=1.0),
        "head_ln_g": jnp.ones((1, embed_dim), jnp.float32),
        "head_ln_b": jnp.zeros((1, embed_dim), jnp.float32),
        "head_w": nrm((embed_dim, num_classes)),
        "head_b": nrm((1, num_classes)),
        "layers": [],
    }
    for _ in range(num_layers):
        params["layers"].append({
            "ln1_g": jnp.ones((1, embed_dim), jnp.float32),
            "ln1_b": jnp.zeros((1, embed_dim), jnp.float32),
            "wqkv": nrm((embed_dim, 3 * embed_dim)),
            "bqkv": nrm((1, 3 * embed_dim)),
            "wo": nrm((embed_dim, embed_dim)),
            "bo": nrm((1, embed_dim)),
            "ln2_g": jnp.ones((1, embed_dim), jnp.float32),
            "ln2_b": jnp.zeros((1, embed_dim), jnp.float32),
            "w1": nrm((embed_dim, hidden_dim)),
            "b1": nrm((1, hidden_dim)),
            "w2": nrm((hidden_dim, embed_dim)),
            "b2": nrm((1, embed_dim)),
        })
    return params


if __name__ == "__main__":
    # Small, module-consistent shapes
    B, C, H, W = 2, 4, 16, 16
    patch_size = 4
    num_patches = (H // patch_size) * (W // patch_size)      # 16 -> seq 17
    embed_dim, hidden_dim = 32, 64
    num_heads, num_layers, num_classes = 4, 2, 10

    key = jax.random.PRNGKey(0)
    k_img, k_par = jax.random.split(key)
    img = jax.random.normal(k_img, (B, C, H, W), dtype=jnp.float32)

    params = init_params(k_par, embed_dim=embed_dim, hidden_dim=hidden_dim,
                         num_channels=C, num_layers=num_layers,
                         num_classes=num_classes, patch_size=patch_size,
                         num_patches=num_patches)

    fwd = jax.jit(partial(vit_forward, patch_size=patch_size,
                          num_heads=num_heads))
    out = fwd(img, params)
    out = jax.block_until_ready(out)
    assert out.shape == (B, num_classes), out.shape
    assert bool(jnp.all(jnp.isfinite(out)))
    print("KERNEL_OK")
</pallas_src>

<mosaic_0001>
module attributes {stable_mosaic.version = 11 : i64} {
  func.func @_vit_kernel(%arg0: i32, %arg1: i32, %arg2: memref<2x24x64xf32, #tpu.memory_space<vmem>>, %arg3: memref<64x32xf32, #tpu.memory_space<vmem>>, %arg4: memref<24x32xf32, #tpu.memory_space<vmem>>, %arg5: memref<1x1x32xf32, #tpu.memory_space<vmem>>, %arg6: memref<1x1x32xf32, #tpu.memory_space<vmem>>, %arg7: memref<1x32x32xbf16, #tpu.memory_space<vmem>>, %arg8: memref<1x1x32xf32, #tpu.memory_space<vmem>>, %arg9: memref<1x32x32xbf16, #tpu.memory_space<vmem>>, %arg10: memref<1x1x32xf32, #tpu.memory_space<vmem>>, %arg11: memref<1x32x32xbf16, #tpu.memory_space<vmem>>, %arg12: memref<1x1x32xf32, #tpu.memory_space<vmem>>, %arg13: memref<1x32x32xbf16, #tpu.memory_space<vmem>>, %arg14: memref<1x1x32xf32, #tpu.memory_space<vmem>>, %arg15: memref<1x1x32xf32, #tpu.memory_space<vmem>>, %arg16: memref<1x1x32xf32, #tpu.memory_space<vmem>>, %arg17: memref<1x32x64xbf16, #tpu.memory_space<vmem>>, %arg18: memref<1x1x64xf32, #tpu.memory_space<vmem>>, %arg19: memref<1x64x32xbf16, #tpu.memory_space<vmem>>, %arg20: memref<1x1x32xf32, #tpu.memory_space<vmem>>, %arg21: memref<1x32xf32, #tpu.memory_space<vmem>>, %arg22: memref<1x32xf32, #tpu.memory_space<vmem>>, %arg23: memref<32x128xf32, #tpu.memory_space<vmem>>, %arg24: memref<1x128xf32, #tpu.memory_space<vmem>>, %arg25: memref<2x128xf32, #tpu.memory_space<vmem>>, %arg26: memref<48x32xf32, #tpu.memory_space<vmem>>) attributes {dimension_semantics = [#tpu.dimension_semantics<parallel>, #tpu.dimension_semantics<arbitrary>], iteration_bounds = array<i64: 1, 2>, scalar_prefetch = 0 : i64, scratch_operands = 1 : i64, tpu.core_type = #tpu.core_type<tc>, window_params = [{transform_indices = @transform_0, window_bounds = array<i64: 2, 24, 64>}, {pipeline_mode = #tpu.pipeline_mode<synchronous>, transform_indices = @transform_1, window_bounds = array<i64: 64, 32>}, {pipeline_mode = #tpu.pipeline_mode<synchronous>, transform_indices = @transform_2, window_bounds = array<i64: 24, 32>}, {transform_indices = @transform_3, window_bounds = array<i64: 1, 1, 32>}, {transform_indices = @transform_4, window_bounds = array<i64: 1, 1, 32>}, {transform_indices = @transform_5, window_bounds = array<i64: 1, 32, 32>}, {transform_indices = @transform_6, window_bounds = array<i64: 1, 1, 32>}, {transform_indices = @transform_7, window_bounds = array<i64: 1, 32, 32>}, {transform_indices = @transform_8, window_bounds = array<i64: 1, 1, 32>}, {transform_indices = @transform_9, window_bounds = array<i64: 1, 32, 32>}, {transform_indices = @transform_10, window_bounds = array<i64: 1, 1, 32>}, {transform_indices = @transform_11, window_bounds = array<i64: 1, 32, 32>}, {transform_indices = @transform_12, window_bounds = array<i64: 1, 1, 32>}, {transform_indices = @transform_13, window_bounds = array<i64: 1, 1, 32>}, {transform_indices = @transform_14, window_bounds = array<i64: 1, 1, 32>}, {transform_indices = @transform_15, window_bounds = array<i64: 1, 32, 64>}, {transform_indices = @transform_16, window_bounds = array<i64: 1, 1, 64>}, {transform_indices = @transform_17, window_bounds = array<i64: 1, 64, 32>}, {transform_indices = @transform_18, window_bounds = array<i64: 1, 1, 32>}, {pipeline_mode = #tpu.pipeline_mode<synchronous>, transform_indices = @transform_19, window_bounds = array<i64: 1, 32>}, {pipeline_mode = #tpu.pipeline_mode<synchronous>, transform_indices = @transform_20, window_bounds = array<i64: 1, 32>}, {pipeline_mode = #tpu.pipeline_mode<synchronous>, transform_indices = @transform_21, window_bounds = array<i64: 32, 128>}, {pipeline_mode = #tpu.pipeline_mode<synchronous>, transform_indices = @transform_22, window_bounds = array<i64: 1, 128>}, {transform_indices = @transform_23, window_bounds = array<i64: 2, 128>}]} {
    %c0_i32 = arith.constant 0 : i32
    %0 = arith.cmpi eq, %arg1, %c0_i32 : i32
    %1 = arith.extui %0 : i1 to i32
    %c0_i32_0 = arith.constant 0 : i32
    %2 = arith.cmpi ne, %1, %c0_i32_0 : i32
    scf.if %2 {
      %c0_78 = arith.constant 0 : index
      %c0_79 = arith.constant 0 : index
      %c0_80 = arith.constant 0 : index
      %161 = vector.load %arg2[%c0_78, %c0_79, %c0_80] : memref<2x24x64xf32, #tpu.memory_space<vmem>>, vector<2x24x64xf32>
      %162 = vector.shape_cast %161 : vector<2x24x64xf32> to vector<48x64xf32>
      %c0_81 = arith.constant 0 : index
      %c0_82 = arith.constant 0 : index
      %163 = vector.load %arg3[%c0_81, %c0_82] : memref<64x32xf32, #tpu.memory_space<vmem>>, vector<64x32xf32>
      %cst_83 = arith.constant dense<0.000000e+00> : vector<48x32xf32>
      %164 = tpu.matmul %162, %163, %cst_83 {dimension_numbers = #tpu.dot_dimension_numbers<[1], [0], [0], [1], [0, 0, 1, 1], [], []>} : vector<48x64xf32>, vector<64x32xf32>, vector<48x32xf32> -> vector<48x32xf32>
      %165 = vector.shape_cast %164 : vector<48x32xf32> to vector<2x24x32xf32>
      %c0_84 = arith.constant 0 : index
      %c0_85 = arith.constant 0 : index
      %166 = vector.load %arg4[%c0_84, %c0_85] : memref<24x32xf32, #tpu.memory_space<vmem>>, vector<24x32xf32>
      %167 = vector.shape_cast %166 : vector<24x32xf32> to vector<1x24x32xf32>
      %168 = vector.broadcast %167 : vector<1x24x32xf32> to vector<2x24x32xf32>
      %169 = arith.addf %165, %168 : vector<2x24x32xf32>
      %170 = vector.shape_cast %169 : vector<2x24x32xf32> to vector<48x32xf32>
      %c0_86 = arith.constant 0 : index
      %c0_87 = arith.constant 0 : index
      %171 = vector.load %arg26[%c0_86, %c0_87] : memref<48x32xf32, #tpu.memory_space<vmem>>, vector<48x32xf32>
      tpu.vector_store %arg26[%c0_86, %c0_87], %170 {strides = array<i32>} : memref<48x32xf32, #tpu.memory_space<vmem>>, vector<48x32xf32>,
    } else {
    }
    %c0 = arith.constant 0 : index
    %c0_1 = arith.constant 0 : index
    %3 = vector.load %arg26[%c0, %c0_1] : memref<48x32xf32, #tpu.memory_space<vmem>>, vector<48x32xf32>
    %c0_2 = arith.constant 0 : index
    %c0_3 = arith.constant 0 : index
    %c0_4 = arith.constant 0 : index
    %4 = vector.load %arg5[%c0_2, %c0_3, %c0_4] : memref<1x1x32xf32, #tpu.memory_space<vmem>>, vector<1x1x32xf32>
    %5 = vector.shape_cast %4 : vector<1x1x32xf32> to vector<1x32xf32>
    %c0_5 = arith.constant 0 : index
    %c0_6 = arith.constant 0 : index
    %c0_7 = arith.constant 0 : index
    %6 = vector.load %arg6[%c0_5, %c0_6, %c0_7] : memref<1x1x32xf32, #tpu.memory_space<vmem>>, vector<1x1x32xf32>
    %7 = vector.shape_cast %6 : vector<1x1x32xf32> to vector<1x32xf32>
    %cst = arith.constant dense<0.000000e+00> : vector<48xf32>
    %8 = vector.multi_reduction <add>, %3, %cst [1] : vector<48x32xf32> to vector<48xf32>
    %9 = vector.shape_cast %8 : vector<48xf32> to vector<48x1xf32>
    %cst_8 = arith.constant 3.200000e+01 : f32
    %10 = vector.broadcast %cst_8 : f32 to vector<48x1xf32>
    %11 = arith.divf %9, %10 : vector<48x1xf32>
    %12 = vector.broadcast %11 : vector<48x1xf32> to vector<48x32xf32>
    %13 = arith.subf %3, %12 : vector<48x32xf32>
    %14 = arith.mulf %13, %13 : vector<48x32xf32>
    %cst_9 = arith.constant dense<0.000000e+00> : vector<48xf32>
    %15 = vector.multi_reduction <add>, %14, %cst_9 [1] : vector<48x32xf32> to vector<48xf32>
    %16 = vector.shape_cast %15 : vector<48xf32> to vector<48x1xf32>
    %cst_10 = arith.constant 3.200000e+01 : f32
    %17 = vector.broadcast %cst_10 : f32 to vector<48x1xf32>
    %18 = arith.divf %16, %17 : vector<48x1xf32>
    %19 = vector.broadcast %11 : vector<48x1xf32> to vector<48x32xf32>
    %20 = arith.subf %3, %19 : vector<48x32xf32>
    %cst_11 = arith.constant 9.99999974E-6 : f32
    %21 = vector.broadcast %cst_11 : f32 to vector<48x1xf32>
    %22 = arith.addf %18, %21 : vector<48x1xf32>
    %23 = math.rsqrt %22 : vector<48x1xf32>
    %24 = vector.broadcast %23 : vector<48x1xf32> to vector<48x32xf32>
    %25 = arith.mulf %20, %24 : vector<48x32xf32>
    %26 = vector.broadcast %5 : vector<1x32xf32> to vector<48x32xf32>
    %27 = arith.mulf %25, %26 : vector<48x32xf32>
    %28 = vector.broadcast %7 : vector<1x32xf32> to vector<48x32xf32>
    %29 = arith.addf %27, %28 : vector<48x32xf32>
    %c0_12 = arith.constant 0 : index
    %c0_13 = arith.constant 0 : index
    %c0_14 = arith.constant 0 : index
    %30 = vector.load %arg7[%c0_12, %c0_13, %c0_14] : memref<1x32x32xbf16, #tpu.memory_space<vmem>>, vector<1x32x32xbf16>
    %31 = vector.shape_cast %30 : vector<1x32x32xbf16> to vector<32x32xbf16>
    %32 = arith.truncf %29 : vector<48x32xf32> to vector<48x32xbf16>
    %cst_15 = arith.constant dense<0.000000e+00> : vector<48x32xf32>
    %33 = tpu.matmul %32, %31, %cst_15 {dimension_numbers = #tpu.dot_dimension_numbers<[1], [0], [0], [1], [0, 0, 1, 1], [], []>} : vector<48x32xbf16>, vector<32x32xbf16>, vector<48x32xf32> -> vector<48x32xf32>
    %c0_16 = arith.constant 0 : index
    %c0_17 = arith.constant 0 : index
    %c0_18 = arith.constant 0 : index
    %34 = vector.load %arg8[%c0_16, %c0_17, %c0_18] : memref<1x1x32xf32, #tpu.memory_space<vmem>>, vector<1x1x32xf32>
    %35 = vector.shape_cast %34 : vector<1x1x32xf32> to vector<1x32xf32>
    %36 = vector.broadcast %35 : vector<1x32xf32> to vector<48x32xf32>
    %37 = arith.addf %33, %36 : vector<48x32xf32>
    %c0_19 = arith.constant 0 : index
    %c0_20 = arith.constant 0 : index
    %c0_21 = arith.constant 0 : index
    %38 = vector.load %arg9[%c0_19, %c0_20, %c0_21] : memref<1x32x32xbf16, #tpu.memory_space<vmem>>, vector<1x32x32xbf16>
    %39 = vector.shape_cast %38 : vector<1x32x32xbf16> to vector<32x32xbf16>
    %40 = arith.truncf %29 : vector<48x32xf32> to vector<48x32xbf16>
    %cst_22 = arith.constant dense<0.000000e+00> : vector<48x32xf32>
    %41 = tpu.matmul %40, %39, %cst_22 {dimension_numbers = #tpu.dot_dimension_numbers<[1], [0], [0], [1], [0, 0, 1, 1], [], []>} : vector<48x32xbf16>, vector<32x32xbf16>, vector<48x32xf32> -> vector<48x32xf32>
    %c0_23 = arith.constant 0 : index
    %c0_24 = arith.constant 0 : index
    %c0_25 = arith.constant 0 : index
    %42 = vector.load %arg10[%c0_23, %c0_24, %c0_25] : memref<1x1x32xf32, #tpu.memory_space<vmem>>, vector<1x1x32xf32>
    %43 = vector.shape_cast %42 : vector<1x1x32xf32> to vector<1x32xf32>
    %44 = vector.broadcast %43 : vector<1x32xf32> to vector<48x32xf32>
    %45 = arith.addf %41, %44 : vector<48x32xf32>
    %c0_26 = arith.constant 0 : index
    %c0_27 = arith.constant 0 : index
    %c0_28 = arith.constant 0 : index
    %46 = vector.load %arg11[%c0_26, %c0_27, %c0_28] : memref<1x32x32xbf16, #tpu.memory_space<vmem>>, vector<1x32x32xbf16>
    %47 = vector.shape_cast %46 : vector<1x32x32xbf16> to vector<32x32xbf16>
    %48 = arith.truncf %29 : vector<48x32xf32> to vector<48x32xbf16>
    %cst_29 = arith.constant dense<0.000000e+00> : vector<48x32xf32>
    %49 = tpu.matmul %48, %47, %cst_29 {dimension_numbers = #tpu.dot_dimension_numbers<[1], [0], [0], [1], [0, 0, 1, 1], [], []>} : vector<48x32xbf16>, vector<32x32xbf16>, vector<48x32xf32> -> vector<48x32xf32>
    %c0_30 = arith.constant 0 : index
    %c0_31 = arith.constant 0 : index
    %c0_32 = arith.constant 0 : index
    %50 = vector.load %arg12[%c0_30, %c0_31, %c0_32] : memref<1x1x32xf32, #tpu.memory_space<vmem>>, vector<1x1x32xf32>
    %51 = vector.shape_cast %50 : vector<1x1x32xf32> to vector<1x32xf32>
    %52 = vector.broadcast %51 : vector<1x32xf32> to vector<48x32xf32>
    %53 = arith.addf %49, %52 : vector<48x32xf32>
    %54 = vector.shape_cast %37 : vector<48x32xf32> to vector<2x24x4x8xf32>
    %55 = tpu.transpose %54, [0, 2, 1, 3] : vector<2x24x4x8xf32> -> vector<2x4x24x8xf32>
    %56 = vector.shape_cast %55 : vector<2x4x24x8xf32> to vector<8x24x8xf32>
    %57 = vector.shape_cast %45 : vector<48x32xf32> to vector<2x24x4x8xf32>
    %58 = tpu.transpose %57, [0, 2, 1, 3] : vector<2x24x4x8xf32> -> vector<2x4x24x8xf32>
    %59 = vector.shape_cast %58 : vector<2x4x24x8xf32> to vector<8x24x8xf32>
    %60 = vector.shape_cast %53 : vector<48x32xf32> to vector<2x24x4x8xf32>
    %61 = tpu.transpose %60, [0, 2, 1, 3] : vector<2x24x4x8xf32> -> vector<2x4x24x8xf32>
    %62 = vector.shape_cast %61 : vector<2x4x24x8xf32> to vector<8x24x8xf32>
    %63 = arith.truncf %56 : vector<8x24x8xf32> to vector<8x24x8xbf16>
    %64 = arith.truncf %59 : vector<8x24x8xf32> to vector<8x24x8xbf16>
    "tpu.trace_start"() <{level = 10 : i32, message = "gqd,gkd->gqk"}> : () -> ()
    %cst_33 = arith.constant dense<0.000000e+00> : vector<8x24x24xf32>
    %65 = tpu.matmul %63, %64, %cst_33 {dimension_numbers = #tpu.dot_dimension_numbers<[2], [2], [1], [1], [0, 0, 0, 1, 1, 1], [0], [0]>} : vector<8x24x8xbf16>, vector<8x24x8xbf16>, vector<8x24x24xf32> -> vector<8x24x24xf32>
    "tpu.trace_stop"() : () -> ()
    %cst_34 = arith.constant 0.353553385 : f32
    %66 = vector.broadcast %cst_34 : f32 to vector<8x24x24xf32>
    %67 = arith.mulf %65, %66 : vector<8x24x24xf32>
    %68 = tpu.iota {dimensions = array<i32: 1>} : vector<24x24xi32>
    %c17_i32 = arith.constant 17 : i32
    %69 = vector.broadcast %c17_i32 : i32 to vector<24x24xi32>
    %70 = arith.cmpi slt, %68, %69 : vector<24x24xi32>
    %71 = vector.shape_cast %70 : vector<24x24xi1> to vector<1x24x24xi1>
    %cst_35 = arith.constant -1.000000e+30 : f32
    %72 = vector.shape_cast %71 : vector<1x24x24xi1> to vector<1x24x24xi1>
    %73 = vector.broadcast %72 : vector<1x24x24xi1> to vector<8x24x24xi1>
    %74 = vector.broadcast %cst_35 : f32 to vector<8x24x24xf32>
    %75 = arith.select %73, %67, %74 : vector<8x24x24xi1>, vector<8x24x24xf32>
    %cst_36 = arith.constant dense<0xFF800000> : vector<8x24xf32>
    %76 = vector.multi_reduction <maximumf>, %75, %cst_36 [2] : vector<8x24x24xf32> to vector<8x24xf32>
    %77 = vector.shape_cast %76 : vector<8x24xf32> to vector<8x24x1xf32>
    %78 = vector.broadcast %77 : vector<8x24x1xf32> to vector<8x24x24xf32>
    %79 = arith.subf %75, %78 : vector<8x24x24xf32>
    %80 = math.exp %79 : vector<8x24x24xf32>
    %cst_37 = arith.constant dense<0.000000e+00> : vector<8x24xf32>
    %81 = vector.multi_reduction <add>, %80, %cst_37 [2] : vector<8x24x24xf32> to vector<8x24xf32>
    %82 = vector.shape_cast %81 : vector<8x24xf32> to vector<8x24x1xf32>
    %83 = tpu.reciprocal %82 {approx = true} : vector<8x24x1xf32> -> vector<8x24x1xf32>
    %84 = vector.broadcast %83 : vector<8x24x1xf32> to vector<8x24x24xf32>
    %85 = arith.mulf %80, %84 : vector<8x24x24xf32>
    %86 = arith.truncf %85 : vector<8x24x24xf32> to vector<8x24x24xbf16>
    %87 = arith.truncf %62 : vector<8x24x8xf32> to vector<8x24x8xbf16>
    "tpu.trace_start"() <{level = 10 : i32, message = "gqk,gkd->gqd"}> : () -> ()
    %cst_38 = arith.constant dense<0.000000e+00> : vector<8x24x8xf32>
    %88 = tpu.matmul %86, %87, %cst_38 {dimension_numbers = #tpu.dot_dimension_numbers<[2], [1], [1], [2], [0, 0, 0, 1, 1, 2], [0], [0]>} : vector<8x24x24xbf16>, vector<8x24x8xbf16>, vector<8x24x8xf32> -> vector<8x24x8xf32>
    "tpu.trace_stop"() : () -> ()
    %89 = vector.shape_cast %88 : vector<8x24x8xf32> to vector<2x4x24x8xf32>
    %90 = tpu.transpose %89, [0, 2, 1, 3] : vector<2x4x24x8xf32> -> vector<2x24x4x8xf32>
    %91 = vector.shape_cast %90 : vector<2x24x4x8xf32> to vector<48x32xf32>
    %c0_39 = arith.constant 0 : index
    %c0_40 = arith.constant 0 : index
    %c0_41 = arith.constant 0 : index
    %92 = vector.load %arg13[%c0_39, %c0_40, %c0_41] : memref<1x32x32xbf16, #tpu.memory_space<vmem>>, vector<1x32x32xbf16>
    %93 = vector.shape_cast %92 : vector<1x32x32xbf16> to vector<32x32xbf16>
    %94 = arith.truncf %91 : vector<48x32xf32> to vector<48x32xbf16>
    %cst_42 = arith.constant dense<0.000000e+00> : vector<48x32xf32>
    %95 = tpu.matmul %94, %93, %cst_42 {dimension_numbers = #tpu.dot_dimension_numbers<[1], [0], [0], [1], [0, 0, 1, 1], [], []>} : vector<48x32xbf16>, vector<32x32xbf16>, vector<48x32xf32> -> vector<48x32xf32>
    %96 = arith.addf %3, %95 : vector<48x32xf32>
    %c0_43 = arith.constant 0 : index
    %c0_44 = arith.constant 0 : index
    %c0_45 = arith.constant 0 : index
    %97 = vector.load %arg14[%c0_43, %c0_44, %c0_45] : memref<1x1x32xf32, #tpu.memory_space<vmem>>, vector<1x1x32xf32>
    %98 = vector.shape_cast %97 : vector<1x1x32xf32> to vector<1x32xf32>
    %99 = vector.broadcast %98 : vector<1x32xf32> to vector<48x32xf32>
    %100 = arith.addf %96, %99 : vector<48x32xf32>
    %c0_46 = arith.constant 0 : index
    %c0_47 = arith.constant 0 : index
    %c0_48 = arith.constant 0 : index
    %101 = vector.load %arg15[%c0_46, %c0_47, %c0_48] : memref<1x1x32xf32, #tpu.memory_space<vmem>>, vector<1x1x32xf32>
    %102 = vector.shape_cast %101 : vector<1x1x32xf32> to vector<1x32xf32>
    %c0_49 = arith.constant 0 : index
    %c0_50 = arith.constant 0 : index
    %c0_51 = arith.constant 0 : index
    %103 = vector.load %arg16[%c0_49, %c0_50, %c0_51] : memref<1x1x32xf32, #tpu.memory_space<vmem>>, vector<1x1x32xf32>
    %104 = vector.shape_cast %103 : vector<1x1x32xf32> to vector<1x32xf32>
    %cst_52 = arith.constant dense<0.000000e+00> : vector<48xf32>
    %105 = vector.multi_reduction <add>, %100, %cst_52 [1] : vector<48x32xf32> to vector<48xf32>
    %106 = vector.shape_cast %105 : vector<48xf32> to vector<48x1xf32>
    %cst_53 = arith.constant 3.200000e+01 : f32
    %107 = vector.broadcast %cst_53 : f32 to vector<48x1xf32>
    %108 = arith.divf %106, %107 : vector<48x1xf32>
    %109 = vector.broadcast %108 : vector<48x1xf32> to vector<48x32xf32>
    %110 = arith.subf %100, %109 : vector<48x32xf32>
    %111 = arith.mulf %110, %110 : vector<48x32xf32>
    %cst_54 = arith.constant dense<0.000000e+00> : vector<48xf32>
    %112 = vector.multi_reduction <add>, %111, %cst_54 [1] : vector<48x32xf32> to vector<48xf32>
    %113 = vector.shape_cast %112 : vector<48xf32> to vector<48x1xf32>
    %cst_55 = arith.constant 3.200000e+01 : f32
    %114 = vector.broadcast %cst_55 : f32 to vector<48x1xf32>
    %115 = arith.divf %113, %114 : vector<48x1xf32>
    %116 = vector.broadcast %108 : vector<48x1xf32> to vector<48x32xf32>
    %117 = arith.subf %100, %116 : vector<48x32xf32>
    %cst_56 = arith.constant 9.99999974E-6 : f32
    %118 = vector.broadcast %cst_56 : f32 to vector<48x1xf32>
    %119 = arith.addf %115, %118 : vector<48x1xf32>
    %120 = math.rsqrt %119 : vector<48x1xf32>
    %121 = vector.broadcast %120 : vector<48x1xf32> to vector<48x32xf32>
    %122 = arith.mulf %117, %121 : vector<48x32xf32>
    %123 = vector.broadcast %102 : vector<1x32xf32> to vector<48x32xf32>
    %124 = arith.mulf %122, %123 : vector<48x32xf32>
    %125 = vector.broadcast %104 : vector<1x32xf32> to vector<48x32xf32>
    %126 = arith.addf %124, %125 : vector<48x32xf32>
    %c0_57 = arith.constant 0 : index
    %c0_58 = arith.constant 0 : index
    %c0_59 = arith.constant 0 : index
    %127 = vector.load %arg17[%c0_57, %c0_58, %c0_59] : memref<1x32x64xbf16, #tpu.memory_space<vmem>>, vector<1x32x64xbf16>
    %128 = vector.shape_cast %127 : vector<1x32x64xbf16> to vector<32x64xbf16>
    %129 = arith.truncf %126 : vector<48x32xf32> to vector<48x32xbf16>
    %cst_60 = arith.constant dense<0.000000e+00> : vector<48x64xf32>
    %130 = tpu.matmul %129, %128, %cst_60 {dimension_numbers = #tpu.dot_dimension_numbers<[1], [0], [0], [1], [0, 0, 1, 1], [], []>} : vector<48x32xbf16>, vector<32x64xbf16>, vector<48x64xf32> -> vector<48x64xf32>
    %c0_61 = arith.constant 0 : index
    %c0_62 = arith.constant 0 : index
    %c0_63 = arith.constant 0 : index
    %131 = vector.load %arg18[%c0_61, %c0_62, %c0_63] : memref<1x1x64xf32, #tpu.memory_space<vmem>>, vector<1x1x64xf32>
    %132 = vector.shape_cast %131 : vector<1x1x64xf32> to vector<1x64xf32>
    %133 = vector.broadcast %132 : vector<1x64xf32> to vector<48x64xf32>
    %134 = arith.addf %130, %133 : vector<48x64xf32>
    %135 = arith.mulf %134, %134 : vector<48x64xf32>
    %136 = arith.mulf %134, %135 : vector<48x64xf32>
    %cst_64 = arith.constant 4.471500e-02 : f32
    %137 = vector.broadcast %cst_64 : f32 to vector<48x64xf32>
    %138 = arith.mulf %137, %136 : vector<48x64xf32>
    %139 = arith.addf %134, %138 : vector<48x64xf32>
    %cst_65 = arith.constant 0.797884583 : f32
    %140 = vector.broadcast %cst_65 : f32 to vector<48x64xf32>
    %141 = arith.mulf %140, %139 : vector<48x64xf32>
    %142 = math.tanh %141 : vector<48x64xf32>
    %cst_66 = arith.constant 1.000000e+00 : f32
    %143 = vector.broadcast %cst_66 : f32 to vector<48x64xf32>
    %144 = arith.addf %143, %142 : vector<48x64xf32>
    %cst_67 = arith.constant 5.000000e-01 : f32
    %145 = vector.broadcast %cst_67 : f32 to vector<48x64xf32>
    %146 = arith.mulf %145, %144 : vector<48x64xf32>
    %147 = arith.mulf %134, %146 : vector<48x64xf32>
    %c0_68 = arith.constant 0 : index
    %c0_69 = arith.constant 0 : index
    %c0_70 = arith.constant 0 : index
    %148 = vector.load %arg19[%c0_68, %c0_69, %c0_70] : memref<1x64x32xbf16, #tpu.memory_space<vmem>>, vector<1x64x32xbf16>
    %149 = vector.shape_cast %148 : vector<1x64x32xbf16> to vector<64x32xbf16>
    %150 = arith.truncf %147 : vector<48x64xf32> to vector<48x64xbf16>
    %cst_71 = arith.constant dense<0.000000e+00> : vector<48x32xf32>
    %151 = tpu.matmul %150, %149, %cst_71 {dimension_numbers = #tpu.dot_dimension_numbers<[1], [0], [0], [1], [0, 0, 1, 1], [], []>} : vector<48x64xbf16>, vector<64x32xbf16>, vector<48x32xf32> -> vector<48x32xf32>
    %152 = arith.addf %100, %151 : vector<48x32xf32>
    %c0_72 = arith.constant 0 : index
    %c0_73 = arith.constant 0 : index
    %c0_74 = arith.constant 0 : index
    %153 = vector.load %arg20[%c0_72, %c0_73, %c0_74] : memref<1x1x32xf32, #tpu.memory_space<vmem>>, vector<1x1x32xf32>
    %154 = vector.shape_cast %153 : vector<1x1x32xf32> to vector<1x32xf32>
    %155 = vector.broadcast %154 : vector<1x32xf32> to vector<48x32xf32>
    %156 = arith.addf %152, %155 : vector<48x32xf32>
    %c0_75 = arith.constant 0 : index
    %c0_76 = arith.constant 0 : index
    %157 = vector.load %arg26[%c0_75, %c0_76] : memref<48x32xf32, #tpu.memory_space<vmem>>, vector<48x32xf32>
    tpu.vector_store %arg26[%c0_75, %c0_76], %156 {strides = array<i32>} : memref<48x32xf32, #tpu.memory_space<vmem>>, vector<48x32xf32>,
    %c1_i32 = arith.constant 1 : i32
    %158 = arith.cmpi eq, %arg1, %c1_i32 : i32
    %159 = arith.extui %158 : i1 to i32
    %c0_i32_77 = arith.constant 0 : i32
    %160 = arith.cmpi ne, %159, %c0_i32_77 : i32
    scf.if %160 {
      %161 = vector.shape_cast %156 : vector<48x32xf32> to vector<2x24x32xf32>
      %162 = vector.extract_strided_slice %161 {offsets = [0, 0, 0], sizes = [2, 1, 32], strides = [1, 1, 1]} : vector<2x24x32xf32> to vector<2x1x32xf32>
      %163 = vector.shape_cast %162 : vector<2x1x32xf32> to vector<2x32xf32>
      %c0_78 = arith.constant 0 : index
      %c0_79 = arith.constant 0 : index
      %164 = vector.load %arg21[%c0_78, %c0_79] : memref<1x32xf32, #tpu.memory_space<vmem>>, vector<1x32xf32>
      %c0_80 = arith.constant 0 : index
      %c0_81 = arith.constant 0 : index
      %165 = vector.load %arg22[%c0_80, %c0_81] : memref<1x32xf32, #tpu.memory_space<vmem>>, vector<1x32xf32>
      %cst_82 = arith.constant dense<0.000000e+00> : vector<2xf32>
      %166 = vector.multi_reduction <add>, %163, %cst_82 [1] : vector<2x32xf32> to vector<2xf32>
      %167 = vector.shape_cast %166 : vector<2xf32> to vector<2x1xf32>
      %cst_83 = arith.constant 3.200000e+01 : f32
      %168 = vector.broadcast %cst_83 : f32 to vector<2x1xf32>
      %169 = arith.divf %167, %168 : vector<2x1xf32>
      %170 = vector.broadcast %169 : vector<2x1xf32> to vector<2x32xf32>
      %171 = arith.subf %163, %170 : vector<2x32xf32>
      %172 = arith.mulf %171, %171 : vector<2x32xf32>
      %cst_84 = arith.constant dense<0.000000e+00> : vector<2xf32>
      %173 = vector.multi_reduction <add>, %172, %cst_84 [1] : vector<2x32xf32> to vector<2xf32>
      %174 = vector.shape_cast %173 : vector<2xf32> to vector<2x1xf32>
      %cst_85 = arith.constant 3.200000e+01 : f32
      %175 = vector.broadcast %cst_85 : f32 to vector<2x1xf32>
      %176 = arith.divf %174, %175 : vector<2x1xf32>
      %177 = vector.broadcast %169 : vector<2x1xf32> to vector<2x32xf32>
      %178 = arith.subf %163, %177 : vector<2x32xf32>
      %cst_86 = arith.constant 9.99999974E-6 : f32
      %179 = vector.broadcast %cst_86 : f32 to vector<2x1xf32>
      %180 = arith.addf %176, %179 : vector<2x1xf32>
      %181 = math.rsqrt %180 : vector<2x1xf32>
      %182 = vector.broadcast %181 : vector<2x1xf32> to vector<2x32xf32>
      %183 = arith.mulf %178, %182 : vector<2x32xf32>
      %184 = vector.broadcast %164 : vector<1x32xf32> to vector<2x32xf32>
      %185 = arith.mulf %183, %184 : vector<2x32xf32>
      %186 = vector.broadcast %165 : vector<1x32xf32> to vector<2x32xf32>
      %187 = arith.addf %185, %186 : vector<2x32xf32>
      %c0_87 = arith.constant 0 : index
      %c0_88 = arith.constant 0 : index
      %188 = vector.load %arg23[%c0_87, %c0_88] : memref<32x128xf32, #tpu.memory_space<vmem>>, vector<32x128xf32>
      %cst_89 = arith.constant dense<0.000000e+00> : vector<2x128xf32>
      %189 = tpu.matmul %187, %188, %cst_89 {dimension_numbers = #tpu.dot_dimension_numbers<[1], [0], [0], [1], [0, 0, 1, 1], [], []>} : vector<2x32xf32>, vector<32x128xf32>, vector<2x128xf32> -> vector<2x128xf32>
      %c0_90 = arith.constant 0 : index
      %c0_91 = arith.constant 0 : index
      %190 = vector.load %arg24[%c0_90, %c0_91] : memref<1x128xf32, #tpu.memory_space<vmem>>, vector<1x128xf32>
      %191 = vector.broadcast %190 : vector<1x128xf32> to vector<2x128xf32>
      %192 = arith.addf %189, %191 : vector<2x128xf32>
      %c0_92 = arith.constant 0 : index
      %c0_93 = arith.constant 0 : index
      %193 = vector.load %arg25[%c0_92, %c0_93] : memref<2x128xf32, #tpu.memory_space<vmem>>, vector<2x128xf32>
      tpu.vector_store %arg25[%c0_92, %c0_93], %192 {strides = array<i32>} : memref<2x128xf32, #tpu.memory_space<vmem>>, vector<2x128xf32>,
    } else {
    }
    return
  }
  func.func @transform_0(%arg0: i32, %arg1: i32) -> (i32, i32, i32) {
    %c0_i32 = arith.constant 0 : i32
    %c0_i32_0 = arith.constant 0 : i32
    %c0_i32_1 = arith.constant 0 : i32
    return %arg0, %c0_i32, %c0_i32_0 : i32, i32, i32
  }
  func.func @transform_1(%arg0: i32, %arg1: i32) -> (i32, i32) {
    %c0_i32 = arith.constant 0 : i32
    %c0_i32_0 = arith.constant 0 : i32
    %c0_i32_1 = arith.constant 0 : i32
    return %c0_i32, %c0_i32_0 : i32, i32
  }
  func.func @transform_2(%arg0: i32, %arg1: i32) -> (i32, i32) {
    %c0_i32 = arith.constant 0 : i32
    %c0_i32_0 = arith.constant 0 : i32
    %c0_i32_1 = arith.constant 0 : i32
    return %c0_i32, %c0_i32_0 : i32, i32
  }
  func.func @transform_3(%arg0: i32, %arg1: i32) -> (i32, i32, i32) {
    %c0_i32 = arith.constant 0 : i32
    %c0_i32_0 = arith.constant 0 : i32
    %c0_i32_1 = arith.constant 0 : i32
    return %arg1, %c0_i32, %c0_i32_0 : i32, i32, i32
  }
  func.func @transform_4(%arg0: i32, %arg1: i32) -> (i32, i32, i32) {
    %c0_i32 = arith.constant 0 : i32
    %c0_i32_0 = arith.constant 0 : i32
    %c0_i32_1 = arith.constant 0 : i32
    return %arg1, %c0_i32, %c0_i32_0 : i32, i32, i32
  }
  func.func @transform_5(%arg0: i32, %arg1: i32) -> (i32, i32, i32) {
    %c0_i32 = arith.constant 0 : i32
    %c0_i32_0 = arith.constant 0 : i32
    %c0_i32_1 = arith.constant 0 : i32
    return %arg1, %c0_i32, %c0_i32_0 : i32, i32, i32
  }
  func.func @transform_6(%arg0: i32, %arg1: i32) -> (i32, i32, i32) {
    %c0_i32 = arith.constant 0 : i32
    %c0_i32_0 = arith.constant 0 : i32
    %c0_i32_1 = arith.constant 0 : i32
    return %arg1, %c0_i32, %c0_i32_0 : i32, i32, i32
  }
  func.func @transform_7(%arg0: i32, %arg1: i32) -> (i32, i32, i32) {
    %c0_i32 = arith.constant 0 : i32
    %c0_i32_0 = arith.constant 0 : i32
    %c0_i32_1 = arith.constant 0 : i32
    return %arg1, %c0_i32, %c0_i32_0 : i32, i32, i32
  }
  func.func @transform_8(%arg0: i32, %arg1: i32) -> (i32, i32, i32) {
    %c0_i32 = arith.constant 0 : i32
    %c0_i32_0 = arith.constant 0 : i32
    %c0_i32_1 = arith.constant 0 : i32
    return %arg1, %c0_i32, %c0_i32_0 : i32, i32, i32
  }
  func.func @transform_9(%arg0: i32, %arg1: i32) -> (i32, i32, i32) {
    %c0_i32 = arith.constant 0 : i32
    %c0_i32_0 = arith.constant 0 : i32
    %c0_i32_1 = arith.constant 0 : i32
    return %arg1, %c0_i32, %c0_i32_0 : i32, i32, i32
  }
  func.func @transform_10(%arg0: i32, %arg1: i32) -> (i32, i32, i32) {
    %c0_i32 = arith.constant 0 : i32
    %c0_i32_0 = arith.constant 0 : i32
    %c0_i32_1 = arith.constant 0 : i32
    return %arg1, %c0_i32, %c0_i32_0 : i32, i32, i32
  }
  func.func @transform_11(%arg0: i32, %arg1: i32) -> (i32, i32, i32) {
    %c0_i32 = arith.constant 0 : i32
    %c0_i32_0 = arith.constant 0 : i32
    %c0_i32_1 = arith.constant 0 : i32
    return %arg1, %c0_i32, %c0_i32_0 : i32, i32, i32
  }
  func.func @transform_12(%arg0: i32, %arg1: i32) -> (i32, i32, i32) {
    %c0_i32 = arith.constant 0 : i32
    %c0_i32_0 = arith.constant 0 : i32
    %c0_i32_1 = arith.constant 0 : i32
    return %arg1, %c0_i32, %c0_i32_0 : i32, i32, i32
  }
  func.func @transform_13(%arg0: i32, %arg1: i32) -> (i32, i32, i32) {
    %c0_i32 = arith.constant 0 : i32
    %c0_i32_0 = arith.constant 0 : i32
    %c0_i32_1 = arith.constant 0 : i32
    return %arg1, %c0_i32, %c0_i32_0 : i32, i32, i32
  }
  func.func @transform_14(%arg0: i32, %arg1: i32) -> (i32, i32, i32) {
    %c0_i32 = arith.constant 0 : i32
    %c0_i32_0 = arith.constant 0 : i32
    %c0_i32_1 = arith.constant 0 : i32
    return %arg1, %c0_i32, %c0_i32_0 : i32, i32, i32
  }
  func.func @transform_15(%arg0: i32, %arg1: i32) -> (i32, i32, i32) {
    %c0_i32 = arith.constant 0 : i32
    %c0_i32_0 = arith.constant 0 : i32
    %c0_i32_1 = arith.constant 0 : i32
    return %arg1, %c0_i32, %c0_i32_0 : i32, i32, i32
  }
  func.func @transform_16(%arg0: i32, %arg1: i32) -> (i32, i32, i32) {
    %c0_i32 = arith.constant 0 : i32
    %c0_i32_0 = arith.constant 0 : i32
    %c0_i32_1 = arith.constant 0 : i32
    return %arg1, %c0_i32, %c0_i32_0 : i32, i32, i32
  }
  func.func @transform_17(%arg0: i32, %arg1: i32) -> (i32, i32, i32) {
    %c0_i32 = arith.constant 0 : i32
    %c0_i32_0 = arith.constant 0 : i32
    %c0_i32_1 = arith.constant 0 : i32
    return %arg1, %c0_i32, %c0_i32_0 : i32, i32, i32
  }
  func.func @transform_18(%arg0: i32, %arg1: i32) -> (i32, i32, i32) {
    %c0_i32 = arith.constant 0 : i32
    %c0_i32_0 = arith.constant 0 : i32
    %c0_i32_1 = arith.constant 0 : i32
    return %arg1, %c0_i32, %c0_i32_0 : i32, i32, i32
  }
  func.func @transform_19(%arg0: i32, %arg1: i32) -> (i32, i32) {
    %c0_i32 = arith.constant 0 : i32
    %c0_i32_0 = arith.constant 0 : i32
    %c0_i32_1 = arith.constant 0 : i32
    return %c0_i32, %c0_i32_0 : i32, i32
  }
  func.func @transform_20(%arg0: i32, %arg1: i32) -> (i32, i32) {
    %c0_i32 = arith.constant 0 : i32
    %c0_i32_0 = arith.constant 0 : i32
    %c0_i32_1 = arith.constant 0 : i32
    return %c0_i32, %c0_i32_0 : i32, i32
  }
  func.func @transform_21(%arg0: i32, %arg1: i32) -> (i32, i32) {
    %c0_i32 = arith.constant 0 : i32
    %c0_i32_0 = arith.constant 0 : i32
    %c0_i32_1 = arith.constant 0 : i32
    return %c0_i32, %c0_i32_0 : i32, i32
  }
  func.func @transform_22(%arg0: i32, %arg1: i32) -> (i32, i32) {
    %c0_i32 = arith.constant 0 : i32
    %c0_i32_0 = arith.constant 0 : i32
    %c0_i32_1 = arith.constant 0 : i32
    return %c0_i32, %c0_i32_0 : i32, i32
  }
  func.func @transform_23(%arg0: i32, %arg1: i32) -> (i32, i32) {
    %c0_i32 = arith.constant 0 : i32
    %c0_i32_0 = arith.constant 0 : i32
    return %arg0, %c0_i32 : i32, i32
  }
}

</mosaic_0001>

<llo_original>
// kernel: vit_forward.1
$region0: #{vit_forward.1}
  #allocation0 [shape = 'u32[]', space=smem, size = 0x4, offset = 0x4, fixed_abs, tag = 'smem constant byte address 0x4 - core index']
  #allocation1 [shape = 'u32[72,128]{1,0:T(1,128)}', space=vmem, size = 0x9000, scoped, tag = 'internal scratch']
  #allocation2 [shape = 'f32[48,32]{1,0:T(8,128)}', space=vmem, size = 0x6000, scoped, tag = 'scratch operand']
  %s0 = inlined_call_operand.vmem [shape: f32[2,24,64], index: 0, kind: input, shape index: {}]
  %s1 = inlined_call_operand.vmem [shape: f32[64,32], index: 1, kind: input, shape index: {}]
  %s2 = inlined_call_operand.vmem [shape: f32[24,32], index: 2, kind: input, shape index: {}]
  %s3 = inlined_call_operand.vmem [shape: f32[2,1,32], index: 3, kind: input, shape index: {}]
  %s4 = inlined_call_operand.vmem [shape: f32[2,1,32], index: 4, kind: input, shape index: {}]
  %s5 = inlined_call_operand.vmem [shape: bf16[2,32,32], index: 5, kind: input, shape index: {}]
  %s6 = inlined_call_operand.vmem [shape: f32[2,1,32], index: 6, kind: input, shape index: {}]
  %s7 = inlined_call_operand.vmem [shape: bf16[2,32,32], index: 7, kind: input, shape index: {}]
  %s8 = inlined_call_operand.vmem [shape: f32[2,1,32], index: 8, kind: input, shape index: {}]
  %s9 = inlined_call_operand.vmem [shape: bf16[2,32,32], index: 9, kind: input, shape index: {}]
  %s10 = inlined_call_operand.vmem [shape: f32[2,1,32], index: 10, kind: input, shape index: {}]
  %s11 = inlined_call_operand.vmem [shape: bf16[2,32,32], index: 11, kind: input, shape index: {}]
  %s12 = inlined_call_operand.vmem [shape: f32[2,1,32], index: 12, kind: input, shape index: {}]
  %s13 = inlined_call_operand.vmem [shape: f32[2,1,32], index: 13, kind: input, shape index: {}]
  %s14 = inlined_call_operand.vmem [shape: f32[2,1,32], index: 14, kind: input, shape index: {}]
  %s15 = inlined_call_operand.vmem [shape: bf16[2,32,64], index: 15, kind: input, shape index: {}]
  %s16 = inlined_call_operand.vmem [shape: f32[2,1,64], index: 16, kind: input, shape index: {}]
  %s17 = inlined_call_operand.vmem [shape: bf16[2,64,32], index: 17, kind: input, shape index: {}]
  %s18 = inlined_call_operand.vmem [shape: f32[2,1,32], index: 18, kind: input, shape index: {}]
  %s19 = inlined_call_operand.vmem [shape: f32[1,32], index: 19, kind: input, shape index: {}]
  %s20 = inlined_call_operand.vmem [shape: f32[1,32], index: 20, kind: input, shape index: {}]
  %s21 = inlined_call_operand.vmem [shape: f32[32,128], index: 21, kind: input, shape index: {}]
  %s22 = inlined_call_operand.vmem [shape: f32[1,128], index: 22, kind: input, shape index: {}]
  %s23 = inlined_call_operand.hbm [shape: f32[2,128], index: 23, kind: output, shape index: {}]
  %s24 = sld [smem:[#allocation0]]
  $region133: #{vit_forward.1} parent=0
    _
  %s26 = ssub.s32 1, %s24
  %s27 = scalar_select 0, %s26, %s24
  $region1: #{vit_forward.1} parent=0
    #allocation3 [shape = 'u8[1024]{0}', space=vmem, size = 0x400, scoped, tag = 'output window, operand 0, single buffered']
    #allocation4 [shape = 's32[2]{0}', space=sflag, size = 0x8, scoped, tag = 'scoped memory for vit_forward.1']
    %28 = vsyncpa [#allocation4], 0
    loop: start=0, step=1, limit=4
    $region2: #{vit_forward.1} parent=1 // loop_pre_header
      _
    $region3: #{vit_forward.1} parent=1 // loop_header
      %s30 = sphi 0, %s34
      %p31 = scmp.ge.s32.totalorder %s30, 4
      %s37 = sphi 0, %s49
      %s38 = sphi 0, %s45
      %s39 = sphi 0, %s37
      %s40 = sphi 0, %s38
      %s41 = sphi 0, %s39
      %s42 = sphi 0, %s40
      %s52 = sphi 0, %s54
      %s55 = sphi 0, %s52
      %s56 = sphi 0, %s55
      %s72 = sphi 0, %s56
      %s76 = sphi 0, %s76
      %s78 = sphi 0, %s76
      %s79 = sphi 0, %s78
      %s93 = sphi 0, %s79
      %s97 = sphi 0, %s97
      %s99 = sphi 0, %s97
      %s100 = sphi 0, %s99
      %s114 = sphi 0, %s100
      %s120 = sphi 0, %s122
      %s123 = sphi 0, %s120
      %s124 = sphi 0, %s123
      %s140 = sphi 0, %s124
      %s146 = sphi 0, %s148
      %s149 = sphi 0, %s146
      %s150 = sphi 0, %s149
      %s166 = sphi 0, %s150
      %s172 = sphi 0, %s174
      %s175 = sphi 0, %s172
      %s176 = sphi 0, %s175
      %s192 = sphi 0, %s176
      %s198 = sphi 0, %s200
      %s201 = sphi 0, %s198
      %s202 = sphi 0, %s201
      %s218 = sphi 0, %s202
      %s224 = sphi 0, %s226
      %s227 = sphi 0, %s224
      %s228 = sphi 0, %s227
      %s244 = sphi 0, %s228
      %s250 = sphi 0, %s252
      %s253 = sphi 0, %s250
      %s254 = sphi 0, %s253
      %s270 = sphi 0, %s254
      %s276 = sphi 0, %s278
      %s279 = sphi 0, %s276
      %s280 = sphi 0, %s279
      %s296 = sphi 0, %s280
      %s302 = sphi 0, %s304
      %s305 = sphi 0, %s302
      %s306 = sphi 0, %s305
      %s322 = sphi 0, %s306
      %s328 = sphi 0, %s330
      %s331 = sphi 0, %s328
      %s332 = sphi 0, %s331
      %s348 = sphi 0, %s332
      %s354 = sphi 0, %s356
      %s357 = sphi 0, %s354
      %s358 = sphi 0, %s357
      %s374 = sphi 0, %s358
      %s380 = sphi 0, %s382
      %s383 = sphi 0, %s380
      %s384 = sphi 0, %s383
      %s400 = sphi 0, %s384
      %s406 = sphi 0, %s408
      %s409 = sphi 0, %s406
      %s410 = sphi 0, %s409
      %s426 = sphi 0, %s410
      %s432 = sphi 0, %s434
      %s435 = sphi 0, %s432
      %s436 = sphi 0, %s435
      %s452 = sphi 0, %s436
      %s458 = sphi 0, %s460
      %s461 = sphi 0, %s458
      %s462 = sphi 0, %s461
      %s478 = sphi 0, %s462
      %s484 = sphi 0, %s486
      %s487 = sphi 0, %s484
      %s488 = sphi 0, %s487
      %s504 = sphi 0, %s488
      %s510 = sphi 0, %s512
      %s513 = sphi 0, %s510
      %s514 = sphi 0, %s513
      %s530 = sphi 0, %s514
      %s534 = sphi 0, %s534
      %s536 = sphi 0, %s534
      %s537 = sphi 0, %s536
      %s551 = sphi 0, %s537
      %s555 = sphi 0, %s555
      %s557 = sphi 0, %s555
      %s558 = sphi 0, %s557
      %s572 = sphi 0, %s558
      %s576 = sphi 0, %s576
      %s578 = sphi 0, %s576
      %s579 = sphi 0, %s578
      %s593 = sphi 0, %s579
      %s597 = sphi 0, %s597
      %s599 = sphi 0, %s597
      %s600 = sphi 0, %s599
      %s614 = sphi 0, %s600
      %s620 = sphi 0, %s622
      %s623 = sphi 0, %s620
      %s624 = sphi 0, %s623
      %s640 = sphi 0, %s624
    $region4: #{vit_forward.1} parent=1 // loop_header_branch
      %33 = sbr.rel (%p31) target = $region8
    $region5: #{vit_forward.1} parent=1 // loop_body
      %s35 = ssub.s32 %s30, 1
      %s36 = ssub.s32 %s30, 2
      %s43 = sadd.s32 1, %s38
      %p44 = scmp.ge.s32.totalorder %s43, 2
      %s45 = scalar_select %p44, 0, %s43
      %s46 = sadd.s32 1, %s37
      %s47 = scalar_select %p44, %s46, %s37
      %p48 = scmp.ge.s32.totalorder %s47, 1
      %s49 = scalar_select %p48, 0, %s47
      %s50 = ssub.s32 %s37, %s49
      %p51 = scmp.eq.s32.totalorder %s50, 0
      %s53 = sadd.s32 %s52, 1
      %s54 = scalar_select %p51, %s52, %s53
      %p57 = pneg %p51
      %p58 = scmp.eq.s32.totalorder %s30, 1
      %p59 = por %p57, %p58
      %p60 = scmp.ne.s32.totalorder %s52, %s55
      %p61 = scmp.eq.s32.totalorder %s30, 0
      %p62 = por %p60, %p61
      %p63 = scmp.ne.s32.totalorder %s52, %s55
      %p64 = scmp.eq.s32.totalorder %s35, 1
      %p65 = por %p63, %p64
      %p66 = scmp.ne.s32.totalorder %s55, %s56
      %p67 = scmp.eq.s32.totalorder %s35, 0
      %p68 = por %p66, %p67
      %p69 = scmp.ne.s32.totalorder %s55, %s56
      %p70 = scmp.eq.s32.totalorder %s36, 1
      %p71 = por %p69, %p70
      %p73 = scmp.ne.s32.totalorder %s56, %s72
      %p74 = scmp.eq.s32.totalorder %s36, 0
      %p75 = por %p73, %p74
      %s77 = sadd.s32 %s76, 1
      %p80 = scmp.eq.s32.totalorder %s30, 1
      %p81 = scmp.ne.s32.totalorder %s76, %s78
      %p82 = scmp.eq.s32.totalorder %s30, 0
      %p83 = por %p81, %p82
      %p84 = scmp.ne.s32.totalorder %s76, %s78
      %p85 = scmp.eq.s32.totalorder %s35, 1
      %p86 = por %p84, %p85
      %p87 = scmp.ne.s32.totalorder %s78, %s79
      %p88 = scmp.eq.s32.totalorder %s35, 0
      %p89 = por %p87, %p88
      %p90 = scmp.ne.s32.totalorder %s78, %s79
      %p91 = scmp.eq.s32.totalorder %s36, 1
      %p92 = por %p90, %p91
      %p94 = scmp.ne.s32.totalorder %s79, %s93
      %p95 = scmp.eq.s32.totalorder %s36, 0
      %p96 = por %p94, %p95
      %s98 = sadd.s32 %s97, 1
      %p101 = scmp.eq.s32.totalorder %s30, 1
      %p102 = scmp.ne.s32.totalorder %s97, %s99
      %p103 = scmp.eq.s32.totalorder %s30, 0
      %p104 = por %p102, %p103
      %p105 = scmp.ne.s32.totalorder %s97, %s99
      %p106 = scmp.eq.s32.totalorder %s35, 1
      %p107 = por %p105, %p106
      %p108 = scmp.ne.s32.totalorder %s99, %s100
      %p109 = scmp.eq.s32.totalorder %s35, 0
      %p110 = por %p108, %p109
      %p111 = scmp.ne.s32.totalorder %s99, %s100
      %p112 = scmp.eq.s32.totalorder %s36, 1
      %p113 = por %p111, %p112
      %p115 = scmp.ne.s32.totalorder %s100, %s114
      %p116 = scmp.eq.s32.totalorder %s36, 0
      %p117 = por %p115, %p116
      %s118 = ssub.s32 %s38, %s45
      %p119 = scmp.eq.s32.totalorder %s118, 0
      %s121 = sadd.s32 %s120, 1
      %s122 = scalar_select %p119, %s120, %s121
      %p125 = pneg %p119
      %p126 = scmp.eq.s32.totalorder %s30, 1
      %p127 = por %p125, %p126
      %p128 = scmp.ne.s32.totalorder %s120, %s123
      %p129 = scmp.eq.s32.totalorder %s30, 0
      %p130 = por %p128, %p129
      %p131 = scmp.ne.s32.totalorder %s120, %s123
      %p132 = scmp.eq.s32.totalorder %s35, 1
      %p133 = por %p131, %p132
      %p134 = scmp.ne.s32.totalorder %s123, %s124
      %p135 = scmp.eq.s32.totalorder %s35, 0
      %p136 = por %p134, %p135
      %p137 = scmp.ne.s32.totalorder %s123, %s124
      %p138 = scmp.eq.s32.totalorder %s36, 1
      %p139 = por %p137, %p138
      %p141 = scmp.ne.s32.totalorder %s124, %s140
      %p142 = scmp.eq.s32.totalorder %s36, 0
      %p143 = por %p141, %p142
      %s144 = ssub.s32 %s38, %s45
      %p145 = scmp.eq.s32.totalorder %s144, 0
      %s147 = sadd.s32 %s146, 1
      %s148 = scalar_select %p145, %s146, %s147
      %p151 = pneg %p145
      %p152 = scmp.eq.s32.totalorder %s30, 1
      %p153 = por %p151, %p152
      %p154 = scmp.ne.s32.totalorder %s146, %s149
      %p155 = scmp.eq.s32.totalorder %s30, 0
      %p156 = por %p154, %p155
      %p157 = scmp.ne.s32.totalorder %s146, %s149
      %p158 = scmp.eq.s32.totalorder %s35, 1
      %p159 = por %p157, %p158
      %p160 = scmp.ne.s32.totalorder %s149, %s150
      %p161 = scmp.eq.s32.totalorder %s35, 0
      %p162 = por %p160, %p161
      %p163 = scmp.ne.s32.totalorder %s149, %s150
      %p164 = scmp.eq.s32.totalorder %s36, 1
      %p165 = por %p163, %p164
      %p167 = scmp.ne.s32.totalorder %s150, %s166
      %p168 = scmp.eq.s32.totalorder %s36, 0
      %p169 = por %p167, %p168
      %s170 = ssub.s32 %s38, %s45
      %p171 = scmp.eq.s32.totalorder %s170, 0
      %s173 = sadd.s32 %s172, 1
      %s174 = scalar_select %p171, %s172, %s173
      %p177 = pneg %p171
      %p178 = scmp.eq.s32.totalorder %s30, 1
      %p179 = por %p177, %p178
      %p180 = scmp.ne.s32.totalorder %s172, %s175
      %p181 = scmp.eq.s32.totalorder %s30, 0
      %p182 = por %p180, %p181
      %p183 = scmp.ne.s32.totalorder %s172, %s175
      %p184 = scmp.eq.s32.totalorder %s35, 1
      %p185 = por %p183, %p184
      %p186 = scmp.ne.s32.totalorder %s175, %s176
      %p187 = scmp.eq.s32.totalorder %s35, 0
      %p188 = por %p186, %p187
      %p189 = scmp.ne.s32.totalorder %s175, %s176
      %p190 = scmp.eq.s32.totalorder %s36, 1
      %p191 = por %p189, %p190
      %p193 = scmp.ne.s32.totalorder %s176, %s192
      %p194 = scmp.eq.s32.totalorder %s36, 0
      %p195 = por %p193, %p194
      %s196 = ssub.s32 %s38, %s45
      %p197 = scmp.eq.s32.totalorder %s196, 0
      %s199 = sadd.s32 %s198, 1
      %s200 = scalar_select %p197, %s198, %s199
      %p203 = pneg %p197
      %p204 = scmp.eq.s32.totalorder %s30, 1
      %p205 = por %p203, %p204
      %p206 = scmp.ne.s32.totalorder %s198, %s201
      %p207 = scmp.eq.s32.totalorder %s30, 0
      %p208 = por %p206, %p207
      %p209 = scmp.ne.s32.totalorder %s198, %s201
      %p210 = scmp.eq.s32.totalorder %s35, 1
      %p211 = por %p209, %p210
      %p212 = scmp.ne.s32.totalorder %s201, %s202
      %p213 = scmp.eq.s32.totalorder %s35, 0
      %p214 = por %p212, %p213
      %p215 = scmp.ne.s32.totalorder %s201, %s202
      %p216 = scmp.eq.s32.totalorder %s36, 1
      %p217 = por %p215, %p216
      %p219 = scmp.ne.s32.totalorder %s202, %s218
      %p220 = scmp.eq.s32.totalorder %s36, 0
      %p221 = por %p219, %p220
      %s222 = ssub.s32 %s38, %s45
      %p223 = scmp.eq.s32.totalorder %s222, 0
      %s225 = sadd.s32 %s224, 1
      %s226 = scalar_select %p223, %s224, %s225
      %p229 = pneg %p223
      %p230 = scmp.eq.s32.totalorder %s30, 1
      %p231 = por %p229, %p230
      %p232 = scmp.ne.s32.totalorder %s224, %s227
      %p233 = scmp.eq.s32.totalorder %s30, 0
      %p234 = por %p232, %p233
      %p235 = scmp.ne.s32.totalorder %s224, %s227
      %p236 = scmp.eq.s32.totalorder %s35, 1
      %p237 = por %p235, %p236
      %p238 = scmp.ne.s32.totalorder %s227, %s228
      %p239 = scmp.eq.s32.totalorder %s35, 0
      %p240 = por %p238, %p239
      %p241 = scmp.ne.s32.totalorder %s227, %s228
      %p242 = scmp.eq.s32.totalorder %s36, 1
      %p243 = por %p241, %p242
      %p245 = scmp.ne.s32.totalorder %s228, %s244
      %p246 = scmp.eq.s32.totalorder %s36, 0
      %p247 = por %p245, %p246
      %s248 = ssub.s32 %s38, %s45
      %p249 = scmp.eq.s32.totalorder %s248, 0
      %s251 = sadd.s32 %s250, 1
      %s252 = scalar_select %p249, %s250, %s251
      %p255 = pneg %p249
      %p256 = scmp.eq.s32.totalorder %s30, 1
      %p257 = por %p255, %p256
      %p258 = scmp.ne.s32.totalorder %s250, %s253
      %p259 = scmp.eq.s32.totalorder %s30, 0
      %p260 = por %p258, %p259
      %p261 = scmp.ne.s32.totalorder %s250, %s253
      %p262 = scmp.eq.s32.totalorder %s35, 1
      %p263 = por %p261, %p262
      %p264 = scmp.ne.s32.totalorder %s253, %s254
      %p265 = scmp.eq.s32.totalorder %s35, 0
      %p266 = por %p264, %p265
      %p267 = scmp.ne.s32.totalorder %s253, %s254
      %p268 = scmp.eq.s32.totalorder %s36, 1
      %p269 = por %p267, %p268
      %p271 = scmp.ne.s32.totalorder %s254, %s270
      %p272 = scmp.eq.s32.totalorder %s36, 0
      %p273 = por %p271, %p272
      %s274 = ssub.s32 %s38, %s45
      %p275 = scmp.eq.s32.totalorder %s274, 0
      %s277 = sadd.s32 %s276, 1
      %s278 = scalar_select %p275, %s276, %s277
      %p281 = pneg %p275
      %p282 = scmp.eq.s32.totalorder %s30, 1
      %p283 = por %p281, %p282
      %p284 = scmp.ne.s32.totalorder %s276, %s279
      %p285 = scmp.eq.s32.totalorder %s30, 0
      %p286 = por %p284, %p285
      %p287 = scmp.ne.s32.totalorder %s276, %s279
      %p288 = scmp.eq.s32.totalorder %s35, 1
      %p289 = por %p287, %p288
      %p290 = scmp.ne.s32.totalorder %s279, %s280
      %p291 = scmp.eq.s32.totalorder %s35, 0
      %p292 = por %p290, %p291
      %p293 = scmp.ne.s32.totalorder %s279, %s280
      %p294 = scmp.eq.s32.totalorder %s36, 1
      %p295 = por %p293, %p294
      %p297 = scmp.ne.s32.totalorder %s280, %s296
      %p298 = scmp.eq.s32.totalorder %s36, 0
      %p299 = por %p297, %p298
      %s300 = ssub.s32 %s38, %s45
      %p301 = scmp.eq.s32.totalorder %s300, 0
      %s303 = sadd.s32 %s302, 1
      %s304 = scalar_select %p301, %s302, %s303
      %p307 = pneg %p301
      %p308 = scmp.eq.s32.totalorder %s30, 1
      %p309 = por %p307, %p308
      %p310 = scmp.ne.s32.totalorder %s302, %s305
      %p311 = scmp.eq.s32.totalorder %s30, 0
      %p312 = por %p310, %p311
      %p313 = scmp.ne.s32.totalorder %s302, %s305
      %p314 = scmp.eq.s32.totalorder %s35, 1
      %p315 = por %p313, %p314
      %p316 = scmp.ne.s32.totalorder %s305, %s306
      %p317 = scmp.eq.s32.totalorder %s35, 0
      %p318 = por %p316, %p317
      %p319 = scmp.ne.s32.totalorder %s305, %s306
      %p320 = scmp.eq.s32.totalorder %s36, 1
      %p321 = por %p319, %p320
      %p323 = scmp.ne.s32.totalorder %s306, %s322
      %p324 = scmp.eq.s32.totalorder %s36, 0
      %p325 = por %p323, %p324
      %s326 = ssub.s32 %s38, %s45
      %p327 = scmp.eq.s32.totalorder %s326, 0
      %s329 = sadd.s32 %s328, 1
      %s330 = scalar_select %p327, %s328, %s329
      %p333 = pneg %p327
      %p334 = scmp.eq.s32.totalorder %s30, 1
      %p335 = por %p333, %p334
      %p336 = scmp.ne.s32.totalorder %s328, %s331
      %p337 = scmp.eq.s32.totalorder %s30, 0
      %p338 = por %p336, %p337
      %p339 = scmp.ne.s32.totalorder %s328, %s331
      %p340 = scmp.eq.s32.totalorder %s35, 1
      %p341 = por %p339, %p340
      %p342 = scmp.ne.s32.totalorder %s331, %s332
      %p343 = scmp.eq.s32.totalorder %s35, 0
      %p344 = por %p342, %p343
      %p345 = scmp.ne.s32.totalorder %s331, %s332
      %p346 = scmp.eq.s32.totalorder %s36, 1
      %p347 = por %p345, %p346
      %p349 = scmp.ne.s32.totalorder %s332, %s348
      %p350 = scmp.eq.s32.totalorder %s36, 0
      %p351 = por %p349, %p350
      %s352 = ssub.s32 %s38, %s45
      %p353 = scmp.eq.s32.totalorder %s352, 0
      %s355 = sadd.s32 %s354, 1
      %s356 = scalar_select %p353, %s354, %s355
      %p359 = pneg %p353
      %p360 = scmp.eq.s32.totalorder %s30, 1
      %p361 = por %p359, %p360
      %p362 = scmp.ne.s32.totalorder %s354, %s357
      %p363 = scmp.eq.s32.totalorder %s30, 0
      %p364 = por %p362, %p363
      %p365 = scmp.ne.s32.totalorder %s354, %s357
      %p366 = scmp.eq.s32.totalorder %s35, 1
      %p367 = por %p365, %p366
      %p368 = scmp.ne.s32.totalorder %s357, %s358
      %p369 = scmp.eq.s32.totalorder %s35, 0
      %p370 = por %p368, %p369
      %p371 = scmp.ne.s32.totalorder %s357, %s358
      %p372 = scmp.eq.s32.totalorder %s36, 1
      %p373 = por %p371, %p372
      %p375 = scmp.ne.s32.totalorder %s358, %s374
      %p376 = scmp.eq.s32.totalorder %s36, 0
      %p377 = por %p375, %p376
      %s378 = ssub.s32 %s38, %s45
      %p379 = scmp.eq.s32.totalorder %s378, 0
      %s381 = sadd.s32 %s380, 1
      %s382 = scalar_select %p379, %s380, %s381
      %p385 = pneg %p379
      %p386 = scmp.eq.s32.totalorder %s30, 1
      %p387 = por %p385, %p386
      %p388 = scmp.ne.s32.totalorder %s380, %s383
      %p389 = scmp.eq.s32.totalorder %s30, 0
      %p390 = por %p388, %p389
      %p391 = scmp.ne.s32.totalorder %s380, %s383
      %p392 = scmp.eq.s32.totalorder %s35, 1
      %p393 = por %p391, %p392
      %p394 = scmp.ne.s32.totalorder %s383, %s384
      %p395 = scmp.eq.s32.totalorder %s35, 0
      %p396 = por %p394, %p395
      %p397 = scmp.ne.s32.totalorder %s383, %s384
      %p398 = scmp.eq.s32.totalorder %s36, 1
      %p399 = por %p397, %p398
      %p401 = scmp.ne.s32.totalorder %s384, %s400
      %p402 = scmp.eq.s32.totalorder %s36, 0
      %p403 = por %p401, %p402
      %s404 = ssub.s32 %s38, %s45
      %p405 = scmp.eq.s32.totalorder %s404, 0
      %s407 = sadd.s32 %s406, 1
      %s408 = scalar_select %p405, %s406, %s407
      %p411 = pneg %p405
      %p412 = scmp.eq.s32.totalorder %s30, 1
      %p413 = por %p411, %p412
      %p414 = scmp.ne.s32.totalorder %s406, %s409
      %p415 = scmp.eq.s32.totalorder %s30, 0
      %p416 = por %p414, %p415
      %p417 = scmp.ne.s32.totalorder %s406, %s409
      %p418 = scmp.eq.s32.totalorder %s35, 1
      %p419 = por %p417, %p418
      %p420 = scmp.ne.s32.totalorder %s409, %s410
      %p421 = scmp.eq.s32.totalorder %s35, 0
      %p422 = por %p420, %p421
      %p423 = scmp.ne.s32.totalorder %s409, %s410
      %p424 = scmp.eq.s32.totalorder %s36, 1
      %p425 = por %p423, %p424
      %p427 = scmp.ne.s32.totalorder %s410, %s426
      %p428 = scmp.eq.s32.totalorder %s36, 0
      %p429 = por %p427, %p428
      %s430 = ssub.s32 %s38, %s45
      %p431 = scmp.eq.s32.totalorder %s430, 0
      %s433 = sadd.s32 %s432, 1
      %s434 = scalar_select %p431, %s432, %s433
      %p437 = pneg %p431
      %p438 = scmp.eq.s32.totalorder %s30, 1
      %p439 = por %p437, %p438
      %p440 = scmp.ne.s32.totalorder %s432, %s435
      %p441 = scmp.eq.s32.totalorder %s30, 0
      %p442 = por %p440, %p441
      %p443 = scmp.ne.s32.totalorder %s432, %s435
      %p444 = scmp.eq.s32.totalorder %s35, 1
      %p445 = por %p443, %p444
      %p446 = scmp.ne.s32.totalorder %s435, %s436
      %p447 = scmp.eq.s32.totalorder %s35, 0
      %p448 = por %p446, %p447
      %p449 = scmp.ne.s32.totalorder %s435, %s436
      %p450 = scmp.eq.s32.totalorder %s36, 1
      %p451 = por %p449, %p450
      %p453 = scmp.ne.s32.totalorder %s436, %s452
      %p454 = scmp.eq.s32.totalorder %s36, 0
      %p455 = por %p453, %p454
      %s456 = ssub.s32 %s38, %s45
      %p457 = scmp.eq.s32.totalorder %s456, 0
      %s459 = sadd.s32 %s458, 1
      %s460 = scalar_select %p457, %s458, %s459
      %p463 = pneg %p457
      %p464 = scmp.eq.s32.totalorder %s30, 1
      %p465 = por %p463, %p464
      %p466 = scmp.ne.s32.totalorder %s458, %s461
      %p467 = scmp.eq.s32.totalorder %s30, 0
      %p468 = por %p466, %p467
      %p469 = scmp.ne.s32.totalorder %s458, %s461
      %p470 = scmp.eq.s32.totalorder %s35, 1
      %p471 = por %p469, %p470
      %p472 = scmp.ne.s32.totalorder %s461, %s462
      %p473 = scmp.eq.s32.totalorder %s35, 0
      %p474 = por %p472, %p473
      %p475 = scmp.ne.s32.totalorder %s461, %s462
      %p476 = scmp.eq.s32.totalorder %s36, 1
      %p477 = por %p475, %p476
      %p479 = scmp.ne.s32.totalorder %s462, %s478
      %p480 = scmp.eq.s32.totalorder %s36, 0
      %p481 = por %p479, %p480
      %s482 = ssub.s32 %s38, %s45
      %p483 = scmp.eq.s32.totalorder %s482, 0
      %s485 = sadd.s32 %s484, 1
      %s486 = scalar_select %p483, %s484, %s485
      %p489 = pneg %p483
      %p490 = scmp.eq.s32.totalorder %s30, 1
      %p491 = por %p489, %p490
      %p492 = scmp.ne.s32.totalorder %s484, %s487
      %p493 = scmp.eq.s32.totalorder %s30, 0
      %p494 = por %p492, %p493
      %p495 = scmp.ne.s32.totalorder %s484, %s487
      %p496 = scmp.eq.s32.totalorder %s35, 1
      %p497 = por %p495, %p496
      %p498 = scmp.ne.s32.totalorder %s487, %s488
      %p499 = scmp.eq.s32.totalorder %s35, 0
      %p500 = por %p498, %p499
      %p501 = scmp.ne.s32.totalorder %s487, %s488
      %p502 = scmp.eq.s32.totalorder %s36, 1
      %p503 = por %p501, %p502
      %p505 = scmp.ne.s32.totalorder %s488, %s504
      %p506 = scmp.eq.s32.totalorder %s36, 0
      %p507 = por %p505, %p506
      %s508 = ssub.s32 %s38, %s45
      %p509 = scmp.eq.s32.totalorder %s508, 0
      %s511 = sadd.s32 %s510, 1
      %s512 = scalar_select %p509, %s510, %s511
      %p515 = pneg %p509
      %p516 = scmp.eq.s32.totalorder %s30, 1
      %p517 = por %p515, %p516
      %p518 = scmp.ne.s32.totalorder %s510, %s513
      %p519 = scmp.eq.s32.totalorder %s30, 0
      %p520 = por %p518, %p519
      %p521 = scmp.ne.s32.totalorder %s510, %s513
      %p522 = scmp.eq.s32.totalorder %s35, 1
      %p523 = por %p521, %p522
      %p524 = scmp.ne.s32.totalorder %s513, %s514
      %p525 = scmp.eq.s32.totalorder %s35, 0
      %p526 = por %p524, %p525
      %p527 = scmp.ne.s32.totalorder %s513, %s514
      %p528 = scmp.eq.s32.totalorder %s36, 1
      %p529 = por %p527, %p528
      %p531 = scmp.ne.s32.totalorder %s514, %s530
      %p532 = scmp.eq.s32.totalorder %s36, 0
      %p533 = por %p531, %p532
      %s535 = sadd.s32 %s534, 1
      %p538 = scmp.eq.s32.totalorder %s30, 1
      %p539 = scmp.ne.s32.totalorder %s534, %s536
      %p540 = scmp.eq.s32.totalorder %s30, 0
      %p541 = por %p539, %p540
      %p542 = scmp.ne.s32.totalorder %s534, %s536
      %p543 = scmp.eq.s32.totalorder %s35, 1
      %p544 = por %p542, %p543
      %p545 = scmp.ne.s32.totalorder %s536, %s537
      %p546 = scmp.eq.s32.totalorder %s35, 0
      %p547 = por %p545, %p546
      %p548 = scmp.ne.s32.totalorder %s536, %s537
      %p549 = scmp.eq.s32.totalorder %s36, 1
      %p550 = por %p548, %p549
      %p552 = scmp.ne.s32.totalorder %s537, %s551
      %p553 = scmp.eq.s32.totalorder %s36, 0
      %p554 = por %p552, %p553
      %s556 = sadd.s32 %s555, 1
      %p559 = scmp.eq.s32.totalorder %s30, 1
      %p560 = scmp.ne.s32.totalorder %s555, %s557
      %p561 = scmp.eq.s32.totalorder %s30, 0
      %p562 = por %p560, %p561
      %p563 = scmp.ne.s32.totalorder %s555, %s557
      %p564 = scmp.eq.s32.totalorder %s35, 1
      %p565 = por %p563, %p564
      %p566 = scmp.ne.s32.totalorder %s557, %s558
      %p567 = scmp.eq.s32.totalorder %s35, 0
      %p568 = por %p566, %p567
      %p569 = scmp.ne.s32.totalorder %s557, %s558
      %p570 = scmp.eq.s32.totalorder %s36, 1
      %p571 = por %p569, %p570
      %p573 = scmp.ne.s32.totalorder %s558, %s572
      %p574 = scmp.eq.s32.totalorder %s36, 0
      %p575 = por %p573, %p574
      %s577 = sadd.s32 %s576, 1
      %p580 = scmp.eq.s32.totalorder %s30, 1
      %p581 = scmp.ne.s32.totalorder %s576, %s578
      %p582 = scmp.eq.s32.totalorder %s30, 0
      %p583 = por %p581, %p582
      %p584 = scmp.ne.s32.totalorder %s576, %s578
      %p585 = scmp.eq.s32.totalorder %s35, 1
      %p586 = por %p584, %p585
      %p587 = scmp.ne.s32.totalorder %s578, %s579
      %p588 = scmp.eq.s32.totalorder %s35, 0
      %p589 = por %p587, %p588
      %p590 = scmp.ne.s32.totalorder %s578, %s579
      %p591 = scmp.eq.s32.totalorder %s36, 1
      %p592 = por %p590, %p591
      %p594 = scmp.ne.s32.totalorder %s579, %s593
      %p595 = scmp.eq.s32.totalorder %s36, 0
      %p596 = por %p594, %p595
      %s598 = sadd.s32 %s597, 1
      %p601 = scmp.eq.s32.totalorder %s30, 1
      %p602 = scmp.ne.s32.totalorder %s597, %s599
      %p603 = scmp.eq.s32.totalorder %s30, 0
      %p604 = por %p602, %p603
      %p605 = scmp.ne.s32.totalorder %s597, %s599
      %p606 = scmp.eq.s32.totalorder %s35, 1
      %p607 = por %p605, %p606
      %p608 = scmp.ne.s32.totalorder %s599, %s600
      %p609 = scmp.eq.s32.totalorder %s35, 0
      %p610 = por %p608, %p609
      %p611 = scmp.ne.s32.totalorder %s599, %s600
      %p612 = scmp.eq.s32.totalorder %s36, 1
      %p613 = por %p611, %p612
      %p615 = scmp.ne.s32.totalorder %s600, %s614
      %p616 = scmp.eq.s32.totalorder %s36, 0
      %p617 = por %p615, %p616
      %s618 = ssub.s32 %s37, %s49
      %p619 = scmp.eq.s32.totalorder %s618, 0
      %s621 = sadd.s32 %s620, 1
      %s622 = scalar_select %p619, %s620, %s621
      %p625 = pneg %p619
      %p626 = scmp.eq.s32.totalorder %s30, 1
      %p627 = por %p625, %p626
      %p628 = scmp.ne.s32.totalorder %s620, %s623
      %p629 = scmp.eq.s32.totalorder %s30, 0
      %p630 = por %p628, %p629
      %p631 = scmp.ne.s32.totalorder %s620, %s623
      %p632 = scmp.eq.s32.totalorder %s35, 1
      %p633 = por %p631, %p632
      %p634 = scmp.ne.s32.totalorder %s623, %s624
      %p635 = scmp.eq.s32.totalorder %s35, 0
      %p636 = por %p634, %p635
      %p637 = scmp.ne.s32.totalorder %s623, %s624
      %p638 = scmp.eq.s32.totalorder %s36, 1
      %p639 = por %p637, %p638
      %p641 = scmp.ne.s32.totalorder %s624, %s640
      %p642 = scmp.eq.s32.totalorder %s36, 0
      %p643 = por %p641, %p642
      %p644 = scmp.le.s32.totalorder 1, %s30
      %p645 = scmp.lt.s32.totalorder %s30, 3
      %p646 = pnand %p644, %p645
      %p647 = pneg %p646
      // Predicated region
      $region9: #{vit_forward.1} parent=5 // pred_check
        _
      $region10: #{vit_forward.1} parent=5 // pred_check_branch
        %649 = sbr.rel (%p646) target = $region12
      $region11: #{vit_forward.1} parent=5 // pred_region
        %s650 = ssub.s32 %s30, 1
        // Predicated region
        $region13: #{vit_forward.1} parent=11 // pred_check
          %p651 = pneg %p68
        $region14: #{vit_forward.1} parent=11 // pred_check_branch
          %653 = sbr.rel (%p651) target = $region16
        $region15: #{vit_forward.1} parent=11 // pred_region
          %s654 = smul.u32 2, %s39
          %p655 = scmp.lt.s32.totalorder %s654, 1
          %s656 = scalar_select %p655, %s654, 1
          %s657 = smul.addr %s656, 3
          %s658 = smul.addr %s657, 8
          %s659 = scalar_lea.vmem %s0, %s658
          %s660 = smul.u32 2, %s39
        $region16: #{vit_forward.1} parent=11 // pred_fallthru
          _
        // Predicated region
        $region17: #{vit_forward.1} parent=11 // pred_check
          %p661 = pneg %p89
        $region18: #{vit_forward.1} parent=11 // pred_check_branch
          %663 = sbr.rel (%p661) target = $region20
        $region19: #{vit_forward.1} parent=11 // pred_region
          _
        $region20: #{vit_forward.1} parent=11 // pred_fallthru
          _
        // Predicated region
        $region21: #{vit_forward.1} parent=11 // pred_check
          %p664 = pneg %p110
        $region22: #{vit_forward.1} parent=11 // pred_check_branch
          %666 = sbr.rel (%p664) target = $region24
        $region23: #{vit_forward.1} parent=11 // pred_region
          _
        $region24: #{vit_forward.1} parent=11 // pred_fallthru
          _
        // Predicated region
        $region25: #{vit_forward.1} parent=11 // pred_check
          %p667 = pneg %p547
        $region26: #{vit_forward.1} parent=11 // pred_check_branch
          %669 = sbr.rel (%p667) target = $region28
        $region27: #{vit_forward.1} parent=11 // pred_region
          _
        $region28: #{vit_forward.1} parent=11 // pred_fallthru
          _
        // Predicated region
        $region29: #{vit_forward.1} parent=11 // pred_check
          %p670 = pneg %p568
        $region30: #{vit_forward.1} parent=11 // pred_check_branch
          %672 = sbr.rel (%p670) target = $region32
        $region31: #{vit_forward.1} parent=11 // pred_region
          _
        $region32: #{vit_forward.1} parent=11 // pred_fallthru
          _
        // Predicated region
        $region33: #{vit_forward.1} parent=11 // pred_check
          %p673 = pneg %p589
        $region34: #{vit_forward.1} parent=11 // pred_check_branch
          %675 = sbr.rel (%p673) target = $region36
        $region35: #{vit_forward.1} parent=11 // pred_region
          _
        $region36: #{vit_forward.1} parent=11 // pred_fallthru
          _
        // Predicated region
        $region37: #{vit_forward.1} parent=11 // pred_check
          %p676 = pneg %p610
        $region38: #{vit_forward.1} parent=11 // pred_check_branch
          %678 = sbr.rel (%p676) target = $region40
        $region39: #{vit_forward.1} parent=11 // pred_region
          _
        $region40: #{vit_forward.1} parent=11 // pred_fallthru
          _
      $region12: #{vit_forward.1} parent=5 // pred_fallthru
        _
      %p679 = scmp.lt.s32.totalorder %s30, 2
      // Predicated region
      $region41: #{vit_forward.1} parent=5 // pred_check
        %p680 = pneg %p679
      $region42: #{vit_forward.1} parent=5 // pred_check_branch
        %682 = sbr.rel (%p680) target = $region44
      $region43: #{vit_forward.1} parent=5 // pred_region
        // Predicated region
        $region45: #{vit_forward.1} parent=43 // pred_check
          %p683 = pneg %p130
        $region46: #{vit_forward.1} parent=43 // pred_check_branch
          %685 = sbr.rel (%p683) target = $region48
        $region47: #{vit_forward.1} parent=43 // pred_region
          %p686 = scmp.lt.s32.totalorder %s38, 1
          %s687 = scalar_select %p686, %s38, 1
          %s688 = scalar_lea.vmem %s3, %s687
        $region48: #{vit_forward.1} parent=43 // pred_fallthru
          _
        // Predicated region
        $region49: #{vit_forward.1} parent=43 // pred_check
          %p689 = pneg %p156
        $region50: #{vit_forward.1} parent=43 // pred_check_branch
          %691 = sbr.rel (%p689) target = $region52
        $region51: #{vit_forward.1} parent=43 // pred_region
          %p692 = scmp.lt.s32.totalorder %s38, 1
          %s693 = scalar_select %p692, %s38, 1
          %s694 = scalar_lea.vmem %s4, %s693
        $region52: #{vit_forward.1} parent=43 // pred_fallthru
          _
        // Predicated region
        $region53: #{vit_forward.1} parent=43 // pred_check
          %p695 = pneg %p182
        $region54: #{vit_forward.1} parent=43 // pred_check_branch
          %697 = sbr.rel (%p695) target = $region56
        $region55: #{vit_forward.1} parent=43 // pred_region
          %p698 = scmp.lt.s32.totalorder %s38, 1
          %s699 = scalar_select %p698, %s38, 1
          %s700 = smul.addr %s699, 4
          %s701 = smul.addr %s700, 4
          %s702 = scalar_lea.vmem %s5, %s701
        $region56: #{vit_forward.1} parent=43 // pred_fallthru
          _
        // Predicated region
        $region57: #{vit_forward.1} parent=43 // pred_check
          %p703 = pneg %p208
        $region58: #{vit_forward.1} parent=43 // pred_check_branch
          %705 = sbr.rel (%p703) target = $region60
        $region59: #{vit_forward.1} parent=43 // pred_region
          %p706 = scmp.lt.s32.totalorder %s38, 1
          %s707 = scalar_select %p706, %s38, 1
          %s708 = scalar_lea.vmem %s6, %s707
        $region60: #{vit_forward.1} parent=43 // pred_fallthru
          _
        // Predicated region
        $region61: #{vit_forward.1} parent=43 // pred_check
          %p709 = pneg %p234
        $region62: #{vit_forward.1} parent=43 // pred_check_branch
          %711 = sbr.rel (%p709) target = $region64
        $region63: #{vit_forward.1} parent=43 // pred_region
          %p712 = scmp.lt.s32.totalorder %s38, 1
          %s713 = scalar_select %p712, %s38, 1
          %s714 = smul.addr %s713, 4
          %s715 = smul.addr %s714, 4
          %s716 = scalar_lea.vmem %s7, %s715
        $region64: #{vit_forward.1} parent=43 // pred_fallthru
          _
        // Predicated region
        $region65: #{vit_forward.1} parent=43 // pred_check
          %p717 = pneg %p260
        $region66: #{vit_forward.1} parent=43 // pred_check_branch
          %719 = sbr.rel (%p717) target = $region68
        $region67: #{vit_forward.1} parent=43 // pred_region
          %p720 = scmp.lt.s32.totalorder %s38, 1
          %s721 = scalar_select %p720, %s38, 1
          %s722 = scalar_lea.vmem %s8, %s721
        $region68: #{vit_forward.1} parent=43 // pred_fallthru
          _
        // Predicated region
        $region69: #{vit_forward.1} parent=43 // pred_check
          %p723 = pneg %p286
        $region70: #{vit_forward.1} parent=43 // pred_check_branch
          %725 = sbr.rel (%p723) target = $region72
        $region71: #{vit_forward.1} parent=43 // pred_region
          %p726 = scmp.lt.s32.totalorder %s38, 1
          %s727 = scalar_select %p726, %s38, 1
          %s728 = smul.addr %s727, 4
          %s729 = smul.addr %s728, 4
          %s730 = scalar_lea.vmem %s9, %s729
        $region72: #{vit_forward.1} parent=43 // pred_fallthru
          _
        // Predicated region
        $region73: #{vit_forward.1} parent=43 // pred_check
          %p731 = pneg %p312
        $region74: #{vit_forward.1} parent=43 // pred_check_branch
          %733 = sbr.rel (%p731) target = $region76
        $region75: #{vit_forward.1} parent=43 // pred_region
          %p734 = scmp.lt.s32.totalorder %s38, 1
          %s735 = scalar_select %p734, %s38, 1
          %s736 = scalar_lea.vmem %s10, %s735
        $region76: #{vit_forward.1} parent=43 // pred_fallthru
          _
        // Predicated region
        $region77: #{vit_forward.1} parent=43 // pred_check
          %p737 = pneg %p338
        $region78: #{vit_forward.1} parent=43 // pred_check_branch
          %739 = sbr.rel (%p737) target = $region80
        $region79: #{vit_forward.1} parent=43 // pred_region
          %p740 = scmp.lt.s32.totalorder %s38, 1
          %s741 = scalar_select %p740, %s38, 1
          %s742 = smul.addr %s741, 4
          %s743 = smul.addr %s742, 4
          %s744 = scalar_lea.vmem %s11, %s743
        $region80: #{vit_forward.1} parent=43 // pred_fallthru
          _
        // Predicated region
        $region81: #{vit_forward.1} parent=43 // pred_check
          %p745 = pneg %p364
        $region82: #{vit_forward.1} parent=43 // pred_check_branch
          %747 = sbr.rel (%p745) target = $region84
        $region83: #{vit_forward.1} parent=43 // pred_region
          %p748 = scmp.lt.s32.totalorder %s38, 1
          %s749 = scalar_select %p748, %s38, 1
          %s750 = scalar_lea.vmem %s12, %s749
        $region84: #{vit_forward.1} parent=43 // pred_fallthru
          _
        // Predicated region
        $region85: #{vit_forward.1} parent=43 // pred_check
          %p751 = pneg %p390
        $region86: #{vit_forward.1} parent=43 // pred_check_branch
          %753 = sbr.rel (%p751) target = $region88
        $region87: #{vit_forward.1} parent=43 // pred_region
          %p754 = scmp.lt.s32.totalorder %s38, 1
          %s755 = scalar_select %p754, %s38, 1
          %s756 = scalar_lea.vmem %s13, %s755
        $region88: #{vit_forward.1} parent=43 // pred_fallthru
          _
        // Predicated region
        $region89: #{vit_forward.1} parent=43 // pred_check
          %p757 = pneg %p416
        $region90: #{vit_forward.1} parent=43 // pred_check_branch
          %759 = sbr.rel (%p757) target = $region92
        $region91: #{vit_forward.1} parent=43 // pred_region
          %p760 = scmp.lt.s32.totalorder %s38, 1
          %s761 = scalar_select %p760, %s38, 1
          %s762 = scalar_lea.vmem %s14, %s761
        $region92: #{vit_forward.1} parent=43 // pred_fallthru
          _
        // Predicated region
        $region93: #{vit_forward.1} parent=43 // pred_check
          %p763 = pneg %p442
        $region94: #{vit_forward.1} parent=43 // pred_check_branch
          %765 = sbr.rel (%p763) target = $region96
        $region95: #{vit_forward.1} parent=43 // pred_region
          %p766 = scmp.lt.s32.totalorder %s38, 1
          %s767 = scalar_select %p766, %s38, 1
          %s768 = smul.addr %s767, 4
          %s769 = smul.addr %s768, 4
          %s770 = scalar_lea.vmem %s15, %s769
        $region96: #{vit_forward.1} parent=43 // pred_fallthru
          _
        // Predicated region
        $region97: #{vit_forward.1} parent=43 // pred_check
          %p771 = pneg %p468
        $region98: #{vit_forward.1} parent=43 // pred_check_branch
          %773 = sbr.rel (%p771) target = $region100
        $region99: #{vit_forward.1} parent=43 // pred_region
          %p774 = scmp.lt.s32.totalorder %s38, 1
          %s775 = scalar_select %p774, %s38, 1
          %s776 = scalar_lea.vmem %s16, %s775
        $region100: #{vit_forward.1} parent=43 // pred_fallthru
          _
        // Predicated region
        $region101: #{vit_forward.1} parent=43 // pred_check
          %p777 = pneg %p494
        $region102: #{vit_forward.1} parent=43 // pred_check_branch
          %779 = sbr.rel (%p777) target = $region104
        $region103: #{vit_forward.1} parent=43 // pred_region
          %p780 = scmp.lt.s32.totalorder %s38, 1
          %s781 = scalar_select %p780, %s38, 1
          %s782 = smul.addr %s781, 8
          %s783 = smul.addr %s782, 4
          %s784 = scalar_lea.vmem %s17, %s783
        $region104: #{vit_forward.1} parent=43 // pred_fallthru
          _
        // Predicated region
        $region105: #{vit_forward.1} parent=43 // pred_check
          %p785 = pneg %p520
        $region106: #{vit_forward.1} parent=43 // pred_check_branch
          %787 = sbr.rel (%p785) target = $region108
        $region107: #{vit_forward.1} parent=43 // pred_region
          %p788 = scmp.lt.s32.totalorder %s38, 1
          %s789 = scalar_select %p788, %s38, 1
          %s790 = scalar_lea.vmem %s18, %s789
        $region108: #{vit_forward.1} parent=43 // pred_fallthru
          _
      $region44: #{vit_forward.1} parent=5 // pred_fallthru
        _
      %p791 = scmp.le.s32.totalorder 1, %s30
      %p792 = scmp.lt.s32.totalorder %s30, 3
      %p793 = pnand %p791, %p792
      %p794 = pneg %p793
      // Predicated region
      $region109: #{vit_forward.1} parent=5 // pred_check
        _
      $region110: #{vit_forward.1} parent=5 // pred_check_branch
        %796 = sbr.rel (%p793) target = $region112
      $region111: #{vit_forward.1} parent=5 // pred_region
        %s797 = ssub.s32 %s30, 1
        %s798 = smul.u32 2, %s39
        %p799 = scmp.lt.s32.totalorder %s798, 1
        %s800 = scalar_select %p799, %s798, 1
        %s801 = smul.addr %s800, 3
        %s802 = smul.addr %s801, 8
        %s803 = scalar_lea.vmem %s0, %s802
        %p804 = pneg %p68
        %p805 = pneg %p65
        %p806 = pneg %p89
        %p807 = pneg %p86
        %p808 = pneg %p110
        %p809 = pneg %p107
        %p810 = scmp.lt.s32.totalorder %s40, 1
        %s811 = scalar_select %p810, %s40, 1
        %s812 = scalar_lea.vmem %s3, %s811
        %p813 = pneg %p136
        %p814 = pneg %p133
        %p815 = scmp.lt.s32.totalorder %s40, 1
        %s816 = scalar_select %p815, %s40, 1
        %s817 = scalar_lea.vmem %s4, %s816
        %p818 = pneg %p162
        %p819 = pneg %p159
        %p820 = scmp.lt.s32.totalorder %s40, 1
        %s821 = scalar_select %p820, %s40, 1
        %s822 = smul.addr %s821, 4
        %s823 = smul.addr %s822, 4
        %s824 = scalar_lea.vmem %s5, %s823
        %p825 = pneg %p188
        %p826 = pneg %p185
        %p827 = scmp.lt.s32.totalorder %s40, 1
        %s828 = scalar_select %p827, %s40, 1
        %s829 = scalar_lea.vmem %s6, %s828
        %p830 = pneg %p214
        %p831 = pneg %p211
        %p832 = scmp.lt.s32.totalorder %s40, 1
        %s833 = scalar_select %p832, %s40, 1
        %s834 = smul.addr %s833, 4
        %s835 = smul.addr %s834, 4
        %s836 = scalar_lea.vmem %s7, %s835
        %p837 = pneg %p240
        %p838 = pneg %p237
        %p839 = scmp.lt.s32.totalorder %s40, 1
        %s840 = scalar_select %p839, %s40, 1
        %s841 = scalar_lea.vmem %s8, %s840
        %p842 = pneg %p266
        %p843 = pneg %p263
        %p844 = scmp.lt.s32.totalorder %s40, 1
        %s845 = scalar_select %p844, %s40, 1
        %s846 = smul.addr %s845, 4
        %s847 = smul.addr %s846, 4
        %s848 = scalar_lea.vmem %s9, %s847
        %p849 = pneg %p292
        %p850 = pneg %p289
        %p851 = scmp.lt.s32.totalorder %s40, 1
        %s852 = scalar_select %p851, %s40, 1
        %s853 = scalar_lea.vmem %s10, %s852
        %p854 = pneg %p318
        %p855 = pneg %p315
        %p856 = scmp.lt.s32.totalorder %s40, 1
        %s857 = scalar_select %p856, %s40, 1
        %s858 = smul.addr %s857, 4
        %s859 = smul.addr %s858, 4
        %s860 = scalar_lea.vmem %s11, %s859
        %p861 = pneg %p344
        %p862 = pneg %p341
        %p863 = scmp.lt.s32.totalorder %s40, 1
        %s864 = scalar_select %p863, %s40, 1
        %s865 = scalar_lea.vmem %s12, %s864
        %p866 = pneg %p370
        %p867 = pneg %p367
        %p868 = scmp.lt.s32.totalorder %s40, 1
        %s869 = scalar_select %p868, %s40, 1
        %s870 = scalar_lea.vmem %s13, %s869
        %p871 = pneg %p396
        %p872 = pneg %p393
        %p873 = scmp.lt.s32.totalorder %s40, 1
        %s874 = scalar_select %p873, %s40, 1
        %s875 = scalar_lea.vmem %s14, %s874
        %p876 = pneg %p422
        %p877 = pneg %p419
        %p878 = scmp.lt.s32.totalorder %s40, 1
        %s879 = scalar_select %p878, %s40, 1
        %s880 = smul.addr %s879, 4
        %s881 = smul.addr %s880, 4
        %s882 = scalar_lea.vmem %s15, %s881
        %p883 = pneg %p448
        %p884 = pneg %p445
        %p885 = scmp.lt.s32.totalorder %s40, 1
        %s886 = scalar_select %p885, %s40, 1
        %s887 = scalar_lea.vmem %s16, %s886
        %p888 = pneg %p474
        %p889 = pneg %p471
        %p890 = scmp.lt.s32.totalorder %s40, 1
        %s891 = scalar_select %p890, %s40, 1
        %s892 = smul.addr %s891, 8
        %s893 = smul.addr %s892, 4
        %s894 = scalar_lea.vmem %s17, %s893
        %p895 = pneg %p500
        %p896 = pneg %p497
        %p897 = scmp.lt.s32.totalorder %s40, 1
        %s898 = scalar_select %p897, %s40, 1
        %s899 = scalar_lea.vmem %s18, %s898
        %p900 = pneg %p526
        %p901 = pneg %p523
        %p902 = pneg %p547
        %p903 = pneg %p544
        %p904 = pneg %p568
        %p905 = pneg %p565
        %p906 = pneg %p589
        %p907 = pneg %p586
        %p908 = pneg %p610
        %p909 = pneg %p607
        %p910 = pneg %p636
        %p911 = pneg %p633
        %s912 = smul.u32 2, %s39
        %p913 = scmp.lt.s32.totalorder %s912, 1
        %s914 = scalar_select %p913, %s912, 1
        %s915 = smul.addr %s914, 3
        %s916 = smul.addr %s915, 8
        %s917 = scalar_lea.vmem %s0, %s916
        %s918 = smul.u32 2, %s39
        %p919 = scmp.lt.s32.totalorder %s40, 1
        %s920 = scalar_select %p919, %s40, 1
        %s921 = scalar_lea.vmem %s3, %s920
        %p922 = scmp.lt.s32.totalorder %s40, 1
        %s923 = scalar_select %p922, %s40, 1
        %s924 = scalar_lea.vmem %s4, %s923
        %p925 = scmp.lt.s32.totalorder %s40, 1
        %s926 = scalar_select %p925, %s40, 1
        %s927 = smul.addr %s926, 4
        %s928 = smul.addr %s927, 4
        %s929 = scalar_lea.vmem %s5, %s928
        %p930 = scmp.lt.s32.totalorder %s40, 1
        %s931 = scalar_select %p930, %s40, 1
        %s932 = scalar_lea.vmem %s6, %s931
        %p933 = scmp.lt.s32.totalorder %s40, 1
        %s934 = scalar_select %p933, %s40, 1
        %s935 = smul.addr %s934, 4
        %s936 = smul.addr %s935, 4
        %s937 = scalar_lea.vmem %s7, %s936
        %p938 = scmp.lt.s32.totalorder %s40, 1
        %s939 = scalar_select %p938, %s40, 1
        %s940 = scalar_lea.vmem %s8, %s939
        %p941 = scmp.lt.s32.totalorder %s40, 1
        %s942 = scalar_select %p941, %s40, 1
        %s943 = smul.addr %s942, 4
        %s944 = smul.addr %s943, 4
        %s945 = scalar_lea.vmem %s9, %s944
        %p946 = scmp.lt.s32.totalorder %s40, 1
        %s947 = scalar_select %p946, %s40, 1
        %s948 = scalar_lea.vmem %s10, %s947
        %p949 = scmp.lt.s32.totalorder %s40, 1
        %s950 = scalar_select %p949, %s40, 1
        %s951 = smul.addr %s950, 4
        %s952 = smul.addr %s951, 4
        %s953 = scalar_lea.vmem %s11, %s952
        %p954 = scmp.lt.s32.totalorder %s40, 1
        %s955 = scalar_select %p954, %s40, 1
        %s956 = scalar_lea.vmem %s12, %s955
        %p957 = scmp.lt.s32.totalorder %s40, 1
        %s958 = scalar_select %p957, %s40, 1
        %s959 = scalar_lea.vmem %s13, %s958
        %p960 = scmp.lt.s32.totalorder %s40, 1
        %s961 = scalar_select %p960, %s40, 1
        %s962 = scalar_lea.vmem %s14, %s961
        %p963 = scmp.lt.s32.totalorder %s40, 1
        %s964 = scalar_select %p963, %s40, 1
        %s965 = smul.addr %s964, 4
        %s966 = smul.addr %s965, 4
        %s967 = scalar_lea.vmem %s15, %s966
        %p968 = scmp.lt.s32.totalorder %s40, 1
        %s969 = scalar_select %p968, %s40, 1
        %s970 = scalar_lea.vmem %s16, %s969
        %p971 = scmp.lt.s32.totalorder %s40, 1
        %s972 = scalar_select %p971, %s40, 1
        %s973 = smul.addr %s972, 8
        %s974 = smul.addr %s973, 4
        %s975 = scalar_lea.vmem %s17, %s974
        %p976 = scmp.lt.s32.totalorder %s40, 1
        %s977 = scalar_select %p976, %s40, 1
        %s978 = scalar_lea.vmem %s18, %s977
        %p980 = scmp.eq.s32.totalorder %s40, 0
        // Predicated region
        $region113: #{vit_forward.1} parent=111 // pred_check
          %p981 = pneg %p980
        $region114: #{vit_forward.1} parent=111 // pred_check_branch
          %983 = sbr.rel (%p981) target = $region116
        $region115: #{vit_forward.1} parent=111 // pred_region
          %v984 = vld [vmem:[%s917] sm:$0xff]
          %v985 = vld [vmem:[%s917 + $0x8] sm:$0xff]
          %v986 = vld [vmem:[%s917 + $0x10] sm:$0xff]
          %v987 = vld [vmem:[%s917 + $0x18] sm:$0xff]
          %v988 = vld [vmem:[%s917 + $0x20] sm:$0xff]
          %v989 = vld [vmem:[%s917 + $0x28] sm:$0xff]
          %v990 = vld [vmem:[%s1] sm:$0xff]
          %v991 = vld [vmem:[%s1 + $0x8] sm:$0xff]
          %v992 = vld [vmem:[%s1 + $0x10] sm:$0xff]
          %v993 = vld [vmem:[%s1 + $0x18] sm:$0xff]
          %v994 = vld [vmem:[%s1 + $0x20] sm:$0xff]
          %v995 = vld [vmem:[%s1 + $0x28] sm:$0xff]
          %v996 = vld [vmem:[%s1 + $0x30] sm:$0xff]
          %v997 = vld [vmem:[%s1 + $0x38] sm:$0xff]
          %vm998 = vcmask 523264
          %v1000 = vsel %vm998, %v984, 0
          %v1003 = vsel %vm998, %v985, 0
          %v1006 = vsel %vm998, %v986, 0
          %v1009 = vsel %vm998, %v987, 0
          %v1012 = vsel %vm998, %v988, 0
          %v1015 = vsel %vm998, %v989, 0
          %1017 = vmatpush.msra.mxu0 0.0
          %1018 = vmatpush.msra.mxu0 0.0
          %1019 = vmatpush.msra.mxu0 0.0
          %1020 = vmatpush.msra.mxu0 0.0
          %1021 = vmatpush.msra.mxu0 0.0
          %1022 = vmatpush.msra.mxu0 0.0
          %1023 = vmatpush.msra.mxu0 0.0
          %1024 = vmatpush.msra.mxu0 0.0
          %1025 = vmatpush.msra.mxu0 %v997
          %1026 = vmatpush.msra.mxu0 %v996
          %1027 = vmatpush.msra.mxu0 %v995
          %1028 = vmatpush.msra.mxu0 %v994
          %1029 = vmatpush.msra.mxu0 %v993
          %1030 = vmatpush.msra.mxu0 %v992
          %1031 = vmatpush.msra.mxu0 %v991
          %1032 = vmatpush.msra.mxu0 %v990
          %1033 = vmatmul.f32.gmra.mxu0 %v1000
          %v1034 = vpop.f32.mrf.mxu0
          %v1035 = vadd.f32 0.0, %v1034
          %1036 = vmatmul.f32.gmra.mxu0 %v1003
          %v1037 = vpop.f32.mrf.mxu0
          %v1038 = vadd.f32 0.0, %v1037
          %1039 = vmatmul.f32.gmra.mxu0 %v1006
          %v1040 = vpop.f32.mrf.mxu0
          %v1041 = vadd.f32 0.0, %v1040
          %1042 = vmatmul.f32.gmra.mxu0 %v1009
          %v1043 = vpop.f32.mrf.mxu0
          %v1044 = vadd.f32 0.0, %v1043
          %1045 = vmatmul.f32.gmra.mxu0 %v1012
          %v1046 = vpop.f32.mrf.mxu0
          %v1047 = vadd.f32 0.0, %v1046
          %1048 = vmatmul.f32.gmra.mxu0 %v1015
          %v1049 = vpop.f32.mrf.mxu0
          %v1050 = vadd.f32 0.0, %v1049
          %1051 = vdwg.mxu0
          %v1052 = vld [vmem:[%s2] sm:$0xff]
          %v1053 = vld [vmem:[%s2 + $0x8] sm:$0xff]
          %v1054 = vld [vmem:[%s2 + $0x10] sm:$0xff]
          %v1055 = vadd.f32 %v1035, %v1052
          %v1056 = vadd.f32 %v1038, %v1053
          %v1057 = vadd.f32 %v1041, %v1054
          %v1058 = vadd.f32 %v1044, %v1052
          %v1059 = vadd.f32 %v1047, %v1053
          %v1060 = vadd.f32 %v1050, %v1054
          %vm1061 = vcmask 261120
          %1062 = vst.msk [vmem:[#allocation2] sm:$0xff] %vm1061, %v1055
          %1063 = vst.msk [vmem:[#allocation2 + $0x8] sm:$0xff] %vm1061, %v1056
          %1064 = vst.msk [vmem:[#allocation2 + $0x10] sm:$0xff] %vm1061, %v1057
          %1065 = vst.msk [vmem:[#allocation2 + $0x18] sm:$0xff] %vm1061, %v1058
          %1066 = vst.msk [vmem:[#allocation2 + $0x20] sm:$0xff] %vm1061, %v1059
          %1067 = vst.msk [vmem:[#allocation2 + $0x28] sm:$0xff] %vm1061, %v1060
        $region116: #{vit_forward.1} parent=111 // pred_fallthru
          _
        %v1068 = vld [vmem:[#allocation2] sm:$0xff]
        %v1069 = vld [vmem:[#allocation2 + $0x8] sm:$0xff]
        %v1070 = vld [vmem:[#allocation2 + $0x10] sm:$0xff]
        %v1071 = vld [vmem:[#allocation2 + $0x18] sm:$0xff]
        %v1072 = vld [vmem:[#allocation2 + $0x20] sm:$0xff]
        %v1073 = vld [vmem:[#allocation2 + $0x28] sm:$0xff]
        %v1074 = vld [vmem:[%s921] sm:$0x1]
        %v1075 = vld [vmem:[%s924] sm:$0x1]
        %vm1076 = vcmask 261120
        %v1077 = vsel %vm1076, %v1068, 0.0
        %1078 = vadd.xlane.f32.xlu0 %v1077
        %v1079 = vpop.xlane.xlu0 %1078
        %v1080 = vsel %vm1076, %v1069, 0.0
        %1081 = vadd.xlane.f32.xlu0 %v1080
        %v1082 = vpop.xlane.xlu0 %1081
        %v1083 = vsel %vm1076, %v1070, 0.0
        %1084 = vadd.xlane.f32.xlu0 %v1083
        %v1085 = vpop.xlane.xlu0 %1084
        %v1086 = vsel %vm1076, %v1071, 0.0
        %1087 = vadd.xlane.f32.xlu0 %v1086
        %v1088 = vpop.xlane.xlu0 %1087
        %v1089 = vsel %vm1076, %v1072, 0.0
        %1090 = vadd.xlane.f32.xlu0 %v1089
        %v1091 = vpop.xlane.xlu0 %1090
        %v1092 = vsel %vm1076, %v1073, 0.0
        %1093 = vadd.xlane.f32.xlu0 %v1092
        %v1094 = vpop.xlane.xlu0 %1093
        %v1095 = vrcp.pop 32.0
        %v1096 = vmul.f32 32.0, %v1095
        %v1097 = vsub.f32 1.0, %v1096
        %v1098 = vmul.f32 %v1095, %v1097
        %v1099 = vadd.f32 %v1095, %v1098
        %vm1100 = vweird.f32 %v1095
        %v1101 = vsel %vm1100, %v1095, %v1099
        %v1102 = vmul.f32 %v1079, %v1101
        %v1103 = vmul.f32 %v1082, %v1101
        %v1104 = vmul.f32 %v1085, %v1101
        %v1105 = vmul.f32 %v1088, %v1101
        %v1106 = vmul.f32 %v1091, %v1101
        %v1107 = vmul.f32 %v1094, %v1101
        %v1108 = vsub.f32 %v1068, %v1102
        %v1109 = vsub.f32 %v1069, %v1103
        %v1110 = vsub.f32 %v1070, %v1104
        %v1111 = vsub.f32 %v1071, %v1105
        %v1112 = vsub.f32 %v1072, %v1106
        %v1113 = vsub.f32 %v1073, %v1107
        %v1114 = vmul.f32 %v1108, %v1108
        %v1115 = vmul.f32 %v1109, %v1109
        %v1116 = vmul.f32 %v1110, %v1110
        %v1117 = vmul.f32 %v1111, %v1111
        %v1118 = vmul.f32 %v1112, %v1112
        %v1119 = vmul.f32 %v1113, %v1113
        %v1120 = vsel %vm1076, %v1114, 0.0
        %1121 = vadd.xlane.f32.xlu0 %v1120
        %v1122 = vpop.xlane.xlu0 %1121
        %v1123 = vsel %vm1076, %v1115, 0.0
        %1124 = vadd.xlane.f32.xlu0 %v1123
        %v1125 = vpop.xlane.xlu0 %1124
        %v1126 = vsel %vm1076, %v1116, 0.0
        %1127 = vadd.xlane.f32.xlu0 %v1126
        %v1128 = vpop.xlane.xlu0 %1127
        %v1129 = vsel %vm1076, %v1117, 0.0
        %1130 = vadd.xlane.f32.xlu0 %v1129
        %v1131 = vpop.xlane.xlu0 %1130
        %v1132 = vsel %vm1076, %v1118, 0.0
        %1133 = vadd.xlane.f32.xlu0 %v1132
        %v1134 = vpop.xlane.xlu0 %1133
        %v1135 = vsel %vm1076, %v1119, 0.0
        %1136 = vadd.xlane.f32.xlu0 %v1135
        %v1137 = vpop.xlane.xlu0 %1136
        %v1138 = vmul.f32 %v1122, %v1101
        %v1139 = vmul.f32 %v1125, %v1101
        %v1140 = vmul.f32 %v1128, %v1101
        %v1141 = vmul.f32 %v1131, %v1101
        %v1142 = vmul.f32 %v1134, %v1101
        %v1143 = vmul.f32 %v1137, %v1101
        %v1144 = vadd.f32 %v1138, 1e-05
        %v1145 = vadd.f32 %v1139, 1e-05
        %v1146 = vadd.f32 %v1140, 1e-05
        %v1147 = vadd.f32 %v1141, 1e-05
        %v1148 = vadd.f32 %v1142, 1e-05
        %v1149 = vadd.f32 %v1143, 1e-05
        %v1150 = vrsqrt.pop %v1144
        %v1151 = vmul.f32 %v1150, %v1144
        %v1152 = vmul.f32 %v1151, %v1150
        %v1153 = vmul.f32 0.5, %v1152
        %v1154 = vsub.f32 1.5, %v1153
        %v1155 = vmul.f32 %v1150, %v1154
        %vm1156 = vweird.f32 %v1144
        %vm1157 = vweird.f32 %v1150
        %vm1158 = vmor %vm1156, %vm1157
        %v1159 = vsel %vm1158, %v1150, %v1155
        %v1160 = vrsqrt.pop %v1145
        %v1161 = vmul.f32 %v1160, %v1145
        %v1162 = vmul.f32 %v1161, %v1160
        %v1163 = vmul.f32 0.5, %v1162
        %v1164 = vsub.f32 1.5, %v1163
        %v1165 = vmul.f32 %v1160, %v1164
        %vm1166 = vweird.f32 %v1145
        %vm1167 = vweird.f32 %v1160
        %vm1168 = vmor %vm1166, %vm1167
        %v1169 = vsel %vm1168, %v1160, %v1165
        %v1170 = vrsqrt.pop %v1146
        %v1171 = vmul.f32 %v1170, %v1146
        %v1172 = vmul.f32 %v1171, %v1170
        %v1173 = vmul.f32 0.5, %v1172
        %v1174 = vsub.f32 1.5, %v1173
        %v1175 = vmul.f32 %v1170, %v1174
        %vm1176 = vweird.f32 %v1146
        %vm1177 = vweird.f32 %v1170
        %vm1178 = vmor %vm1176, %vm1177
        %v1179 = vsel %vm1178, %v1170, %v1175
        %v1180 = vrsqrt.pop %v1147
        %v1181 = vmul.f32 %v1180, %v1147
        %v1182 = vmul.f32 %v1181, %v1180
        %v1183 = vmul.f32 0.5, %v1182
        %v1184 = vsub.f32 1.5, %v1183
        %v1185 = vmul.f32 %v1180, %v1184
        %vm1186 = vweird.f32 %v1147
        %vm1187 = vweird.f32 %v1180
        %vm1188 = vmor %vm1186, %vm1187
        %v1189 = vsel %vm1188, %v1180, %v1185
        %v1190 = vrsqrt.pop %v1148
        %v1191 = vmul.f32 %v1190, %v1148
        %v1192 = vmul.f32 %v1191, %v1190
        %v1193 = vmul.f32 0.5, %v1192
        %v1194 = vsub.f32 1.5, %v1193
        %v1195 = vmul.f32 %v1190, %v1194
        %vm1196 = vweird.f32 %v1148
        %vm1197 = vweird.f32 %v1190
        %vm1198 = vmor %vm1196, %vm1197
        %v1199 = vsel %vm1198, %v1190, %v1195
        %v1200 = vrsqrt.pop %v1149
        %v1201 = vmul.f32 %v1200, %v1149
        %v1202 = vmul.f32 %v1201, %v1200
        %v1203 = vmul.f32 0.5, %v1202
        %v1204 = vsub.f32 1.5, %v1203
        %v1205 = vmul.f32 %v1200, %v1204
        %vm1206 = vweird.f32 %v1149
        %vm1207 = vweird.f32 %v1200
        %vm1208 = vmor %vm1206, %vm1207
        %v1209 = vsel %vm1208, %v1200, %v1205
        %v1210 = vmul.f32 %v1108, %v1159
        %v1211 = vmul.f32 %v1109, %v1169
        %v1212 = vmul.f32 %v1110, %v1179
        %v1213 = vmul.f32 %v1111, %v1189
        %v1214 = vmul.f32 %v1112, %v1199
        %v1215 = vmul.f32 %v1113, %v1209
        %v1217 = vperm.slane %v1074, 0
        %v1219 = vmul.f32 %v1210, %v1217
        %v1220 = vmul.f32 %v1211, %v1217
        %v1221 = vmul.f32 %v1212, %v1217
        %v1222 = vmul.f32 %v1213, %v1217
        %v1223 = vmul.f32 %v1214, %v1217
        %v1224 = vmul.f32 %v1215, %v1217
        %v1226 = vperm.slane %v1075, 0
        %v1228 = vadd.f32 %v1219, %v1226
        %v1229 = vadd.f32 %v1220, %v1226
        %v1230 = vadd.f32 %v1221, %v1226
        %v1231 = vadd.f32 %v1222, %v1226
        %v1232 = vadd.f32 %v1223, %v1226
        %v1233 = vadd.f32 %v1224, %v1226
        %v1234 = vld [vmem:[%s929] sm:$0xf]
        %v1235 = vld [vmem:[%s929 + $0x4] sm:$0xf]
        %v1236 = vld [vmem:[%s929 + $0x8] sm:$0xf]
        %v1237 = vld [vmem:[%s929 + $0xc] sm:$0xf]
        %v1238 = vpack.c.bf16 %v1229, %v1228
        %v1239 = vpack.c.bf16 %v1231, %v1230
        %v1240 = vpack.c.bf16 %v1233, %v1232
        %v1241 = vld [vmem:[%s932] sm:$0x1]
        %v1243 = vperm.slane %v1241, 0
        %v1249 = vunpack.c.l.b16 %v1234
        %v1250 = vunpack.c.l.b16 %v1235
        %v1251 = vunpack.c.l.b16 %v1236
        %v1252 = vunpack.c.l.b16 %v1237
        %v1253 = vpack.c.b16 %v1250, %v1249
        %v1254 = vpack.c.b16 %v1252, %v1251
        %v1258 = vsel %vm1076, %v1238, 0
        %v1261 = vsel %vm1076, %v1239, 0
        %v1264 = vsel %vm1076, %v1240, 0
        %1266 = vmatpush.bf16.msra.mxu0 0
        %1267 = vmatpush.bf16.msra.mxu0 0
        %1268 = vmatpush.bf16.msra.mxu0 0
        %1269 = vmatpush.bf16.msra.mxu0 0
        %1270 = vmatpush.bf16.msra.mxu0 0
        %1271 = vmatpush.bf16.msra.mxu0 0
        %1272 = vmatpush.bf16.msra.mxu0 %v1254
        %1273 = vmatpush.bf16.msra.mxu0 %v1253
        %1274 = vmatmul.bf16.gmra.mxu0 %v1258
        %v1275 = vpop.f32.mrf.mxu0
        %v1276 = vadd.f32 %v1243, %v1275
        %v1277 = vpop.f32.mrf.mxu0
        %v1278 = vadd.f32 %v1243, %v1277
        %1279 = vmatmul.bf16.gmra.mxu0 %v1261
        %v1280 = vpop.f32.mrf.mxu0
        %v1281 = vadd.f32 %v1243, %v1280
        %v1282 = vpop.f32.mrf.mxu0
        %v1283 = vadd.f32 %v1243, %v1282
        %1284 = vmatmul.bf16.gmra.mxu0 %v1264
        %v1285 = vpop.f32.mrf.mxu0
        %v1286 = vadd.f32 %v1243, %v1285
        %v1287 = vpop.f32.mrf.mxu0
        %v1288 = vadd.f32 %v1243, %v1287
        %1289 = vdwg.mxu0
        %v1290 = vld [vmem:[%s937] sm:$0xf]
        %v1291 = vld [vmem:[%s937 + $0x4] sm:$0xf]
        %v1292 = vld [vmem:[%s937 + $0x8] sm:$0xf]
        %v1293 = vld [vmem:[%s937 + $0xc] sm:$0xf]
        %v1294 = vld [vmem:[%s940] sm:$0x1]
        %v1296 = vperm.slane %v1294, 0
        %v1302 = vunpack.c.l.b16 %v1290
        %v1303 = vunpack.c.l.b16 %v1291
        %v1304 = vunpack.c.l.b16 %v1292
        %v1305 = vunpack.c.l.b16 %v1293
        %v1306 = vpack.c.b16 %v1303, %v1302
        %v1307 = vpack.c.b16 %v1305, %v1304
        %1310 = vmatpush.bf16.msra.mxu0 0
        %1311 = vmatpush.bf16.msra.mxu0 0
        %1312 = vmatpush.bf16.msra.mxu0 0
        %1313 = vmatpush.bf16.msra.mxu0 0
        %1314 = vmatpush.bf16.msra.mxu0 0
        %1315 = vmatpush.bf16.msra.mxu0 0
        %1316 = vmatpush.bf16.msra.mxu0 %v1307
        %1317 = vmatpush.bf16.msra.mxu0 %v1306
        %1318 = vmatmul.bf16.gmra.mxu0 %v1258
        %v1319 = vpop.f32.mrf.mxu0
        %v1320 = vadd.f32 %v1296, %v1319
        %v1321 = vpop.f32.mrf.mxu0
        %v1322 = vadd.f32 %v1296, %v1321
        %1323 = vmatmul.bf16.gmra.mxu0 %v1261
        %v1324 = vpop.f32.mrf.mxu0
        %v1325 = vadd.f32 %v1296, %v1324
        %v1326 = vpop.f32.mrf.mxu0
        %v1327 = vadd.f32 %v1296, %v1326
        %1328 = vmatmul.bf16.gmra.mxu0 %v1264
        %v1329 = vpop.f32.mrf.mxu0
        %v1330 = vadd.f32 %v1296, %v1329
        %v1331 = vpop.f32.mrf.mxu0
        %v1332 = vadd.f32 %v1296, %v1331
        %1333 = vdwg.mxu0
        %v1334 = vld [vmem:[%s945] sm:$0xf]
        %v1335 = vld [vmem:[%s945 + $0x4] sm:$0xf]
        %v1336 = vld [vmem:[%s945 + $0x8] sm:$0xf]
        %v1337 = vld [vmem:[%s945 + $0xc] sm:$0xf]
        %v1338 = vld [vmem:[%s948] sm:$0x1]
        %v1340 = vperm.slane %v1338, 0
        %v1346 = vunpack.c.l.b16 %v1334
        %v1347 = vunpack.c.l.b16 %v1335
        %v1348 = vunpack.c.l.b16 %v1336
        %v1349 = vunpack.c.l.b16 %v1337
        %v1350 = vpack.c.b16 %v1347, %v1346
        %v1351 = vpack.c.b16 %v1349, %v1348
        %1354 = vmatpush.bf16.msra.mxu0 0
        %1355 = vmatpush.bf16.msra.mxu0 0
        %1356 = vmatpush.bf16.msra.mxu0 0
        %1357 = vmatpush.bf16.msra.mxu0 0
        %1358 = vmatpush.bf16.msra.mxu0 0
        %1359 = vmatpush.bf16.msra.mxu0 0
        %1360 = vmatpush.bf16.msra.mxu0 %v1351
        %1361 = vmatpush.bf16.msra.mxu0 %v1350
        %1362 = vmatmul.bf16.gmra.mxu0 %v1258
        %v1363 = vpop.f32.mrf.mxu0
        %v1364 = vadd.f32 %v1340, %v1363
        %v1365 = vpop.f32.mrf.mxu0
        %v1366 = vadd.f32 %v1340, %v1365
        %1367 = vmatmul.bf16.gmra.mxu0 %v1261
        %v1368 = vpop.f32.mrf.mxu0
        %v1369 = vadd.f32 %v1340, %v1368
        %v1370 = vpop.f32.mrf.mxu0
        %v1371 = vadd.f32 %v1340, %v1370
        %1372 = vmatmul.bf16.gmra.mxu0 %v1264
        %v1373 = vpop.f32.mrf.mxu0
        %v1374 = vadd.f32 %v1340, %v1373
        %v1375 = vpop.f32.mrf.mxu0
        %v1376 = vadd.f32 %v1340, %v1375
        %1377 = vdwg.mxu0
        %1384 = vrot.lane.b32.xlu0 %v1276, 120
        %v1385 = vpop.permute.xlu0 %1384
        %1386 = vrot.lane.b32.xlu0 %v1278, 120
        %v1387 = vpop.permute.xlu0 %1386
        %1388 = vrot.lane.b32.xlu0 %v1281, 120
        %v1389 = vpop.permute.xlu0 %1388
        %1390 = vrot.lane.b32.xlu0 %v1283, 120
        %v1391 = vpop.permute.xlu0 %1390
        %1392 = vrot.lane.b32.xlu0 %v1286, 120
        %v1393 = vpop.permute.xlu0 %1392
        %1394 = vrot.lane.b32.xlu0 %v1288, 120
        %v1395 = vpop.permute.xlu0 %1394
        %1402 = vrot.lane.b32.xlu0 %v1276, 112
        %v1403 = vpop.permute.xlu0 %1402
        %1404 = vrot.lane.b32.xlu0 %v1278, 112
        %v1405 = vpop.permute.xlu0 %1404
        %1406 = vrot.lane.b32.xlu0 %v1281, 112
        %v1407 = vpop.permute.xlu0 %1406
        %1408 = vrot.lane.b32.xlu0 %v1283, 112
        %v1409 = vpop.permute.xlu0 %1408
        %1410 = vrot.lane.b32.xlu0 %v1286, 112
        %v1411 = vpop.permute.xlu0 %1410
        %1412 = vrot.lane.b32.xlu0 %v1288, 112
        %v1413 = vpop.permute.xlu0 %1412
        %1420 = vrot.lane.b32.xlu0 %v1276, 104
        %v1421 = vpop.permute.xlu0 %1420
        %1422 = vrot.lane.b32.xlu0 %v1278, 104
        %v1423 = vpop.permute.xlu0 %1422
        %1424 = vrot.lane.b32.xlu0 %v1281, 104
        %v1425 = vpop.permute.xlu0 %1424
        %1426 = vrot.lane.b32.xlu0 %v1283, 104
        %v1427 = vpop.permute.xlu0 %1426
        %1428 = vrot.lane.b32.xlu0 %v1286, 104
        %v1429 = vpop.permute.xlu0 %1428
        %1430 = vrot.lane.b32.xlu0 %v1288, 104
        %v1431 = vpop.permute.xlu0 %1430
        %v1438 = vrot.slane %v1403, 4
        %vm1439 = vcmask 1047556
        %v1440 = vsel %vm1439, %v1438, %v1276
        %v1441 = vrot.slane %v1276, 4
        %v1442 = vsel %vm1439, %v1403, %v1441
        %v1444 = vunpack.c.l.s4 1983009808
        %v1445 = vunpack.c.0.s8 %v1444
        %v1446 = vperm.slane %v1440, %v1445
        %v1448 = vunpack.c.l.s4 1983009808
        %v1449 = vunpack.c.0.s8 %v1448
        %v1450 = vperm.slane %v1442, %v1449
        %v1451 = vrot.slane %v1421, 4
        %v1452 = vsel %vm1439, %v1451, %v1385
        %v1453 = vrot.slane %v1385, 4
        %v1454 = vsel %vm1439, %v1421, %v1453
        %v1456 = vunpack.c.l.s4 1983009808
        %v1457 = vunpack.c.0.s8 %v1456
        %v1458 = vperm.slane %v1452, %v1457
        %v1460 = vunpack.c.l.s4 1983009808
        %v1461 = vunpack.c.0.s8 %v1460
        %v1462 = vperm.slane %v1454, %v1461
        %v1463 = vrot.slane %v1458, 4
        %v1464 = vsel %vm1439, %v1463, %v1446
        %v1465 = vrot.slane %v1446, 4
        %v1466 = vsel %vm1439, %v1458, %v1465
        %v1468 = vunpack.c.l.s4 1934713408
        %v1469 = vunpack.c.0.s8 %v1468
        %v1470 = vperm.slane %v1464, %v1469
        %v1472 = vunpack.c.l.s4 1934713408
        %v1473 = vunpack.c.0.s8 %v1472
        %v1474 = vperm.slane %v1466, %v1473
        %v1475 = vrot.slane %v1462, 4
        %v1476 = vsel %vm1439, %v1475, %v1450
        %v1477 = vrot.slane %v1450, 4
        %v1478 = vsel %vm1439, %v1462, %v1477
        %v1480 = vunpack.c.l.s4 1934713408
        %v1481 = vunpack.c.0.s8 %v1480
        %v1482 = vperm.slane %v1476, %v1481
        %v1484 = vunpack.c.l.s4 1934713408
        %v1485 = vunpack.c.0.s8 %v1484
        %v1486 = vperm.slane %v1478, %v1485
        %v1487 = vrot.slane %v1470, 4
        %v1488 = vsel %vm1439, 0.0, %v1487
        %v1489 = vrot.slane %v1474, 4
        %v1490 = vsel %vm1439, 0.0, %v1489
        %v1491 = vrot.slane %v1482, 4
        %v1492 = vsel %vm1439, 0.0, %v1491
        %v1493 = vrot.slane %v1486, 4
        %v1494 = vsel %vm1439, 0.0, %v1493
        %v1495 = vrot.slane %v1405, 4
        %v1496 = vsel %vm1439, %v1495, %v1278
        %v1497 = vrot.slane %v1278, 4
        %v1498 = vsel %vm1439, %v1405, %v1497
        %v1500 = vunpack.c.l.s4 1983009808
        %v1501 = vunpack.c.0.s8 %v1500
        %v1502 = vperm.slane %v1496, %v1501
        %v1504 = vunpack.c.l.s4 1983009808
        %v1505 = vunpack.c.0.s8 %v1504
        %v1506 = vperm.slane %v1498, %v1505
        %v1507 = vrot.slane %v1423, 4
        %v1508 = vsel %vm1439, %v1507, %v1387
        %v1509 = vrot.slane %v1387, 4
        %v1510 = vsel %vm1439, %v1423, %v1509
        %v1512 = vunpack.c.l.s4 1983009808
        %v1513 = vunpack.c.0.s8 %v1512
        %v1514 = vperm.slane %v1508, %v1513
        %v1516 = vunpack.c.l.s4 1983009808
        %v1517 = vunpack.c.0.s8 %v1516
        %v1518 = vperm.slane %v1510, %v1517
        %v1519 = vrot.slane %v1514, 4
        %v1520 = vsel %vm1439, %v1519, %v1502
        %v1521 = vrot.slane %v1502, 4
        %v1522 = vsel %vm1439, %v1514, %v1521
        %v1524 = vunpack.c.l.s4 1934713408
        %v1525 = vunpack.c.0.s8 %v1524
        %v1526 = vperm.slane %v1520, %v1525
        %v1528 = vunpack.c.l.s4 1934713408
        %v1529 = vunpack.c.0.s8 %v1528
        %v1530 = vperm.slane %v1522, %v1529
        %v1531 = vrot.slane %v1518, 4
        %v1532 = vsel %vm1439, %v1531, %v1506
        %v1533 = vrot.slane %v1506, 4
        %v1534 = vsel %vm1439, %v1518, %v1533
        %v1536 = vunpack.c.l.s4 1934713408
        %v1537 = vunpack.c.0.s8 %v1536
        %v1538 = vperm.slane %v1532, %v1537
        %v1540 = vunpack.c.l.s4 1934713408
        %v1541 = vunpack.c.0.s8 %v1540
        %v1542 = vperm.slane %v1534, %v1541
        %v1543 = vrot.slane %v1526, 4
        %v1544 = vsel %vm1439, 0.0, %v1543
        %v1545 = vrot.slane %v1530, 4
        %v1546 = vsel %vm1439, 0.0, %v1545
        %v1547 = vrot.slane %v1538, 4
        %v1548 = vsel %vm1439, 0.0, %v1547
        %v1549 = vrot.slane %v1542, 4
        %v1550 = vsel %vm1439, 0.0, %v1549
        %v1551 = vrot.slane %v1407, 4
        %v1552 = vsel %vm1439, %v1551, %v1281
        %v1553 = vrot.slane %v1281, 4
        %v1554 = vsel %vm1439, %v1407, %v1553
        %v1556 = vunpack.c.l.s4 1983009808
        %v1557 = vunpack.c.0.s8 %v1556
        %v1558 = vperm.slane %v1552, %v1557
        %v1560 = vunpack.c.l.s4 1983009808
        %v1561 = vunpack.c.0.s8 %v1560
        %v1562 = vperm.slane %v1554, %v1561
        %v1563 = vrot.slane %v1425, 4
        %v1564 = vsel %vm1439, %v1563, %v1389
        %v1565 = vrot.slane %v1389, 4
        %v1566 = vsel %vm1439, %v1425, %v1565
        %v1568 = vunpack.c.l.s4 1983009808
        %v1569 = vunpack.c.0.s8 %v1568
        %v1570 = vperm.slane %v1564, %v1569
        %v1572 = vunpack.c.l.s4 1983009808
        %v1573 = vunpack.c.0.s8 %v1572
        %v1574 = vperm.slane %v1566, %v1573
        %v1575 = vrot.slane %v1570, 4
        %v1576 = vsel %vm1439, %v1575, %v1558
        %v1577 = vrot.slane %v1558, 4
        %v1578 = vsel %vm1439, %v1570, %v1577
        %v1580 = vunpack.c.l.s4 1934713408
        %v1581 = vunpack.c.0.s8 %v1580
        %v1582 = vperm.slane %v1576, %v1581
        %v1584 = vunpack.c.l.s4 1934713408
        %v1585 = vunpack.c.0.s8 %v1584
        %v1586 = vperm.slane %v1578, %v1585
        %v1587 = vrot.slane %v1574, 4
        %v1588 = vsel %vm1439, %v1587, %v1562
        %v1589 = vrot.slane %v1562, 4
        %v1590 = vsel %vm1439, %v1574, %v1589
        %v1592 = vunpack.c.l.s4 1934713408
        %v1593 = vunpack.c.0.s8 %v1592
        %v1594 = vperm.slane %v1588, %v1593
        %v1596 = vunpack.c.l.s4 1934713408
        %v1597 = vunpack.c.0.s8 %v1596
        %v1598 = vperm.slane %v1590, %v1597
        %v1599 = vrot.slane %v1582, 4
        %v1600 = vsel %vm1439, 0.0, %v1599
        %v1601 = vrot.slane %v1586, 4
        %v1602 = vsel %vm1439, 0.0, %v1601
        %v1603 = vrot.slane %v1594, 4
        %v1604 = vsel %vm1439, 0.0, %v1603
        %v1605 = vrot.slane %v1598, 4
        %v1606 = vsel %vm1439, 0.0, %v1605
        %v1607 = vrot.slane %v1409, 4
        %v1608 = vsel %vm1439, %v1607, %v1283
        %v1609 = vrot.slane %v1283, 4
        %v1610 = vsel %vm1439, %v1409, %v1609
        %v1612 = vunpack.c.l.s4 1983009808
        %v1613 = vunpack.c.0.s8 %v1612
        %v1614 = vperm.slane %v1608, %v1613
        %v1616 = vunpack.c.l.s4 1983009808
        %v1617 = vunpack.c.0.s8 %v1616
        %v1618 = vperm.slane %v1610, %v1617
        %v1619 = vrot.slane %v1427, 4
        %v1620 = vsel %vm1439, %v1619, %v1391
        %v1621 = vrot.slane %v1391, 4
        %v1622 = vsel %vm1439, %v1427, %v1621
        %v1624 = vunpack.c.l.s4 1983009808
        %v1625 = vunpack.c.0.s8 %v1624
        %v1626 = vperm.slane %v1620, %v1625
        %v1628 = vunpack.c.l.s4 1983009808
        %v1629 = vunpack.c.0.s8 %v1628
        %v1630 = vperm.slane %v1622, %v1629
        %v1631 = vrot.slane %v1626, 4
        %v1632 = vsel %vm1439, %v1631, %v1614
        %v1633 = vrot.slane %v1614, 4
        %v1634 = vsel %vm1439, %v1626, %v1633
        %v1636 = vunpack.c.l.s4 1934713408
        %v1637 = vunpack.c.0.s8 %v1636
        %v1638 = vperm.slane %v1632, %v1637
        %v1640 = vunpack.c.l.s4 1934713408
        %v1641 = vunpack.c.0.s8 %v1640
        %v1642 = vperm.slane %v1634, %v1641
        %v1643 = vrot.slane %v1630, 4
        %v1644 = vsel %vm1439, %v1643, %v1618
        %v1645 = vrot.slane %v1618, 4
        %v1646 = vsel %vm1439, %v1630, %v1645
        %v1648 = vunpack.c.l.s4 1934713408
        %v1649 = vunpack.c.0.s8 %v1648
        %v1650 = vperm.slane %v1644, %v1649
        %v1652 = vunpack.c.l.s4 1934713408
        %v1653 = vunpack.c.0.s8 %v1652
        %v1654 = vperm.slane %v1646, %v1653
        %v1655 = vrot.slane %v1638, 4
        %v1656 = vsel %vm1439, 0.0, %v1655
        %v1657 = vrot.slane %v1642, 4
        %v1658 = vsel %vm1439, 0.0, %v1657
        %v1659 = vrot.slane %v1650, 4
        %v1660 = vsel %vm1439, 0.0, %v1659
        %v1661 = vrot.slane %v1654, 4
        %v1662 = vsel %vm1439, 0.0, %v1661
        %v1663 = vrot.slane %v1411, 4
        %v1664 = vsel %vm1439, %v1663, %v1286
        %v1665 = vrot.slane %v1286, 4
        %v1666 = vsel %vm1439, %v1411, %v1665
        %v1668 = vunpack.c.l.s4 1983009808
        %v1669 = vunpack.c.0.s8 %v1668
        %v1670 = vperm.slane %v1664, %v1669
        %v1672 = vunpack.c.l.s4 1983009808
        %v1673 = vunpack.c.0.s8 %v1672
        %v1674 = vperm.slane %v1666, %v1673
        %v1675 = vrot.slane %v1429, 4
        %v1676 = vsel %vm1439, %v1675, %v1393
        %v1677 = vrot.slane %v1393, 4
        %v1678 = vsel %vm1439, %v1429, %v1677
        %v1680 = vunpack.c.l.s4 1983009808
        %v1681 = vunpack.c.0.s8 %v1680
        %v1682 = vperm.slane %v1676, %v1681
        %v1684 = vunpack.c.l.s4 1983009808
        %v1685 = vunpack.c.0.s8 %v1684
        %v1686 = vperm.slane %v1678, %v1685
        %v1687 = vrot.slane %v1682, 4
        %v1688 = vsel %vm1439, %v1687, %v1670
        %v1689 = vrot.slane %v1670, 4
        %v1690 = vsel %vm1439, %v1682, %v1689
        %v1692 = vunpack.c.l.s4 1934713408
        %v1693 = vunpack.c.0.s8 %v1692
        %v1694 = vperm.slane %v1688, %v1693
        %v1696 = vunpack.c.l.s4 1934713408
        %v1697 = vunpack.c.0.s8 %v1696
        %v1698 = vperm.slane %v1690, %v1697
        %v1699 = vrot.slane %v1686, 4
        %v1700 = vsel %vm1439, %v1699, %v1674
        %v1701 = vrot.slane %v1674, 4
        %v1702 = vsel %vm1439, %v1686, %v1701
        %v1704 = vunpack.c.l.s4 1934713408
        %v1705 = vunpack.c.0.s8 %v1704
        %v1706 = vperm.slane %v1700, %v1705
        %v1708 = vunpack.c.l.s4 1934713408
        %v1709 = vunpack.c.0.s8 %v1708
        %v1710 = vperm.slane %v1702, %v1709
        %v1711 = vrot.slane %v1694, 4
        %v1712 = vsel %vm1439, 0.0, %v1711
        %v1713 = vrot.slane %v1698, 4
        %v1714 = vsel %vm1439, 0.0, %v1713
        %v1715 = vrot.slane %v1706, 4
        %v1716 = vsel %vm1439, 0.0, %v1715
        %v1717 = vrot.slane %v1710, 4
        %v1718 = vsel %vm1439, 0.0, %v1717
        %v1719 = vrot.slane %v1413, 4
        %v1720 = vsel %vm1439, %v1719, %v1288
        %v1721 = vrot.slane %v1288, 4
        %v1722 = vsel %vm1439, %v1413, %v1721
        %v1724 = vunpack.c.l.s4 1983009808
        %v1725 = vunpack.c.0.s8 %v1724
        %v1726 = vperm.slane %v1720, %v1725
        %v1728 = vunpack.c.l.s4 1983009808
        %v1729 = vunpack.c.0.s8 %v1728
        %v1730 = vperm.slane %v1722, %v1729
        %v1731 = vrot.slane %v1431, 4
        %v1732 = vsel %vm1439, %v1731, %v1395
        %v1733 = vrot.slane %v1395, 4
        %v1734 = vsel %vm1439, %v1431, %v1733
        %v1736 = vunpack.c.l.s4 1983009808
        %v1737 = vunpack.c.0.s8 %v1736
        %v1738 = vperm.slane %v1732, %v1737
        %v1740 = vunpack.c.l.s4 1983009808
        %v1741 = vunpack.c.0.s8 %v1740
        %v1742 = vperm.slane %v1734, %v1741
        %v1743 = vrot.slane %v1738, 4
        %v1744 = vsel %vm1439, %v1743, %v1726
        %v1745 = vrot.slane %v1726, 4
        %v1746 = vsel %vm1439, %v1738, %v1745
        %v1748 = vunpack.c.l.s4 1934713408
        %v1749 = vunpack.c.0.s8 %v1748
        %v1750 = vperm.slane %v1744, %v1749
        %v1752 = vunpack.c.l.s4 1934713408
        %v1753 = vunpack.c.0.s8 %v1752
        %v1754 = vperm.slane %v1746, %v1753
        %v1755 = vrot.slane %v1742, 4
        %v1756 = vsel %vm1439, %v1755, %v1730
        %v1757 = vrot.slane %v1730, 4
        %v1758 = vsel %vm1439, %v1742, %v1757
        %v1760 = vunpack.c.l.s4 1934713408
        %v1761 = vunpack.c.0.s8 %v1760
        %v1762 = vperm.slane %v1756, %v1761
        %v1764 = vunpack.c.l.s4 1934713408
        %v1765 = vunpack.c.0.s8 %v1764
        %v1766 = vperm.slane %v1758, %v1765
        %v1767 = vrot.slane %v1750, 4
        %v1768 = vsel %vm1439, 0.0, %v1767
        %v1769 = vrot.slane %v1754, 4
        %v1770 = vsel %vm1439, 0.0, %v1769
        %v1771 = vrot.slane %v1762, 4
        %v1772 = vsel %vm1439, 0.0, %v1771
        %v1773 = vrot.slane %v1766, 4
        %v1774 = vsel %vm1439, 0.0, %v1773
        %v1775 = vsel %vm1439, %v1489, %v1470
        %v1777 = vunpack.c.l.s4 1983009808
        %v1778 = vunpack.c.0.s8 %v1777
        %v1779 = vperm.slane %v1775, %v1778
        %v1780 = vrot.slane %v1490, 4
        %v1781 = vsel %vm1439, %v1780, %v1488
        %v1783 = vunpack.c.l.s4 1983009808
        %v1784 = vunpack.c.0.s8 %v1783
        %v1785 = vperm.slane %v1781, %v1784
        %v1786 = vsel %vm1439, %v1493, %v1482
        %v1788 = vunpack.c.l.s4 1983009808
        %v1789 = vunpack.c.0.s8 %v1788
        %v1790 = vperm.slane %v1786, %v1789
        %v1791 = vrot.slane %v1494, 4
        %v1792 = vsel %vm1439, %v1791, %v1492
        %v1794 = vunpack.c.l.s4 1983009808
        %v1795 = vunpack.c.0.s8 %v1794
        %v1796 = vperm.slane %v1792, %v1795
        %v1797 = vrot.slane %v1785, 4
        %v1798 = vsel %vm1439, %v1797, %v1779
        %v1799 = vrot.slane %v1779, 4
        %v1800 = vsel %vm1439, %v1785, %v1799
        %v1802 = vunpack.c.l.s4 1934713408
        %v1803 = vunpack.c.0.s8 %v1802
        %v1804 = vperm.slane %v1798, %v1803
        %v1806 = vunpack.c.l.s4 1934713408
        %v1807 = vunpack.c.0.s8 %v1806
        %v1808 = vperm.slane %v1800, %v1807
        %v1809 = vrot.slane %v1796, 4
        %v1810 = vsel %vm1439, %v1809, %v1790
        %v1811 = vrot.slane %v1790, 4
        %v1812 = vsel %vm1439, %v1796, %v1811
        %v1814 = vunpack.c.l.s4 1934713408
        %v1815 = vunpack.c.0.s8 %v1814
        %v1816 = vperm.slane %v1810, %v1815
        %v1818 = vunpack.c.l.s4 1934713408
        %v1819 = vunpack.c.0.s8 %v1818
        %v1820 = vperm.slane %v1812, %v1819
        %v1821 = vrot.slane %v1816, 4
        %v1822 = vsel %vm1439, %v1821, %v1804
        %v1823 = vrot.slane %v1804, 4
        %v1824 = vsel %vm1439, %v1816, %v1823
        %v1825 = vrot.slane %v1820, 4
        %v1826 = vsel %vm1439, %v1825, %v1808
        %v1827 = vrot.slane %v1808, 4
        %v1828 = vsel %vm1439, %v1820, %v1827
        %v1829 = vsel %vm1439, %v1545, %v1526
        %v1831 = vunpack.c.l.s4 1983009808
        %v1832 = vunpack.c.0.s8 %v1831
        %v1833 = vperm.slane %v1829, %v1832
        %v1834 = vrot.slane %v1546, 4
        %v1835 = vsel %vm1439, %v1834, %v1544
        %v1837 = vunpack.c.l.s4 1983009808
        %v1838 = vunpack.c.0.s8 %v1837
        %v1839 = vperm.slane %v1835, %v1838
        %v1840 = vsel %vm1439, %v1549, %v1538
        %v1842 = vunpack.c.l.s4 1983009808
        %v1843 = vunpack.c.0.s8 %v1842
        %v1844 = vperm.slane %v1840, %v1843
        %v1845 = vrot.slane %v1550, 4
        %v1846 = vsel %vm1439, %v1845, %v1548
        %v1848 = vunpack.c.l.s4 1983009808
        %v1849 = vunpack.c.0.s8 %v1848
        %v1850 = vperm.slane %v1846, %v1849
        %v1851 = vrot.slane %v1839, 4
        %v1852 = vsel %vm1439, %v1851, %v1833
        %v1853 = vrot.slane %v1833, 4
        %v1854 = vsel %vm1439, %v1839, %v1853
        %v1856 = vunpack.c.l.s4 1934713408
        %v1857 = vunpack.c.0.s8 %v1856
        %v1858 = vperm.slane %v1852, %v1857
        %v1860 = vunpack.c.l.s4 1934713408
        %v1861 = vunpack.c.0.s8 %v1860
        %v1862 = vperm.slane %v1854, %v1861
        %v1863 = vrot.slane %v1850, 4
        %v1864 = vsel %vm1439, %v1863, %v1844
        %v1865 = vrot.slane %v1844, 4
        %v1866 = vsel %vm1439, %v1850, %v1865
        %v1868 = vunpack.c.l.s4 1934713408
        %v1869 = vunpack.c.0.s8 %v1868
        %v1870 = vperm.slane %v1864, %v1869
        %v1872 = vunpack.c.l.s4 1934713408
        %v1873 = vunpack.c.0.s8 %v1872
        %v1874 = vperm.slane %v1866, %v1873
        %v1875 = vrot.slane %v1870, 4
        %v1876 = vsel %vm1439, %v1875, %v1858
        %v1877 = vrot.slane %v1858, 4
        %v1878 = vsel %vm1439, %v1870, %v1877
        %v1879 = vrot.slane %v1874, 4
        %v1880 = vsel %vm1439, %v1879, %v1862
        %v1881 = vrot.slane %v1862, 4
        %v1882 = vsel %vm1439, %v1874, %v1881
        %v1883 = vsel %vm1439, %v1601, %v1582
        %v1885 = vunpack.c.l.s4 1983009808
        %v1886 = vunpack.c.0.s8 %v1885
        %v1887 = vperm.slane %v1883, %v1886
        %v1888 = vrot.slane %v1602, 4
        %v1889 = vsel %vm1439, %v1888, %v1600
        %v1891 = vunpack.c.l.s4 1983009808
        %v1892 = vunpack.c.0.s8 %v1891
        %v1893 = vperm.slane %v1889, %v1892
        %v1894 = vsel %vm1439, %v1605, %v1594
        %v1896 = vunpack.c.l.s4 1983009808
        %v1897 = vunpack.c.0.s8 %v1896
        %v1898 = vperm.slane %v1894, %v1897
        %v1899 = vrot.slane %v1606, 4
        %v1900 = vsel %vm1439, %v1899, %v1604
        %v1902 = vunpack.c.l.s4 1983009808
        %v1903 = vunpack.c.0.s8 %v1902
        %v1904 = vperm.slane %v1900, %v1903
        %v1905 = vrot.slane %v1893, 4
        %v1906 = vsel %vm1439, %v1905, %v1887
        %v1907 = vrot.slane %v1887, 4
        %v1908 = vsel %vm1439, %v1893, %v1907
        %v1910 = vunpack.c.l.s4 1934713408
        %v1911 = vunpack.c.0.s8 %v1910
        %v1912 = vperm.slane %v1906, %v1911
        %v1914 = vunpack.c.l.s4 1934713408
        %v1915 = vunpack.c.0.s8 %v1914
        %v1916 = vperm.slane %v1908, %v1915
        %v1917 = vrot.slane %v1904, 4
        %v1918 = vsel %vm1439, %v1917, %v1898
        %v1919 = vrot.slane %v1898, 4
        %v1920 = vsel %vm1439, %v1904, %v1919
        %v1922 = vunpack.c.l.s4 1934713408
        %v1923 = vunpack.c.0.s8 %v1922
        %v1924 = vperm.slane %v1918, %v1923
        %v1926 = vunpack.c.l.s4 1934713408
        %v1927 = vunpack.c.0.s8 %v1926
        %v1928 = vperm.slane %v1920, %v1927
        %v1929 = vrot.slane %v1924, 4
        %v1930 = vsel %vm1439, %v1929, %v1912
        %v1931 = vrot.slane %v1912, 4
        %v1932 = vsel %vm1439, %v1924, %v1931
        %v1933 = vrot.slane %v1928, 4
        %v1934 = vsel %vm1439, %v1933, %v1916
        %v1935 = vrot.slane %v1916, 4
        %v1936 = vsel %vm1439, %v1928, %v1935
        %v1937 = vsel %vm1439, %v1657, %v1638
        %v1939 = vunpack.c.l.s4 1983009808
        %v1940 = vunpack.c.0.s8 %v1939
        %v1941 = vperm.slane %v1937, %v1940
        %v1942 = vrot.slane %v1658, 4
        %v1943 = vsel %vm1439, %v1942, %v1656
        %v1945 = vunpack.c.l.s4 1983009808
        %v1946 = vunpack.c.0.s8 %v1945
        %v1947 = vperm.slane %v1943, %v1946
        %v1948 = vsel %vm1439, %v1661, %v1650
        %v1950 = vunpack.c.l.s4 1983009808
        %v1951 = vunpack.c.0.s8 %v1950
        %v1952 = vperm.slane %v1948, %v1951
        %v1953 = vrot.slane %v1662, 4
        %v1954 = vsel %vm1439, %v1953, %v1660
        %v1956 = vunpack.c.l.s4 1983009808
        %v1957 = vunpack.c.0.s8 %v1956
        %v1958 = vperm.slane %v1954, %v1957
        %v1959 = vrot.slane %v1947, 4
        %v1960 = vsel %vm1439, %v1959, %v1941
        %v1961 = vrot.slane %v1941, 4
        %v1962 = vsel %vm1439, %v1947, %v1961
        %v1964 = vunpack.c.l.s4 1934713408
        %v1965 = vunpack.c.0.s8 %v1964
        %v1966 = vperm.slane %v1960, %v1965
        %v1968 = vunpack.c.l.s4 1934713408
        %v1969 = vunpack.c.0.s8 %v1968
        %v1970 = vperm.slane %v1962, %v1969
        %v1971 = vrot.slane %v1958, 4
        %v1972 = vsel %vm1439, %v1971, %v1952
        %v1973 = vrot.slane %v1952, 4
        %v1974 = vsel %vm1439, %v1958, %v1973
        %v1976 = vunpack.c.l.s4 1934713408
        %v1977 = vunpack.c.0.s8 %v1976
        %v1978 = vperm.slane %v1972, %v1977
        %v1980 = vunpack.c.l.s4 1934713408
        %v1981 = vunpack.c.0.s8 %v1980
        %v1982 = vperm.slane %v1974, %v1981
        %v1983 = vrot.slane %v1978, 4
        %v1984 = vsel %vm1439, %v1983, %v1966
        %v1985 = vrot.slane %v1966, 4
        %v1986 = vsel %vm1439, %v1978, %v1985
        %v1987 = vrot.slane %v1982, 4
        %v1988 = vsel %vm1439, %v1987, %v1970
        %v1989 = vrot.slane %v1970, 4
        %v1990 = vsel %vm1439, %v1982, %v1989
        %v1991 = vsel %vm1439, %v1713, %v1694
        %v1993 = vunpack.c.l.s4 1983009808
        %v1994 = vunpack.c.0.s8 %v1993
        %v1995 = vperm.slane %v1991, %v1994
        %v1996 = vrot.slane %v1714, 4
        %v1997 = vsel %vm1439, %v1996, %v1712
        %v1999 = vunpack.c.l.s4 1983009808
        %v2000 = vunpack.c.0.s8 %v1999
        %v2001 = vperm.slane %v1997, %v2000
        %v2002 = vsel %vm1439, %v1717, %v1706
        %v2004 = vunpack.c.l.s4 1983009808
        %v2005 = vunpack.c.0.s8 %v2004
        %v2006 = vperm.slane %v2002, %v2005
        %v2007 = vrot.slane %v1718, 4
        %v2008 = vsel %vm1439, %v2007, %v1716
        %v2010 = vunpack.c.l.s4 1983009808
        %v2011 = vunpack.c.0.s8 %v2010
        %v2012 = vperm.slane %v2008, %v2011
        %v2013 = vrot.slane %v2001, 4
        %v2014 = vsel %vm1439, %v2013, %v1995
        %v2015 = vrot.slane %v1995, 4
        %v2016 = vsel %vm1439, %v2001, %v2015
        %v2018 = vunpack.c.l.s4 1934713408
        %v2019 = vunpack.c.0.s8 %v2018
        %v2020 = vperm.slane %v2014, %v2019
        %v2022 = vunpack.c.l.s4 1934713408
        %v2023 = vunpack.c.0.s8 %v2022
        %v2024 = vperm.slane %v2016, %v2023
        %v2025 = vrot.slane %v2012, 4
        %v2026 = vsel %vm1439, %v2025, %v2006
        %v2027 = vrot.slane %v2006, 4
        %v2028 = vsel %vm1439, %v2012, %v2027
        %v2030 = vunpack.c.l.s4 1934713408
        %v2031 = vunpack.c.0.s8 %v2030
        %v2032 = vperm.slane %v2026, %v2031
        %v2034 = vunpack.c.l.s4 1934713408
        %v2035 = vunpack.c.0.s8 %v2034
        %v2036 = vperm.slane %v2028, %v2035
        %v2037 = vrot.slane %v2032, 4
        %v2038 = vsel %vm1439, %v2037, %v2020
        %v2039 = vrot.slane %v2020, 4
        %v2040 = vsel %vm1439, %v2032, %v2039
        %v2041 = vrot.slane %v2036, 4
        %v2042 = vsel %vm1439, %v2041, %v2024
        %v2043 = vrot.slane %v2024, 4
        %v2044 = vsel %vm1439, %v2036, %v2043
        %v2045 = vsel %vm1439, %v1769, %v1750
        %v2047 = vunpack.c.l.s4 1983009808
        %v2048 = vunpack.c.0.s8 %v2047
        %v2049 = vperm.slane %v2045, %v2048
        %v2050 = vrot.slane %v1770, 4
        %v2051 = vsel %vm1439, %v2050, %v1768
        %v2053 = vunpack.c.l.s4 1983009808
        %v2054 = vunpack.c.0.s8 %v2053
        %v2055 = vperm.slane %v2051, %v2054
        %v2056 = vsel %vm1439, %v1773, %v1762
        %v2058 = vunpack.c.l.s4 1983009808
        %v2059 = vunpack.c.0.s8 %v2058
        %v2060 = vperm.slane %v2056, %v2059
        %v2061 = vrot.slane %v1774, 4
        %v2062 = vsel %vm1439, %v2061, %v1772
        %v2064 = vunpack.c.l.s4 1983009808
        %v2065 = vunpack.c.0.s8 %v2064
        %v2066 = vperm.slane %v2062, %v2065
        %v2067 = vrot.slane %v2055, 4
        %v2068 = vsel %vm1439, %v2067, %v2049
        %v2069 = vrot.slane %v2049, 4
        %v2070 = vsel %vm1439, %v2055, %v2069
        %v2072 = vunpack.c.l.s4 1934713408
        %v2073 = vunpack.c.0.s8 %v2072
        %v2074 = vperm.slane %v2068, %v2073
        %v2076 = vunpack.c.l.s4 1934713408
        %v2077 = vunpack.c.0.s8 %v2076
        %v2078 = vperm.slane %v2070, %v2077
        %v2079 = vrot.slane %v2066, 4
        %v2080 = vsel %vm1439, %v2079, %v2060
        %v2081 = vrot.slane %v2060, 4
        %v2082 = vsel %vm1439, %v2066, %v2081
        %v2084 = vunpack.c.l.s4 1934713408
        %v2085 = vunpack.c.0.s8 %v2084
        %v2086 = vperm.slane %v2080, %v2085
        %v2088 = vunpack.c.l.s4 1934713408
        %v2089 = vunpack.c.0.s8 %v2088
        %v2090 = vperm.slane %v2082, %v2089
        %v2091 = vrot.slane %v2086, 4
        %v2092 = vsel %vm1439, %v2091, %v2074
        %v2093 = vrot.slane %v2074, 4
        %v2094 = vsel %vm1439, %v2086, %v2093
        %v2095 = vrot.slane %v2090, 4
        %v2096 = vsel %vm1439, %v2095, %v2078
        %v2097 = vrot.slane %v2078, 4
        %v2098 = vsel %vm1439, %v2090, %v2097
        %2105 = vrot.lane.b32.xlu0 %v1320, 120
        %v2106 = vpop.permute.xlu0 %2105
        %2107 = vrot.lane.b32.xlu0 %v1322, 120
        %v2108 = vpop.permute.xlu0 %2107
        %2109 = vrot.lane.b32.xlu0 %v1325, 120
        %v2110 = vpop.permute.xlu0 %2109
        %2111 = vrot.lane.b32.xlu0 %v1327, 120
        %v2112 = vpop.permute.xlu0 %2111
        %2113 = vrot.lane.b32.xlu0 %v1330, 120
        %v2114 = vpop.permute.xlu0 %2113
        %2115 = vrot.lane.b32.xlu0 %v1332, 120
        %v2116 = vpop.permute.xlu0 %2115
        %2123 = vrot.lane.b32.xlu0 %v1320, 112
        %v2124 = vpop.permute.xlu0 %2123
        %2125 = vrot.lane.b32.xlu0 %v1322, 112
        %v2126 = vpop.permute.xlu0 %2125
        %2127 = vrot.lane.b32.xlu0 %v1325, 112
        %v2128 = vpop.permute.xlu0 %2127
        %2129 = vrot.lane.b32.xlu0 %v1327, 112
        %v2130 = vpop.permute.xlu0 %2129
        %2131 = vrot.lane.b32.xlu0 %v1330, 112
        %v2132 = vpop.permute.xlu0 %2131
        %2133 = vrot.lane.b32.xlu0 %v1332, 112
        %v2134 = vpop.permute.xlu0 %2133
        %2141 = vrot.lane.b32.xlu0 %v1320, 104
        %v2142 = vpop.permute.xlu0 %2141
        %2143 = vrot.lane.b32.xlu0 %v1322, 104
        %v2144 = vpop.permute.xlu0 %2143
        %2145 = vrot.lane.b32.xlu0 %v1325, 104
        %v2146 = vpop.permute.xlu0 %2145
        %2147 = vrot.lane.b32.xlu0 %v1327, 104
        %v2148 = vpop.permute.xlu0 %2147
        %2149 = vrot.lane.b32.xlu0 %v1330, 104
        %v2150 = vpop.permute.xlu0 %2149
        %2151 = vrot.lane.b32.xlu0 %v1332, 104
        %v2152 = vpop.permute.xlu0 %2151
        %v2159 = vrot.slane %v2124, 4
        %v2160 = vsel %vm1439, %v2159, %v1320
        %v2161 = vrot.slane %v1320, 4
        %v2162 = vsel %vm1439, %v2124, %v2161
        %v2164 = vunpack.c.l.s4 1983009808
        %v2165 = vunpack.c.0.s8 %v2164
        %v2166 = vperm.slane %v2160, %v2165
        %v2168 = vunpack.c.l.s4 1983009808
        %v2169 = vunpack.c.0.s8 %v2168
        %v2170 = vperm.slane %v2162, %v2169
        %v2171 = vrot.slane %v2142, 4
        %v2172 = vsel %vm1439, %v2171, %v2106
        %v2173 = vrot.slane %v2106, 4
        %v2174 = vsel %vm1439, %v2142, %v2173
        %v2176 = vunpack.c.l.s4 1983009808
        %v2177 = vunpack.c.0.s8 %v2176
        %v2178 = vperm.slane %v2172, %v2177
        %v2180 = vunpack.c.l.s4 1983009808
        %v2181 = vunpack.c.0.s8 %v2180
        %v2182 = vperm.slane %v2174, %v2181
        %v2183 = vrot.slane %v2178, 4
        %v2184 = vsel %vm1439, %v2183, %v2166
        %v2185 = vrot.slane %v2166, 4
        %v2186 = vsel %vm1439, %v2178, %v2185
        %v2188 = vunpack.c.l.s4 1934713408
        %v2189 = vunpack.c.0.s8 %v2188
        %v2190 = vperm.slane %v2184, %v2189
        %v2192 = vunpack.c.l.s4 1934713408
        %v2193 = vunpack.c.0.s8 %v2192
        %v2194 = vperm.slane %v2186, %v2193
        %v2195 = vrot.slane %v2182, 4
        %v2196 = vsel %vm1439, %v2195, %v2170
        %v2197 = vrot.slane %v2170, 4
        %v2198 = vsel %vm1439, %v2182, %v2197
        %v2200 = vunpack.c.l.s4 1934713408
        %v2201 = vunpack.c.0.s8 %v2200
        %v2202 = vperm.slane %v2196, %v2201
        %v2204 = vunpack.c.l.s4 1934713408
        %v2205 = vunpack.c.0.s8 %v2204
        %v2206 = vperm.slane %v2198, %v2205
        %v2207 = vrot.slane %v2190, 4
        %v2208 = vsel %vm1439, 0.0, %v2207
        %v2209 = vrot.slane %v2194, 4
        %v2210 = vsel %vm1439, 0.0, %v2209
        %v2211 = vrot.slane %v2202, 4
        %v2212 = vsel %vm1439, 0.0, %v2211
        %v2213 = vrot.slane %v2206, 4
        %v2214 = vsel %vm1439, 0.0, %v2213
        %v2215 = vrot.slane %v2126, 4
        %v2216 = vsel %vm1439, %v2215, %v1322
        %v2217 = vrot.slane %v1322, 4
        %v2218 = vsel %vm1439, %v2126, %v2217
        %v2220 = vunpack.c.l.s4 1983009808
        %v2221 = vunpack.c.0.s8 %v2220
        %v2222 = vperm.slane %v2216, %v2221
        %v2224 = vunpack.c.l.s4 1983009808
        %v2225 = vunpack.c.0.s8 %v2224
        %v2226 = vperm.slane %v2218, %v2225
        %v2227 = vrot.slane %v2144, 4
        %v2228 = vsel %vm1439, %v2227, %v2108
        %v2229 = vrot.slane %v2108, 4
        %v2230 = vsel %vm1439, %v2144, %v2229
        %v2232 = vunpack.c.l.s4 1983009808
        %v2233 = vunpack.c.0.s8 %v2232
        %v2234 = vperm.slane %v2228, %v2233
        %v2236 = vunpack.c.l.s4 1983009808
        %v2237 = vunpack.c.0.s8 %v2236
        %v2238 = vperm.slane %v2230, %v2237
        %v2239 = vrot.slane %v2234, 4
        %v2240 = vsel %vm1439, %v2239, %v2222
        %v2241 = vrot.slane %v2222, 4
        %v2242 = vsel %vm1439, %v2234, %v2241
        %v2244 = vunpack.c.l.s4 1934713408
        %v2245 = vunpack.c.0.s8 %v2244
        %v2246 = vperm.slane %v2240, %v2245
        %v2248 = vunpack.c.l.s4 1934713408
        %v2249 = vunpack.c.0.s8 %v2248
        %v2250 = vperm.slane %v2242, %v2249
        %v2251 = vrot.slane %v2238, 4
        %v2252 = vsel %vm1439, %v2251, %v2226
        %v2253 = vrot.slane %v2226, 4
        %v2254 = vsel %vm1439, %v2238, %v2253
        %v2256 = vunpack.c.l.s4 1934713408
        %v2257 = vunpack.c.0.s8 %v2256
        %v2258 = vperm.slane %v2252, %v2257
        %v2260 = vunpack.c.l.s4 1934713408
        %v2261 = vunpack.c.0.s8 %v2260
        %v2262 = vperm.slane %v2254, %v2261
        %v2263 = vrot.slane %v2246, 4
        %v2264 = vsel %vm1439, 0.0, %v2263
        %v2265 = vrot.slane %v2250, 4
        %v2266 = vsel %vm1439, 0.0, %v2265
        %v2267 = vrot.slane %v2258, 4
        %v2268 = vsel %vm1439, 0.0, %v2267
        %v2269 = vrot.slane %v2262, 4
        %v2270 = vsel %vm1439, 0.0, %v2269
        %v2271 = vrot.slane %v2128, 4
        %v2272 = vsel %vm1439, %v2271, %v1325
        %v2273 = vrot.slane %v1325, 4
        %v2274 = vsel %vm1439, %v2128, %v2273
        %v2276 = vunpack.c.l.s4 1983009808
        %v2277 = vunpack.c.0.s8 %v2276
        %v2278 = vperm.slane %v2272, %v2277
        %v2280 = vunpack.c.l.s4 1983009808
        %v2281 = vunpack.c.0.s8 %v2280
        %v2282 = vperm.slane %v2274, %v2281
        %v2283 = vrot.slane %v2146, 4
        %v2284 = vsel %vm1439, %v2283, %v2110
        %v2285 = vrot.slane %v2110, 4
        %v2286 = vsel %vm1439, %v2146, %v2285
        %v2288 = vunpack.c.l.s4 1983009808
        %v2289 = vunpack.c.0.s8 %v2288
        %v2290 = vperm.slane %v2284, %v2289
        %v2292 = vunpack.c.l.s4 1983009808
        %v2293 = vunpack.c.0.s8 %v2292
        %v2294 = vperm.slane %v2286, %v2293
        %v2295 = vrot.slane %v2290, 4
        %v2296 = vsel %vm1439, %v2295, %v2278
        %v2297 = vrot.slane %v2278, 4
        %v2298 = vsel %vm1439, %v2290, %v2297
        %v2300 = vunpack.c.l.s4 1934713408
        %v2301 = vunpack.c.0.s8 %v2300
        %v2302 = vperm.slane %v2296, %v2301
        %v2304 = vunpack.c.l.s4 1934713408
        %v2305 = vunpack.c.0.s8 %v2304
        %v2306 = vperm.slane %v2298, %v2305
        %v2307 = vrot.slane %v2294, 4
        %v2308 = vsel %vm1439, %v2307, %v2282
        %v2309 = vrot.slane %v2282, 4
        %v2310 = vsel %vm1439, %v2294, %v2309
        %v2312 = vunpack.c.l.s4 1934713408
        %v2313 = vunpack.c.0.s8 %v2312
        %v2314 = vperm.slane %v2308, %v2313
        %v2316 = vunpack.c.l.s4 1934713408
        %v2317 = vunpack.c.0.s8 %v2316
        %v2318 = vperm.slane %v2310, %v2317
        %v2319 = vrot.slane %v2302, 4
        %v2320 = vsel %vm1439, 0.0, %v2319
        %v2321 = vrot.slane %v2306, 4
        %v2322 = vsel %vm1439, 0.0, %v2321
        %v2323 = vrot.slane %v2314, 4
        %v2324 = vsel %vm1439, 0.0, %v2323
        %v2325 = vrot.slane %v2318, 4
        %v2326 = vsel %vm1439, 0.0, %v2325
        %v2327 = vrot.slane %v2130, 4
        %v2328 = vsel %vm1439, %v2327, %v1327
        %v2329 = vrot.slane %v1327, 4
        %v2330 = vsel %vm1439, %v2130, %v2329
        %v2332 = vunpack.c.l.s4 1983009808
        %v2333 = vunpack.c.0.s8 %v2332
        %v2334 = vperm.slane %v2328, %v2333
        %v2336 = vunpack.c.l.s4 1983009808
        %v2337 = vunpack.c.0.s8 %v2336
        %v2338 = vperm.slane %v2330, %v2337
        %v2339 = vrot.slane %v2148, 4
        %v2340 = vsel %vm1439, %v2339, %v2112
        %v2341 = vrot.slane %v2112, 4
        %v2342 = vsel %vm1439, %v2148, %v2341
        %v2344 = vunpack.c.l.s4 1983009808
        %v2345 = vunpack.c.0.s8 %v2344
        %v2346 = vperm.slane %v2340, %v2345
        %v2348 = vunpack.c.l.s4 1983009808
        %v2349 = vunpack.c.0.s8 %v2348
        %v2350 = vperm.slane %v2342, %v2349
        %v2351 = vrot.slane %v2346, 4
        %v2352 = vsel %vm1439, %v2351, %v2334
        %v2353 = vrot.slane %v2334, 4
        %v2354 = vsel %vm1439, %v2346, %v2353
        %v2356 = vunpack.c.l.s4 1934713408
        %v2357 = vunpack.c.0.s8 %v2356
        %v2358 = vperm.slane %v2352, %v2357
        %v2360 = vunpack.c.l.s4 1934713408
        %v2361 = vunpack.c.0.s8 %v2360
        %v2362 = vperm.slane %v2354, %v2361
        %v2363 = vrot.slane %v2350, 4
        %v2364 = vsel %vm1439, %v2363, %v2338
        %v2365 = vrot.slane %v2338, 4
        %v2366 = vsel %vm1439, %v2350, %v2365
        %v2368 = vunpack.c.l.s4 1934713408
        %v2369 = vunpack.c.0.s8 %v2368
        %v2370 = vperm.slane %v2364, %v2369
        %v2372 = vunpack.c.l.s4 1934713408
        %v2373 = vunpack.c.0.s8 %v2372
        %v2374 = vperm.slane %v2366, %v2373
        %v2375 = vrot.slane %v2358, 4
        %v2376 = vsel %vm1439, 0.0, %v2375
        %v2377 = vrot.slane %v2362, 4
        %v2378 = vsel %vm1439, 0.0, %v2377
        %v2379 = vrot.slane %v2370, 4
        %v2380 = vsel %vm1439, 0.0, %v2379
        %v2381 = vrot.slane %v2374, 4
        %v2382 = vsel %vm1439, 0.0, %v2381
        %v2383 = vrot.slane %v2132, 4
        %v2384 = vsel %vm1439, %v2383, %v1330
        %v2385 = vrot.slane %v1330, 4
        %v2386 = vsel %vm1439, %v2132, %v2385
        %v2388 = vunpack.c.l.s4 1983009808
        %v2389 = vunpack.c.0.s8 %v2388
        %v2390 = vperm.slane %v2384, %v2389
        %v2392 = vunpack.c.l.s4 1983009808
        %v2393 = vunpack.c.0.s8 %v2392
        %v2394 = vperm.slane %v2386, %v2393
        %v2395 = vrot.slane %v2150, 4
        %v2396 = vsel %vm1439, %v2395, %v2114
        %v2397 = vrot.slane %v2114, 4
        %v2398 = vsel %vm1439, %v2150, %v2397
        %v2400 = vunpack.c.l.s4 1983009808
        %v2401 = vunpack.c.0.s8 %v2400
        %v2402 = vperm.slane %v2396, %v2401
        %v2404 = vunpack.c.l.s4 1983009808
        %v2405 = vunpack.c.0.s8 %v2404
        %v2406 = vperm.slane %v2398, %v2405
        %v2407 = vrot.slane %v2402, 4
        %v2408 = vsel %vm1439, %v2407, %v2390
        %v2409 = vrot.slane %v2390, 4
        %v2410 = vsel %vm1439, %v2402, %v2409
        %v2412 = vunpack.c.l.s4 1934713408
        %v2413 = vunpack.c.0.s8 %v2412
        %v2414 = vperm.slane %v2408, %v2413
        %v2416 = vunpack.c.l.s4 1934713408
        %v2417 = vunpack.c.0.s8 %v2416
        %v2418 = vperm.slane %v2410, %v2417
        %v2419 = vrot.slane %v2406, 4
        %v2420 = vsel %vm1439, %v2419, %v2394
        %v2421 = vrot.slane %v2394, 4
        %v2422 = vsel %vm1439, %v2406, %v2421
        %v2424 = vunpack.c.l.s4 1934713408
        %v2425 = vunpack.c.0.s8 %v2424
        %v2426 = vperm.slane %v2420, %v2425
        %v2428 = vunpack.c.l.s4 1934713408
        %v2429 = vunpack.c.0.s8 %v2428
        %v2430 = vperm.slane %v2422, %v2429
        %v2431 = vrot.slane %v2414, 4
        %v2432 = vsel %vm1439, 0.0, %v2431
        %v2433 = vrot.slane %v2418, 4
        %v2434 = vsel %vm1439, 0.0, %v2433
        %v2435 = vrot.slane %v2426, 4
        %v2436 = vsel %vm1439, 0.0, %v2435
        %v2437 = vrot.slane %v2430, 4
        %v2438 = vsel %vm1439, 0.0, %v2437
        %v2439 = vrot.slane %v2134, 4
        %v2440 = vsel %vm1439, %v2439, %v1332
        %v2441 = vrot.slane %v1332, 4
        %v2442 = vsel %vm1439, %v2134, %v2441
        %v2444 = vunpack.c.l.s4 1983009808
        %v2445 = vunpack.c.0.s8 %v2444
        %v2446 = vperm.slane %v2440, %v2445
        %v2448 = vunpack.c.l.s4 1983009808
        %v2449 = vunpack.c.0.s8 %v2448
        %v2450 = vperm.slane %v2442, %v2449
        %v2451 = vrot.slane %v2152, 4
        %v2452 = vsel %vm1439, %v2451, %v2116
        %v2453 = vrot.slane %v2116, 4
        %v2454 = vsel %vm1439, %v2152, %v2453
        %v2456 = vunpack.c.l.s4 1983009808
        %v2457 = vunpack.c.0.s8 %v2456
        %v2458 = vperm.slane %v2452, %v2457
        %v2460 = vunpack.c.l.s4 1983009808
        %v2461 = vunpack.c.0.s8 %v2460
        %v2462 = vperm.slane %v2454, %v2461
        %v2463 = vrot.slane %v2458, 4
        %v2464 = vsel %vm1439, %v2463, %v2446
        %v2465 = vrot.slane %v2446, 4
        %v2466 = vsel %vm1439, %v2458, %v2465
        %v2468 = vunpack.c.l.s4 1934713408
        %v2469 = vunpack.c.0.s8 %v2468
        %v2470 = vperm.slane %v2464, %v2469
        %v2472 = vunpack.c.l.s4 1934713408
        %v2473 = vunpack.c.0.s8 %v2472
        %v2474 = vperm.slane %v2466, %v2473
        %v2475 = vrot.slane %v2462, 4
        %v2476 = vsel %vm1439, %v2475, %v2450
        %v2477 = vrot.slane %v2450, 4
        %v2478 = vsel %vm1439, %v2462, %v2477
        %v2480 = vunpack.c.l.s4 1934713408
        %v2481 = vunpack.c.0.s8 %v2480
        %v2482 = vperm.slane %v2476, %v2481
        %v2484 = vunpack.c.l.s4 1934713408
        %v2485 = vunpack.c.0.s8 %v2484
        %v2486 = vperm.slane %v2478, %v2485
        %v2487 = vrot.slane %v2470, 4
        %v2488 = vsel %vm1439, 0.0, %v2487
        %v2489 = vrot.slane %v2474, 4
        %v2490 = vsel %vm1439, 0.0, %v2489
        %v2491 = vrot.slane %v2482, 4
        %v2492 = vsel %vm1439, 0.0, %v2491
        %v2493 = vrot.slane %v2486, 4
        %v2494 = vsel %vm1439, 0.0, %v2493
        %v2495 = vsel %vm1439, %v2209, %v2190
        %v2497 = vunpack.c.l.s4 1983009808
        %v2498 = vunpack.c.0.s8 %v2497
        %v2499 = vperm.slane %v2495, %v2498
        %v2500 = vrot.slane %v2210, 4
        %v2501 = vsel %vm1439, %v2500, %v2208
        %v2503 = vunpack.c.l.s4 1983009808
        %v2504 = vunpack.c.0.s8 %v2503
        %v2505 = vperm.slane %v2501, %v2504
        %v2506 = vsel %vm1439, %v2213, %v2202
        %v2508 = vunpack.c.l.s4 1983009808
        %v2509 = vunpack.c.0.s8 %v2508
        %v2510 = vperm.slane %v2506, %v2509
        %v2511 = vrot.slane %v2214, 4
        %v2512 = vsel %vm1439, %v2511, %v2212
        %v2514 = vunpack.c.l.s4 1983009808
        %v2515 = vunpack.c.0.s8 %v2514
        %v2516 = vperm.slane %v2512, %v2515
        %v2517 = vrot.slane %v2505, 4
        %v2518 = vsel %vm1439, %v2517, %v2499
        %v2519 = vrot.slane %v2499, 4
        %v2520 = vsel %vm1439, %v2505, %v2519
        %v2522 = vunpack.c.l.s4 1934713408
        %v2523 = vunpack.c.0.s8 %v2522
        %v2524 = vperm.slane %v2518, %v2523
        %v2526 = vunpack.c.l.s4 1934713408
        %v2527 = vunpack.c.0.s8 %v2526
        %v2528 = vperm.slane %v2520, %v2527
        %v2529 = vrot.slane %v2516, 4
        %v2530 = vsel %vm1439, %v2529, %v2510
        %v2531 = vrot.slane %v2510, 4
        %v2532 = vsel %vm1439, %v2516, %v2531
        %v2534 = vunpack.c.l.s4 1934713408
        %v2535 = vunpack.c.0.s8 %v2534
        %v2536 = vperm.slane %v2530, %v2535
        %v2538 = vunpack.c.l.s4 1934713408
        %v2539 = vunpack.c.0.s8 %v2538
        %v2540 = vperm.slane %v2532, %v2539
        %v2541 = vrot.slane %v2536, 4
        %v2542 = vsel %vm1439, %v2541, %v2524
        %v2543 = vrot.slane %v2524, 4
        %v2544 = vsel %vm1439, %v2536, %v2543
        %v2545 = vrot.slane %v2540, 4
        %v2546 = vsel %vm1439, %v2545, %v2528
        %v2547 = vrot.slane %v2528, 4
        %v2548 = vsel %vm1439, %v2540, %v2547
        %v2549 = vsel %vm1439, %v2265, %v2246
        %v2551 = vunpack.c.l.s4 1983009808
        %v2552 = vunpack.c.0.s8 %v2551
        %v2553 = vperm.slane %v2549, %v2552
        %v2554 = vrot.slane %v2266, 4
        %v2555 = vsel %vm1439, %v2554, %v2264
        %v2557 = vunpack.c.l.s4 1983009808
        %v2558 = vunpack.c.0.s8 %v2557
        %v2559 = vperm.slane %v2555, %v2558
        %v2560 = vsel %vm1439, %v2269, %v2258
        %v2562 = vunpack.c.l.s4 1983009808
        %v2563 = vunpack.c.0.s8 %v2562
        %v2564 = vperm.slane %v2560, %v2563
        %v2565 = vrot.slane %v2270, 4
        %v2566 = vsel %vm1439, %v2565, %v2268
        %v2568 = vunpack.c.l.s4 1983009808
        %v2569 = vunpack.c.0.s8 %v2568
        %v2570 = vperm.slane %v2566, %v2569
        %v2571 = vrot.slane %v2559, 4
        %v2572 = vsel %vm1439, %v2571, %v2553
        %v2573 = vrot.slane %v2553, 4
        %v2574 = vsel %vm1439, %v2559, %v2573
        %v2576 = vunpack.c.l.s4 1934713408
        %v2577 = vunpack.c.0.s8 %v2576
        %v2578 = vperm.slane %v2572, %v2577
        %v2580 = vunpack.c.l.s4 1934713408
        %v2581 = vunpack.c.0.s8 %v2580
        %v2582 = vperm.slane %v2574, %v2581
        %v2583 = vrot.slane %v2570, 4
        %v2584 = vsel %vm1439, %v2583, %v2564
        %v2585 = vrot.slane %v2564, 4
        %v2586 = vsel %vm1439, %v2570, %v2585
        %v2588 = vunpack.c.l.s4 1934713408
        %v2589 = vunpack.c.0.s8 %v2588
        %v2590 = vperm.slane %v2584, %v2589
        %v2592 = vunpack.c.l.s4 1934713408
        %v2593 = vunpack.c.0.s8 %v2592
        %v2594 = vperm.slane %v2586, %v2593
        %v2595 = vrot.slane %v2590, 4
        %v2596 = vsel %vm1439, %v2595, %v2578
        %v2597 = vrot.slane %v2578, 4
        %v2598 = vsel %vm1439, %v2590, %v2597
        %v2599 = vrot.slane %v2594, 4
        %v2600 = vsel %vm1439, %v2599, %v2582
        %v2601 = vrot.slane %v2582, 4
        %v2602 = vsel %vm1439, %v2594, %v2601
        %v2603 = vsel %vm1439, %v2321, %v2302
        %v2605 = vunpack.c.l.s4 1983009808
        %v2606 = vunpack.c.0.s8 %v2605
        %v2607 = vperm.slane %v2603, %v2606
        %v2608 = vrot.slane %v2322, 4
        %v2609 = vsel %vm1439, %v2608, %v2320
        %v2611 = vunpack.c.l.s4 1983009808
        %v2612 = vunpack.c.0.s8 %v2611
        %v2613 = vperm.slane %v2609, %v2612
        %v2614 = vsel %vm1439, %v2325, %v2314
        %v2616 = vunpack.c.l.s4 1983009808
        %v2617 = vunpack.c.0.s8 %v2616
        %v2618 = vperm.slane %v2614, %v2617
        %v2619 = vrot.slane %v2326, 4
        %v2620 = vsel %vm1439, %v2619, %v2324
        %v2622 = vunpack.c.l.s4 1983009808
        %v2623 = vunpack.c.0.s8 %v2622
        %v2624 = vperm.slane %v2620, %v2623
        %v2625 = vrot.slane %v2613, 4
        %v2626 = vsel %vm1439, %v2625, %v2607
        %v2627 = vrot.slane %v2607, 4
        %v2628 = vsel %vm1439, %v2613, %v2627
        %v2630 = vunpack.c.l.s4 1934713408
        %v2631 = vunpack.c.0.s8 %v2630
        %v2632 = vperm.slane %v2626, %v2631
        %v2634 = vunpack.c.l.s4 1934713408
        %v2635 = vunpack.c.0.s8 %v2634
        %v2636 = vperm.slane %v2628, %v2635
        %v2637 = vrot.slane %v2624, 4
        %v2638 = vsel %vm1439, %v2637, %v2618
        %v2639 = vrot.slane %v2618, 4
        %v2640 = vsel %vm1439, %v2624, %v2639
        %v2642 = vunpack.c.l.s4 1934713408
        %v2643 = vunpack.c.0.s8 %v2642
        %v2644 = vperm.slane %v2638, %v2643
        %v2646 = vunpack.c.l.s4 1934713408
        %v2647 = vunpack.c.0.s8 %v2646
        %v2648 = vperm.slane %v2640, %v2647
        %v2649 = vrot.slane %v2644, 4
        %v2650 = vsel %vm1439, %v2649, %v2632
        %v2651 = vrot.slane %v2632, 4
        %v2652 = vsel %vm1439, %v2644, %v2651
        %v2653 = vrot.slane %v2648, 4
        %v2654 = vsel %vm1439, %v2653, %v2636
        %v2655 = vrot.slane %v2636, 4
        %v2656 = vsel %vm1439, %v2648, %v2655
        %v2657 = vsel %vm1439, %v2377, %v2358
        %v2659 = vunpack.c.l.s4 1983009808
        %v2660 = vunpack.c.0.s8 %v2659
        %v2661 = vperm.slane %v2657, %v2660
        %v2662 = vrot.slane %v2378, 4
        %v2663 = vsel %vm1439, %v2662, %v2376
        %v2665 = vunpack.c.l.s4 1983009808
        %v2666 = vunpack.c.0.s8 %v2665
        %v2667 = vperm.slane %v2663, %v2666
        %v2668 = vsel %vm1439, %v2381, %v2370
        %v2670 = vunpack.c.l.s4 1983009808
        %v2671 = vunpack.c.0.s8 %v2670
        %v2672 = vperm.slane %v2668, %v2671
        %v2673 = vrot.slane %v2382, 4
        %v2674 = vsel %vm1439, %v2673, %v2380
        %v2676 = vunpack.c.l.s4 1983009808
        %v2677 = vunpack.c.0.s8 %v2676
        %v2678 = vperm.slane %v2674, %v2677
        %v2679 = vrot.slane %v2667, 4
        %v2680 = vsel %vm1439, %v2679, %v2661
        %v2681 = vrot.slane %v2661, 4
        %v2682 = vsel %vm1439, %v2667, %v2681
        %v2684 = vunpack.c.l.s4 1934713408
        %v2685 = vunpack.c.0.s8 %v2684
        %v2686 = vperm.slane %v2680, %v2685
        %v2688 = vunpack.c.l.s4 1934713408
        %v2689 = vunpack.c.0.s8 %v2688
        %v2690 = vperm.slane %v2682, %v2689
        %v2691 = vrot.slane %v2678, 4
        %v2692 = vsel %vm1439, %v2691, %v2672
        %v2693 = vrot.slane %v2672, 4
        %v2694 = vsel %vm1439, %v2678, %v2693
        %v2696 = vunpack.c.l.s4 1934713408
        %v2697 = vunpack.c.0.s8 %v2696
        %v2698 = vperm.slane %v2692, %v2697
        %v2700 = vunpack.c.l.s4 1934713408
        %v2701 = vunpack.c.0.s8 %v2700
        %v2702 = vperm.slane %v2694, %v2701
        %v2703 = vrot.slane %v2698, 4
        %v2704 = vsel %vm1439, %v2703, %v2686
        %v2705 = vrot.slane %v2686, 4
        %v2706 = vsel %vm1439, %v2698, %v2705
        %v2707 = vrot.slane %v2702, 4
        %v2708 = vsel %vm1439, %v2707, %v2690
        %v2709 = vrot.slane %v2690, 4
        %v2710 = vsel %vm1439, %v2702, %v2709
        %v2711 = vsel %vm1439, %v2433, %v2414
        %v2713 = vunpack.c.l.s4 1983009808
        %v2714 = vunpack.c.0.s8 %v2713
        %v2715 = vperm.slane %v2711, %v2714
        %v2716 = vrot.slane %v2434, 4
        %v2717 = vsel %vm1439, %v2716, %v2432
        %v2719 = vunpack.c.l.s4 1983009808
        %v2720 = vunpack.c.0.s8 %v2719
        %v2721 = vperm.slane %v2717, %v2720
        %v2722 = vsel %vm1439, %v2437, %v2426
        %v2724 = vunpack.c.l.s4 1983009808
        %v2725 = vunpack.c.0.s8 %v2724
        %v2726 = vperm.slane %v2722, %v2725
        %v2727 = vrot.slane %v2438, 4
        %v2728 = vsel %vm1439, %v2727, %v2436
        %v2730 = vunpack.c.l.s4 1983009808
        %v2731 = vunpack.c.0.s8 %v2730
        %v2732 = vperm.slane %v2728, %v2731
        %v2733 = vrot.slane %v2721, 4
        %v2734 = vsel %vm1439, %v2733, %v2715
        %v2735 = vrot.slane %v2715, 4
        %v2736 = vsel %vm1439, %v2721, %v2735
        %v2738 = vunpack.c.l.s4 1934713408
        %v2739 = vunpack.c.0.s8 %v2738
        %v2740 = vperm.slane %v2734, %v2739
        %v2742 = vunpack.c.l.s4 1934713408
        %v2743 = vunpack.c.0.s8 %v2742
        %v2744 = vperm.slane %v2736, %v2743
        %v2745 = vrot.slane %v2732, 4
        %v2746 = vsel %vm1439, %v2745, %v2726
        %v2747 = vrot.slane %v2726, 4
        %v2748 = vsel %vm1439, %v2732, %v2747
        %v2750 = vunpack.c.l.s4 1934713408
        %v2751 = vunpack.c.0.s8 %v2750
        %v2752 = vperm.slane %v2746, %v2751
        %v2754 = vunpack.c.l.s4 1934713408
        %v2755 = vunpack.c.0.s8 %v2754
        %v2756 = vperm.slane %v2748, %v2755
        %v2757 = vrot.slane %v2752, 4
        %v2758 = vsel %vm1439, %v2757, %v2740
        %v2759 = vrot.slane %v2740, 4
        %v2760 = vsel %vm1439, %v2752, %v2759
        %v2761 = vrot.slane %v2756, 4
        %v2762 = vsel %vm1439, %v2761, %v2744
        %v2763 = vrot.slane %v2744, 4
        %v2764 = vsel %vm1439, %v2756, %v2763
        %v2765 = vsel %vm1439, %v2489, %v2470
        %v2767 = vunpack.c.l.s4 1983009808
        %v2768 = vunpack.c.0.s8 %v2767
        %v2769 = vperm.slane %v2765, %v2768
        %v2770 = vrot.slane %v2490, 4
        %v2771 = vsel %vm1439, %v2770, %v2488
        %v2773 = vunpack.c.l.s4 1983009808
        %v2774 = vunpack.c.0.s8 %v2773
        %v2775 = vperm.slane %v2771, %v2774
        %v2776 = vsel %vm1439, %v2493, %v2482
        %v2778 = vunpack.c.l.s4 1983009808
        %v2779 = vunpack.c.0.s8 %v2778
        %v2780 = vperm.slane %v2776, %v2779
        %v2781 = vrot.slane %v2494, 4
        %v2782 = vsel %vm1439, %v2781, %v2492
        %v2784 = vunpack.c.l.s4 1983009808
        %v2785 = vunpack.c.0.s8 %v2784
        %v2786 = vperm.slane %v2782, %v2785
        %v2787 = vrot.slane %v2775, 4
        %v2788 = vsel %vm1439, %v2787, %v2769
        %v2789 = vrot.slane %v2769, 4
        %v2790 = vsel %vm1439, %v2775, %v2789
        %v2792 = vunpack.c.l.s4 1934713408
        %v2793 = vunpack.c.0.s8 %v2792
        %v2794 = vperm.slane %v2788, %v2793
        %v2796 = vunpack.c.l.s4 1934713408
        %v2797 = vunpack.c.0.s8 %v2796
        %v2798 = vperm.slane %v2790, %v2797
        %v2799 = vrot.slane %v2786, 4
        %v2800 = vsel %vm1439, %v2799, %v2780
        %v2801 = vrot.slane %v2780, 4
        %v2802 = vsel %vm1439, %v2786, %v2801
        %v2804 = vunpack.c.l.s4 1934713408
        %v2805 = vunpack.c.0.s8 %v2804
        %v2806 = vperm.slane %v2800, %v2805
        %v2808 = vunpack.c.l.s4 1934713408
        %v2809 = vunpack.c.0.s8 %v2808
        %v2810 = vperm.slane %v2802, %v2809
        %v2811 = vrot.slane %v2806, 4
        %v2812 = vsel %vm1439, %v2811, %v2794
        %v2813 = vrot.slane %v2794, 4
        %v2814 = vsel %vm1439, %v2806, %v2813
        %v2815 = vrot.slane %v2810, 4
        %v2816 = vsel %vm1439, %v2815, %v2798
        %v2817 = vrot.slane %v2798, 4
        %v2818 = vsel %vm1439, %v2810, %v2817
        %2825 = vrot.lane.b32.xlu0 %v1364, 120
        %v2826 = vpop.permute.xlu0 %2825
        %2827 = vrot.lane.b32.xlu0 %v1366, 120
        %v2828 = vpop.permute.xlu0 %2827
        %2829 = vrot.lane.b32.xlu0 %v1369, 120
        %v2830 = vpop.permute.xlu0 %2829
        %2831 = vrot.lane.b32.xlu0 %v1371, 120
        %v2832 = vpop.permute.xlu0 %2831
        %2833 = vrot.lane.b32.xlu0 %v1374, 120
        %v2834 = vpop.permute.xlu0 %2833
        %2835 = vrot.lane.b32.xlu0 %v1376, 120
        %v2836 = vpop.permute.xlu0 %2835
        %2843 = vrot.lane.b32.xlu0 %v1364, 112
        %v2844 = vpop.permute.xlu0 %2843
        %2845 = vrot.lane.b32.xlu0 %v1366, 112
        %v2846 = vpop.permute.xlu0 %2845
        %2847 = vrot.lane.b32.xlu0 %v1369, 112
        %v2848 = vpop.permute.xlu0 %2847
        %2849 = vrot.lane.b32.xlu0 %v1371, 112
        %v2850 = vpop.permute.xlu0 %2849
        %2851 = vrot.lane.b32.xlu0 %v1374, 112
        %v2852 = vpop.permute.xlu0 %2851
        %2853 = vrot.lane.b32.xlu0 %v1376, 112
        %v2854 = vpop.permute.xlu0 %2853
        %2861 = vrot.lane.b32.xlu0 %v1364, 104
        %v2862 = vpop.permute.xlu0 %2861
        %2863 = vrot.lane.b32.xlu0 %v1366, 104
        %v2864 = vpop.permute.xlu0 %2863
        %2865 = vrot.lane.b32.xlu0 %v1369, 104
        %v2866 = vpop.permute.xlu0 %2865
        %2867 = vrot.lane.b32.xlu0 %v1371, 104
        %v2868 = vpop.permute.xlu0 %2867
        %2869 = vrot.lane.b32.xlu0 %v1374, 104
        %v2870 = vpop.permute.xlu0 %2869
        %2871 = vrot.lane.b32.xlu0 %v1376, 104
        %v2872 = vpop.permute.xlu0 %2871
        %v2879 = vrot.slane %v2844, 4
        %v2880 = vsel %vm1439, %v2879, %v1364
        %v2881 = vrot.slane %v1364, 4
        %v2882 = vsel %vm1439, %v2844, %v2881
        %v2884 = vunpack.c.l.s4 1983009808
        %v2885 = vunpack.c.0.s8 %v2884
        %v2886 = vperm.slane %v2880, %v2885
        %v2888 = vunpack.c.l.s4 1983009808
        %v2889 = vunpack.c.0.s8 %v2888
        %v2890 = vperm.slane %v2882, %v2889
        %v2891 = vrot.slane %v2862, 4
        %v2892 = vsel %vm1439, %v2891, %v2826
        %v2893 = vrot.slane %v2826, 4
        %v2894 = vsel %vm1439, %v2862, %v2893
        %v2896 = vunpack.c.l.s4 1983009808
        %v2897 = vunpack.c.0.s8 %v2896
        %v2898 = vperm.slane %v2892, %v2897
        %v2900 = vunpack.c.l.s4 1983009808
        %v2901 = vunpack.c.0.s8 %v2900
        %v2902 = vperm.slane %v2894, %v2901
        %v2903 = vrot.slane %v2898, 4
        %v2904 = vsel %vm1439, %v2903, %v2886
        %v2905 = vrot.slane %v2886, 4
        %v2906 = vsel %vm1439, %v2898, %v2905
        %v2908 = vunpack.c.l.s4 1934713408
        %v2909 = vunpack.c.0.s8 %v2908
        %v2910 = vperm.slane %v2904, %v2909
        %v2912 = vunpack.c.l.s4 1934713408
        %v2913 = vunpack.c.0.s8 %v2912
        %v2914 = vperm.slane %v2906, %v2913
        %v2915 = vrot.slane %v2902, 4
        %v2916 = vsel %vm1439, %v2915, %v2890
        %v2917 = vrot.slane %v2890, 4
        %v2918 = vsel %vm1439, %v2902, %v2917
        %v2920 = vunpack.c.l.s4 1934713408
        %v2921 = vunpack.c.0.s8 %v2920
        %v2922 = vperm.slane %v2916, %v2921
        %v2924 = vunpack.c.l.s4 1934713408
        %v2925 = vunpack.c.0.s8 %v2924
        %v2926 = vperm.slane %v2918, %v2925
        %v2927 = vrot.slane %v2910, 4
        %v2928 = vsel %vm1439, 0.0, %v2927
        %v2929 = vrot.slane %v2914, 4
        %v2930 = vsel %vm1439, 0.0, %v2929
        %v2931 = vrot.slane %v2922, 4
        %v2932 = vsel %vm1439, 0.0, %v2931
        %v2933 = vrot.slane %v2926, 4
        %v2934 = vsel %vm1439, 0.0, %v2933
        %v2935 = vrot.slane %v2846, 4
        %v2936 = vsel %vm1439, %v2935, %v1366
        %v2937 = vrot.slane %v1366, 4
        %v2938 = vsel %vm1439, %v2846, %v2937
        %v2940 = vunpack.c.l.s4 1983009808
        %v2941 = vunpack.c.0.s8 %v2940
        %v2942 = vperm.slane %v2936, %v2941
        %v2944 = vunpack.c.l.s4 1983009808
        %v2945 = vunpack.c.0.s8 %v2944
        %v2946 = vperm.slane %v2938, %v2945
        %v2947 = vrot.slane %v2864, 4
        %v2948 = vsel %vm1439, %v2947, %v2828
        %v2949 = vrot.slane %v2828, 4
        %v2950 = vsel %vm1439, %v2864, %v2949
        %v2952 = vunpack.c.l.s4 1983009808
        %v2953 = vunpack.c.0.s8 %v2952
        %v2954 = vperm.slane %v2948, %v2953
        %v2956 = vunpack.c.l.s4 1983009808
        %v2957 = vunpack.c.0.s8 %v2956
        %v2958 = vperm.slane %v2950, %v2957
        %v2959 = vrot.slane %v2954, 4
        %v2960 = vsel %vm1439, %v2959, %v2942
        %v2961 = vrot.slane %v2942, 4
        %v2962 = vsel %vm1439, %v2954, %v2961
        %v2964 = vunpack.c.l.s4 1934713408
        %v2965 = vunpack.c.0.s8 %v2964
        %v2966 = vperm.slane %v2960, %v2965
        %v2968 = vunpack.c.l.s4 1934713408
        %v2969 = vunpack.c.0.s8 %v2968
        %v2970 = vperm.slane %v2962, %v2969
        %v2971 = vrot.slane %v2958, 4
        %v2972 = vsel %vm1439, %v2971, %v2946
        %v2973 = vrot.slane %v2946, 4
        %v2974 = vsel %vm1439, %v2958, %v2973
        %v2976 = vunpack.c.l.s4 1934713408
        %v2977 = vunpack.c.0.s8 %v2976
        %v2978 = vperm.slane %v2972, %v2977
        %v2980 = vunpack.c.l.s4 1934713408
        %v2981 = vunpack.c.0.s8 %v2980
        %v2982 = vperm.slane %v2974, %v2981
        %v2983 = vrot.slane %v2966, 4
        %v2984 = vsel %vm1439, 0.0, %v2983
        %v2985 = vrot.slane %v2970, 4
        %v2986 = vsel %vm1439, 0.0, %v2985
        %v2987 = vrot.slane %v2978, 4
        %v2988 = vsel %vm1439, 0.0, %v2987
        %v2989 = vrot.slane %v2982, 4
        %v2990 = vsel %vm1439, 0.0, %v2989
        %v2991 = vrot.slane %v2848, 4
        %v2992 = vsel %vm1439, %v2991, %v1369
        %v2993 = vrot.slane %v1369, 4
        %v2994 = vsel %vm1439, %v2848, %v2993
        %v2996 = vunpack.c.l.s4 1983009808
        %v2997 = vunpack.c.0.s8 %v2996
        %v2998 = vperm.slane %v2992, %v2997
        %v3000 = vunpack.c.l.s4 1983009808
        %v3001 = vunpack.c.0.s8 %v3000
        %v3002 = vperm.slane %v2994, %v3001
        %v3003 = vrot.slane %v2866, 4
        %v3004 = vsel %vm1439, %v3003, %v2830
        %v3005 = vrot.slane %v2830, 4
        %v3006 = vsel %vm1439, %v2866, %v3005
        %v3008 = vunpack.c.l.s4 1983009808
        %v3009 = vunpack.c.0.s8 %v3008
        %v3010 = vperm.slane %v3004, %v3009
        %v3012 = vunpack.c.l.s4 1983009808
        %v3013 = vunpack.c.0.s8 %v3012
        %v3014 = vperm.slane %v3006, %v3013
        %v3015 = vrot.slane %v3010, 4
        %v3016 = vsel %vm1439, %v3015, %v2998
        %v3017 = vrot.slane %v2998, 4
        %v3018 = vsel %vm1439, %v3010, %v3017
        %v3020 = vunpack.c.l.s4 1934713408
        %v3021 = vunpack.c.0.s8 %v3020
        %v3022 = vperm.slane %v3016, %v3021
        %v3024 = vunpack.c.l.s4 1934713408
        %v3025 = vunpack.c.0.s8 %v3024
        %v3026 = vperm.slane %v3018, %v3025
        %v3027 = vrot.slane %v3014, 4
        %v3028 = vsel %vm1439, %v3027, %v3002
        %v3029 = vrot.slane %v3002, 4
        %v3030 = vsel %vm1439, %v3014, %v3029
        %v3032 = vunpack.c.l.s4 1934713408
        %v3033 = vunpack.c.0.s8 %v3032
        %v3034 = vperm.slane %v3028, %v3033
        %v3036 = vunpack.c.l.s4 1934713408
        %v3037 = vunpack.c.0.s8 %v3036
        %v3038 = vperm.slane %v3030, %v3037
        %v3039 = vrot.slane %v3022, 4
        %v3040 = vsel %vm1439, 0.0, %v3039
        %v3041 = vrot.slane %v3026, 4
        %v3042 = vsel %vm1439, 0.0, %v3041
        %v3043 = vrot.slane %v3034, 4
        %v3044 = vsel %vm1439, 0.0, %v3043
        %v3045 = vrot.slane %v3038, 4
        %v3046 = vsel %vm1439, 0.0, %v3045
        %v3047 = vrot.slane %v2850, 4
        %v3048 = vsel %vm1439, %v3047, %v1371
        %v3049 = vrot.slane %v1371, 4
        %v3050 = vsel %vm1439, %v2850, %v3049
        %v3052 = vunpack.c.l.s4 1983009808
        %v3053 = vunpack.c.0.s8 %v3052
        %v3054 = vperm.slane %v3048, %v3053
        %v3056 = vunpack.c.l.s4 1983009808
        %v3057 = vunpack.c.0.s8 %v3056
        %v3058 = vperm.slane %v3050, %v3057
        %v3059 = vrot.slane %v2868, 4
        %v3060 = vsel %vm1439, %v3059, %v2832
        %v3061 = vrot.slane %v2832, 4
        %v3062 = vsel %vm1439, %v2868, %v3061
        %v3064 = vunpack.c.l.s4 1983009808
        %v3065 = vunpack.c.0.s8 %v3064
        %v3066 = vperm.slane %v3060, %v3065
        %v3068 = vunpack.c.l.s4 1983009808
        %v3069 = vunpack.c.0.s8 %v3068
        %v3070 = vperm.slane %v3062, %v3069
        %v3071 = vrot.slane %v3066, 4
        %v3072 = vsel %vm1439, %v3071, %v3054
        %v3073 = vrot.slane %v3054, 4
        %v3074 = vsel %vm1439, %v3066, %v3073
        %v3076 = vunpack.c.l.s4 1934713408
        %v3077 = vunpack.c.0.s8 %v3076
        %v3078 = vperm.slane %v3072, %v3077
        %v3080 = vunpack.c.l.s4 1934713408
        %v3081 = vunpack.c.0.s8 %v3080
        %v3082 = vperm.slane %v3074, %v3081
        %v3083 = vrot.slane %v3070, 4
        %v3084 = vsel %vm1439, %v3083, %v3058
        %v3085 = vrot.slane %v3058, 4
        %v3086 = vsel %vm1439, %v3070, %v3085
        %v3088 = vunpack.c.l.s4 1934713408
        %v3089 = vunpack.c.0.s8 %v3088
        %v3090 = vperm.slane %v3084, %v3089
        %v3092 = vunpack.c.l.s4 1934713408
        %v3093 = vunpack.c.0.s8 %v3092
        %v3094 = vperm.slane %v3086, %v3093
        %v3095 = vrot.slane %v3078, 4
        %v3096 = vsel %vm1439, 0.0, %v3095
        %v3097 = vrot.slane %v3082, 4
        %v3098 = vsel %vm1439, 0.0, %v3097
        %v3099 = vrot.slane %v3090, 4
        %v3100 = vsel %vm1439, 0.0, %v3099
        %v3101 = vrot.slane %v3094, 4
        %v3102 = vsel %vm1439, 0.0, %v3101
        %v3103 = vrot.slane %v2852, 4
        %v3104 = vsel %vm1439, %v3103, %v1374
        %v3105 = vrot.slane %v1374, 4
        %v3106 = vsel %vm1439, %v2852, %v3105
        %v3108 = vunpack.c.l.s4 1983009808
        %v3109 = vunpack.c.0.s8 %v3108
        %v3110 = vperm.slane %v3104, %v3109
        %v3112 = vunpack.c.l.s4 1983009808
        %v3113 = vunpack.c.0.s8 %v3112
        %v3114 = vperm.slane %v3106, %v3113
        %v3115 = vrot.slane %v2870, 4
        %v3116 = vsel %vm1439, %v3115, %v2834
        %v3117 = vrot.slane %v2834, 4
        %v3118 = vsel %vm1439, %v2870, %v3117
        %v3120 = vunpack.c.l.s4 1983009808
        %v3121 = vunpack.c.0.s8 %v3120
        %v3122 = vperm.slane %v3116, %v3121
        %v3124 = vunpack.c.l.s4 1983009808
        %v3125 = vunpack.c.0.s8 %v3124
        %v3126 = vperm.slane %v3118, %v3125
        %v3127 = vrot.slane %v3122, 4
        %v3128 = vsel %vm1439, %v3127, %v3110
        %v3129 = vrot.slane %v3110, 4
        %v3130 = vsel %vm1439, %v3122, %v3129
        %v3132 = vunpack.c.l.s4 1934713408
        %v3133 = vunpack.c.0.s8 %v3132
        %v3134 = vperm.slane %v3128, %v3133
        %v3136 = vunpack.c.l.s4 1934713408
        %v3137 = vunpack.c.0.s8 %v3136
        %v3138 = vperm.slane %v3130, %v3137
        %v3139 = vrot.slane %v3126, 4
        %v3140 = vsel %vm1439, %v3139, %v3114
        %v3141 = vrot.slane %v3114, 4
        %v3142 = vsel %vm1439, %v3126, %v3141
        %v3144 = vunpack.c.l.s4 1934713408
        %v3145 = vunpack.c.0.s8 %v3144
        %v3146 = vperm.slane %v3140, %v3145
        %v3148 = vunpack.c.l.s4 1934713408
        %v3149 = vunpack.c.0.s8 %v3148
        %v3150 = vperm.slane %v3142, %v3149
        %v3151 = vrot.slane %v3134, 4
        %v3152 = vsel %vm1439, 0.0, %v3151
        %v3153 = vrot.slane %v3138, 4
        %v3154 = vsel %vm1439, 0.0, %v3153
        %v3155 = vrot.slane %v3146, 4
        %v3156 = vsel %vm1439, 0.0, %v3155
        %v3157 = vrot.slane %v3150, 4
        %v3158 = vsel %vm1439, 0.0, %v3157
        %v3159 = vrot.slane %v2854, 4
        %v3160 = vsel %vm1439, %v3159, %v1376
        %v3161 = vrot.slane %v1376, 4
        %v3162 = vsel %vm1439, %v2854, %v3161
        %v3164 = vunpack.c.l.s4 1983009808
        %v3165 = vunpack.c.0.s8 %v3164
        %v3166 = vperm.slane %v3160, %v3165
        %v3168 = vunpack.c.l.s4 1983009808
        %v3169 = vunpack.c.0.s8 %v3168
        %v3170 = vperm.slane %v3162, %v3169
        %v3171 = vrot.slane %v2872, 4
        %v3172 = vsel %vm1439, %v3171, %v2836
        %v3173 = vrot.slane %v2836, 4
        %v3174 = vsel %vm1439, %v2872, %v3173
        %v3176 = vunpack.c.l.s4 1983009808
        %v3177 = vunpack.c.0.s8 %v3176
        %v3178 = vperm.slane %v3172, %v3177
        %v3180 = vunpack.c.l.s4 1983009808
        %v3181 = vunpack.c.0.s8 %v3180
        %v3182 = vperm.slane %v3174, %v3181
        %v3183 = vrot.slane %v3178, 4
        %v3184 = vsel %vm1439, %v3183, %v3166
        %v3185 = vrot.slane %v3166, 4
        %v3186 = vsel %vm1439, %v3178, %v3185
        %v3188 = vunpack.c.l.s4 1934713408
        %v3189 = vunpack.c.0.s8 %v3188
        %v3190 = vperm.slane %v3184, %v3189
        %v3192 = vunpack.c.l.s4 1934713408
        %v3193 = vunpack.c.0.s8 %v3192
        %v3194 = vperm.slane %v3186, %v3193
        %v3195 = vrot.slane %v3182, 4
        %v3196 = vsel %vm1439, %v3195, %v3170
        %v3197 = vrot.slane %v3170, 4
        %v3198 = vsel %vm1439, %v3182, %v3197
        %v3200 = vunpack.c.l.s4 1934713408
        %v3201 = vunpack.c.0.s8 %v3200
        %v3202 = vperm.slane %v3196, %v3201
        %v3204 = vunpack.c.l.s4 1934713408
        %v3205 = vunpack.c.0.s8 %v3204
        %v3206 = vperm.slane %v3198, %v3205
        %v3207 = vrot.slane %v3190, 4
        %v3208 = vsel %vm1439, 0.0, %v3207
        %v3209 = vrot.slane %v3194, 4
        %v3210 = vsel %vm1439, 0.0, %v3209
        %v3211 = vrot.slane %v3202, 4
        %v3212 = vsel %vm1439, 0.0, %v3211
        %v3213 = vrot.slane %v3206, 4
        %v3214 = vsel %vm1439, 0.0, %v3213
        %v3215 = vsel %vm1439, %v2929, %v2910
        %v3217 = vunpack.c.l.s4 1983009808
        %v3218 = vunpack.c.0.s8 %v3217
        %v3219 = vperm.slane %v3215, %v3218
        %v3220 = vrot.slane %v2930, 4
        %v3221 = vsel %vm1439, %v3220, %v2928
        %v3223 = vunpack.c.l.s4 1983009808
        %v3224 = vunpack.c.0.s8 %v3223
        %v3225 = vperm.slane %v3221, %v3224
        %v3226 = vsel %vm1439, %v2933, %v2922
        %v3228 = vunpack.c.l.s4 1983009808
        %v3229 = vunpack.c.0.s8 %v3228
        %v3230 = vperm.slane %v3226, %v3229
        %v3231 = vrot.slane %v2934, 4
        %v3232 = vsel %vm1439, %v3231, %v2932
        %v3234 = vunpack.c.l.s4 1983009808
        %v3235 = vunpack.c.0.s8 %v3234
        %v3236 = vperm.slane %v3232, %v3235
        %v3237 = vrot.slane %v3225, 4
        %v3238 = vsel %vm1439, %v3237, %v3219
        %v3239 = vrot.slane %v3219, 4
        %v3240 = vsel %vm1439, %v3225, %v3239
        %v3242 = vunpack.c.l.s4 1934713408
        %v3243 = vunpack.c.0.s8 %v3242
        %v3244 = vperm.slane %v3238, %v3243
        %v3246 = vunpack.c.l.s4 1934713408
        %v3247 = vunpack.c.0.s8 %v3246
        %v3248 = vperm.slane %v3240, %v3247
        %v3249 = vrot.slane %v3236, 4
        %v3250 = vsel %vm1439, %v3249, %v3230
        %v3251 = vrot.slane %v3230, 4
        %v3252 = vsel %vm1439, %v3236, %v3251
        %v3254 = vunpack.c.l.s4 1934713408
        %v3255 = vunpack.c.0.s8 %v3254
        %v3256 = vperm.slane %v3250, %v3255
        %v3258 = vunpack.c.l.s4 1934713408
        %v3259 = vunpack.c.0.s8 %v3258
        %v3260 = vperm.slane %v3252, %v3259
        %v3261 = vrot.slane %v3256, 4
        %v3262 = vsel %vm1439, %v3261, %v3244
        %v3263 = vrot.slane %v3244, 4
        %v3264 = vsel %vm1439, %v3256, %v3263
        %v3265 = vrot.slane %v3260, 4
        %v3266 = vsel %vm1439, %v3265, %v3248
        %v3267 = vrot.slane %v3248, 4
        %v3268 = vsel %vm1439, %v3260, %v3267
        %v3269 = vsel %vm1439, %v2985, %v2966
        %v3271 = vunpack.c.l.s4 1983009808
        %v3272 = vunpack.c.0.s8 %v3271
        %v3273 = vperm.slane %v3269, %v3272
        %v3274 = vrot.slane %v2986, 4
        %v3275 = vsel %vm1439, %v3274, %v2984
        %v3277 = vunpack.c.l.s4 1983009808
        %v3278 = vunpack.c.0.s8 %v3277
        %v3279 = vperm.slane %v3275, %v3278
        %v3280 = vsel %vm1439, %v2989, %v2978
        %v3282 = vunpack.c.l.s4 1983009808
        %v3283 = vunpack.c.0.s8 %v3282
        %v3284 = vperm.slane %v3280, %v3283
        %v3285 = vrot.slane %v2990, 4
        %v3286 = vsel %vm1439, %v3285, %v2988
        %v3288 = vunpack.c.l.s4 1983009808
        %v3289 = vunpack.c.0.s8 %v3288
        %v3290 = vperm.slane %v3286, %v3289
        %v3291 = vrot.slane %v3279, 4
        %v3292 = vsel %vm1439, %v3291, %v3273
        %v3293 = vrot.slane %v3273, 4
        %v3294 = vsel %vm1439, %v3279, %v3293
        %v3296 = vunpack.c.l.s4 1934713408
        %v3297 = vunpack.c.0.s8 %v3296
        %v3298 = vperm.slane %v3292, %v3297
        %v3300 = vunpack.c.l.s4 1934713408
        %v3301 = vunpack.c.0.s8 %v3300
        %v3302 = vperm.slane %v3294, %v3301
        %v3303 = vrot.slane %v3290, 4
        %v3304 = vsel %vm1439, %v3303, %v3284
        %v3305 = vrot.slane %v3284, 4
        %v3306 = vsel %vm1439, %v3290, %v3305
        %v3308 = vunpack.c.l.s4 1934713408
        %v3309 = vunpack.c.0.s8 %v3308
        %v3310 = vperm.slane %v3304, %v3309
        %v3312 = vunpack.c.l.s4 1934713408
        %v3313 = vunpack.c.0.s8 %v3312
        %v3314 = vperm.slane %v3306, %v3313
        %v3315 = vrot.slane %v3310, 4
        %v3316 = vsel %vm1439, %v3315, %v3298
        %v3317 = vrot.slane %v3298, 4
        %v3318 = vsel %vm1439, %v3310, %v3317
        %v3319 = vrot.slane %v3314, 4
        %v3320 = vsel %vm1439, %v3319, %v3302
        %v3321 = vrot.slane %v3302, 4
        %v3322 = vsel %vm1439, %v3314, %v3321
        %v3323 = vsel %vm1439, %v3041, %v3022
        %v3325 = vunpack.c.l.s4 1983009808
        %v3326 = vunpack.c.0.s8 %v3325
        %v3327 = vperm.slane %v3323, %v3326
        %v3328 = vrot.slane %v3042, 4
        %v3329 = vsel %vm1439, %v3328, %v3040
        %v3331 = vunpack.c.l.s4 1983009808
        %v3332 = vunpack.c.0.s8 %v3331
        %v3333 = vperm.slane %v3329, %v3332
        %v3334 = vsel %vm1439, %v3045, %v3034
        %v3336 = vunpack.c.l.s4 1983009808
        %v3337 = vunpack.c.0.s8 %v3336
        %v3338 = vperm.slane %v3334, %v3337
        %v3339 = vrot.slane %v3046, 4
        %v3340 = vsel %vm1439, %v3339, %v3044
        %v3342 = vunpack.c.l.s4 1983009808
        %v3343 = vunpack.c.0.s8 %v3342
        %v3344 = vperm.slane %v3340, %v3343
        %v3345 = vrot.slane %v3333, 4
        %v3346 = vsel %vm1439, %v3345, %v3327
        %v3347 = vrot.slane %v3327, 4
        %v3348 = vsel %vm1439, %v3333, %v3347
        %v3350 = vunpack.c.l.s4 1934713408
        %v3351 = vunpack.c.0.s8 %v3350
        %v3352 = vperm.slane %v3346, %v3351
        %v3354 = vunpack.c.l.s4 1934713408
        %v3355 = vunpack.c.0.s8 %v3354
        %v3356 = vperm.slane %v3348, %v3355
        %v3357 = vrot.slane %v3344, 4
        %v3358 = vsel %vm1439, %v3357, %v3338
        %v3359 = vrot.slane %v3338, 4
        %v3360 = vsel %vm1439, %v3344, %v3359
        %v3362 = vunpack.c.l.s4 1934713408
        %v3363 = vunpack.c.0.s8 %v3362
        %v3364 = vperm.slane %v3358, %v3363
        %v3366 = vunpack.c.l.s4 1934713408
        %v3367 = vunpack.c.0.s8 %v3366
        %v3368 = vperm.slane %v3360, %v3367
        %v3369 = vrot.slane %v3364, 4
        %v3370 = vsel %vm1439, %v3369, %v3352
        %v3371 = vrot.slane %v3352, 4
        %v3372 = vsel %vm1439, %v3364, %v3371
        %v3373 = vrot.slane %v3368, 4
        %v3374 = vsel %vm1439, %v3373, %v3356
        %v3375 = vrot.slane %v3356, 4
        %v3376 = vsel %vm1439, %v3368, %v3375
        %v3377 = vsel %vm1439, %v3097, %v3078
        %v3379 = vunpack.c.l.s4 1983009808
        %v3380 = vunpack.c.0.s8 %v3379
        %v3381 = vperm.slane %v3377, %v3380
        %v3382 = vrot.slane %v3098, 4
        %v3383 = vsel %vm1439, %v3382, %v3096
        %v3385 = vunpack.c.l.s4 1983009808
        %v3386 = vunpack.c.0.s8 %v3385
        %v3387 = vperm.slane %v3383, %v3386
        %v3388 = vsel %vm1439, %v3101, %v3090
        %v3390 = vunpack.c.l.s4 1983009808
        %v3391 = vunpack.c.0.s8 %v3390
        %v3392 = vperm.slane %v3388, %v3391
        %v3393 = vrot.slane %v3102, 4
        %v3394 = vsel %vm1439, %v3393, %v3100
        %v3396 = vunpack.c.l.s4 1983009808
        %v3397 = vunpack.c.0.s8 %v3396
        %v3398 = vperm.slane %v3394, %v3397
        %v3399 = vrot.slane %v3387, 4
        %v3400 = vsel %vm1439, %v3399, %v3381
        %v3401 = vrot.slane %v3381, 4
        %v3402 = vsel %vm1439, %v3387, %v3401
        %v3404 = vunpack.c.l.s4 1934713408
        %v3405 = vunpack.c.0.s8 %v3404
        %v3406 = vperm.slane %v3400, %v3405
        %v3408 = vunpack.c.l.s4 1934713408
        %v3409 = vunpack.c.0.s8 %v3408
        %v3410 = vperm.slane %v3402, %v3409
        %v3411 = vrot.slane %v3398, 4
        %v3412 = vsel %vm1439, %v3411, %v3392
        %v3413 = vrot.slane %v3392, 4
        %v3414 = vsel %vm1439, %v3398, %v3413
        %v3416 = vunpack.c.l.s4 1934713408
        %v3417 = vunpack.c.0.s8 %v3416
        %v3418 = vperm.slane %v3412, %v3417
        %v3420 = vunpack.c.l.s4 1934713408
        %v3421 = vunpack.c.0.s8 %v3420
        %v3422 = vperm.slane %v3414, %v3421
        %v3423 = vrot.slane %v3418, 4
        %v3424 = vsel %vm1439, %v3423, %v3406
        %v3425 = vrot.slane %v3406, 4
        %v3426 = vsel %vm1439, %v3418, %v3425
        %v3427 = vrot.slane %v3422, 4
        %v3428 = vsel %vm1439, %v3427, %v3410
        %v3429 = vrot.slane %v3410, 4
        %v3430 = vsel %vm1439, %v3422, %v3429
        %v3431 = vsel %vm1439, %v3153, %v3134
        %v3433 = vunpack.c.l.s4 1983009808
        %v3434 = vunpack.c.0.s8 %v3433
        %v3435 = vperm.slane %v3431, %v3434
        %v3436 = vrot.slane %v3154, 4
        %v3437 = vsel %vm1439, %v3436, %v3152
        %v3439 = vunpack.c.l.s4 1983009808
        %v3440 = vunpack.c.0.s8 %v3439
        %v3441 = vperm.slane %v3437, %v3440
        %v3442 = vsel %vm1439, %v3157, %v3146
        %v3444 = vunpack.c.l.s4 1983009808
        %v3445 = vunpack.c.0.s8 %v3444
        %v3446 = vperm.slane %v3442, %v3445
        %v3447 = vrot.slane %v3158, 4
        %v3448 = vsel %vm1439, %v3447, %v3156
        %v3450 = vunpack.c.l.s4 1983009808
        %v3451 = vunpack.c.0.s8 %v3450
        %v3452 = vperm.slane %v3448, %v3451
        %v3453 = vrot.slane %v3441, 4
        %v3454 = vsel %vm1439, %v3453, %v3435
        %v3455 = vrot.slane %v3435, 4
        %v3456 = vsel %vm1439, %v3441, %v3455
        %v3458 = vunpack.c.l.s4 1934713408
        %v3459 = vunpack.c.0.s8 %v3458
        %v3460 = vperm.slane %v3454, %v3459
        %v3462 = vunpack.c.l.s4 1934713408
        %v3463 = vunpack.c.0.s8 %v3462
        %v3464 = vperm.slane %v3456, %v3463
        %v3465 = vrot.slane %v3452, 4
        %v3466 = vsel %vm1439, %v3465, %v3446
        %v3467 = vrot.slane %v3446, 4
        %v3468 = vsel %vm1439, %v3452, %v3467
        %v3470 = vunpack.c.l.s4 1934713408
        %v3471 = vunpack.c.0.s8 %v3470
        %v3472 = vperm.slane %v3466, %v3471
        %v3474 = vunpack.c.l.s4 1934713408
        %v3475 = vunpack.c.0.s8 %v3474
        %v3476 = vperm.slane %v3468, %v3475
        %v3477 = vrot.slane %v3472, 4
        %v3478 = vsel %vm1439, %v3477, %v3460
        %v3479 = vrot.slane %v3460, 4
        %v3480 = vsel %vm1439, %v3472, %v3479
        %v3481 = vrot.slane %v3476, 4
        %v3482 = vsel %vm1439, %v3481, %v3464
        %v3483 = vrot.slane %v3464, 4
        %v3484 = vsel %vm1439, %v3476, %v3483
        %v3485 = vsel %vm1439, %v3209, %v3190
        %v3487 = vunpack.c.l.s4 1983009808
        %v3488 = vunpack.c.0.s8 %v3487
        %v3489 = vperm.slane %v3485, %v3488
        %v3490 = vrot.slane %v3210, 4
        %v3491 = vsel %vm1439, %v3490, %v3208
        %v3493 = vunpack.c.l.s4 1983009808
        %v3494 = vunpack.c.0.s8 %v3493
        %v3495 = vperm.slane %v3491, %v3494
        %v3496 = vsel %vm1439, %v3213, %v3202
        %v3498 = vunpack.c.l.s4 1983009808
        %v3499 = vunpack.c.0.s8 %v3498
        %v3500 = vperm.slane %v3496, %v3499
        %v3501 = vrot.slane %v3214, 4
        %v3502 = vsel %vm1439, %v3501, %v3212
        %v3504 = vunpack.c.l.s4 1983009808
        %v3505 = vunpack.c.0.s8 %v3504
        %v3506 = vperm.slane %v3502, %v3505
        %v3507 = vrot.slane %v3495, 4
        %v3508 = vsel %vm1439, %v3507, %v3489
        %v3509 = vrot.slane %v3489, 4
        %v3510 = vsel %vm1439, %v3495, %v3509
        %v3512 = vunpack.c.l.s4 1934713408
        %v3513 = vunpack.c.0.s8 %v3512
        %v3514 = vperm.slane %v3508, %v3513
        %v3516 = vunpack.c.l.s4 1934713408
        %v3517 = vunpack.c.0.s8 %v3516
        %v3518 = vperm.slane %v3510, %v3517
        %v3519 = vrot.slane %v3506, 4
        %v3520 = vsel %vm1439, %v3519, %v3500
        %v3521 = vrot.slane %v3500, 4
        %v3522 = vsel %vm1439, %v3506, %v3521
        %v3524 = vunpack.c.l.s4 1934713408
        %v3525 = vunpack.c.0.s8 %v3524
        %v3526 = vperm.slane %v3520, %v3525
        %v3528 = vunpack.c.l.s4 1934713408
        %v3529 = vunpack.c.0.s8 %v3528
        %v3530 = vperm.slane %v3522, %v3529
        %v3531 = vrot.slane %v3526, 4
        %v3532 = vsel %vm1439, %v3531, %v3514
        %v3533 = vrot.slane %v3514, 4
        %v3534 = vsel %vm1439, %v3526, %v3533
        %v3535 = vrot.slane %v3530, 4
        %v3536 = vsel %vm1439, %v3535, %v3518
        %v3537 = vrot.slane %v3518, 4
        %v3538 = vsel %vm1439, %v3530, %v3537
        %v3539 = vpack.c.bf16 %v1822, %v1822
        %v3540 = vpack.c.bf16 %v1876, %v1876
        %v3541 = vpack.c.bf16 %v1930, %v1930
        %v3542 = vpack.c.bf16 %v1824, %v1824
        %v3543 = vpack.c.bf16 %v1878, %v1878
        %v3544 = vpack.c.bf16 %v1932, %v1932
        %v3545 = vpack.c.bf16 %v1826, %v1826
        %v3546 = vpack.c.bf16 %v1880, %v1880
        %v3547 = vpack.c.bf16 %v1934, %v1934
        %v3548 = vpack.c.bf16 %v1828, %v1828
        %v3549 = vpack.c.bf16 %v1882, %v1882
        %v3550 = vpack.c.bf16 %v1936, %v1936
        %v3551 = vpack.c.bf16 %v1984, %v1984
        %v3552 = vpack.c.bf16 %v2038, %v2038
        %v3553 = vpack.c.bf16 %v2092, %v2092
        %v3554 = vpack.c.bf16 %v1986, %v1986
        %v3555 = vpack.c.bf16 %v2040, %v2040
        %v3556 = vpack.c.bf16 %v2094, %v2094
        %v3557 = vpack.c.bf16 %v1988, %v1988
        %v3558 = vpack.c.bf16 %v2042, %v2042
        %v3559 = vpack.c.bf16 %v2096, %v2096
        %v3560 = vpack.c.bf16 %v1990, %v1990
        %v3561 = vpack.c.bf16 %v2044, %v2044
        %v3562 = vpack.c.bf16 %v2098, %v2098
        %v3563 = vpack.c.bf16 %v2542, %v2542
        %v3564 = vpack.c.bf16 %v2596, %v2596
        %v3565 = vpack.c.bf16 %v2650, %v2650
        %v3566 = vpack.c.bf16 %v2544, %v2544
        %v3567 = vpack.c.bf16 %v2598, %v2598
        %v3568 = vpack.c.bf16 %v2652, %v2652
        %v3569 = vpack.c.bf16 %v2546, %v2546
        %v3570 = vpack.c.bf16 %v2600, %v2600
        %v3571 = vpack.c.bf16 %v2654, %v2654
        %v3572 = vpack.c.bf16 %v2548, %v2548
        %v3573 = vpack.c.bf16 %v2602, %v2602
        %v3574 = vpack.c.bf16 %v2656, %v2656
        %v3575 = vpack.c.bf16 %v2704, %v2704
        %v3576 = vpack.c.bf16 %v2758, %v2758
        %v3577 = vpack.c.bf16 %v2812, %v2812
        %v3578 = vpack.c.bf16 %v2706, %v2706
        %v3579 = vpack.c.bf16 %v2760, %v2760
        %v3580 = vpack.c.bf16 %v2814, %v2814
        %v3581 = vpack.c.bf16 %v2708, %v2708
        %v3582 = vpack.c.bf16 %v2762, %v2762
        %v3583 = vpack.c.bf16 %v2816, %v2816
        %v3584 = vpack.c.bf16 %v2710, %v2710
        %v3585 = vpack.c.bf16 %v2764, %v2764
        %v3586 = vpack.c.bf16 %v2818, %v2818
        %v3590 = vunpack.c.l.b16 %v3539
        %v3591 = vunpack.c.l.b16 %v3540
        %v3592 = vunpack.c.l.b16 %v3541
        %v3593 = vpack.c.b16 %v3591, %v3590
        %v3594 = vpack.c.b16 %v3592, %v3592
        %v3598 = vunpack.c.l.b16 %v3563
        %v3599 = vunpack.c.l.b16 %v3564
        %v3600 = vunpack.c.l.b16 %v3565
        %v3601 = vpack.c.b16 %v3599, %v3598
        %v3602 = vpack.c.b16 %v3600, %v3600
        %vm3603 = vcmask 64512
        %v3605 = vsel %vm3603, %v3593, 0
        %v3608 = vsel %vm3603, %v3594, 0
        %v3611 = vsel %vm3603, %v3601, 0
        %v3614 = vsel %vm3603, %v3602, 0
        %3616 = vmatpush.bf16.xpose.msra.mxu0 0
        %3617 = vmatpush.bf16.xpose.msra.mxu0 0
        %3618 = vmatpush.bf16.xpose.msra.mxu0 0
        %3619 = vmatpush.bf16.xpose.msra.mxu0 0
        %3620 = vmatpush.bf16.xpose.msra.mxu0 0
        %3621 = vmatpush.bf16.xpose.msra.mxu0 0
        %3622 = vmatpush.bf16.xpose.msra.mxu0 %v3614
        %3623 = vmatpush.bf16.xpose.msra.mxu0 %v3611
        %3624 = vmatmul.bf16.gmra.mxu0 %v3605
        %v3625 = vpop.f32.mrf.mxu0
        %v3626 = vadd.f32 0.0, %v3625
        %v3627 = vpop.f32.mrf.mxu0
        %v3628 = vadd.f32 0.0, %v3627
        %3629 = vmatmul.bf16.gmra.mxu0 %v3608
        %v3630 = vpop.f32.mrf.mxu0
        %v3631 = vadd.f32 0.0, %v3630
        %v3632 = vpop.f32.mrf.mxu0
        %3633 = vdwg.mxu0
        %v3637 = vunpack.c.l.b16 %v3542
        %v3638 = vunpack.c.l.b16 %v3543
        %v3639 = vunpack.c.l.b16 %v3544
        %v3640 = vpack.c.b16 %v3638, %v3637
        %v3641 = vpack.c.b16 %v3639, %v3639
        %v3645 = vunpack.c.l.b16 %v3566
        %v3646 = vunpack.c.l.b16 %v3567
        %v3647 = vunpack.c.l.b16 %v3568
        %v3648 = vpack.c.b16 %v3646, %v3645
        %v3649 = vpack.c.b16 %v3647, %v3647
        %v3651 = vsel %vm3603, %v3640, 0
        %v3654 = vsel %vm3603, %v3641, 0
        %v3657 = vsel %vm3603, %v3648, 0
        %v3660 = vsel %vm3603, %v3649, 0
        %3662 = vmatpush.bf16.xpose.msra.mxu0 0
        %3663 = vmatpush.bf16.xpose.msra.mxu0 0
        %3664 = vmatpush.bf16.xpose.msra.mxu0 0
        %3665 = vmatpush.bf16.xpose.msra.mxu0 0
        %3666 = vmatpush.bf16.xpose.msra.mxu0 0
        %3667 = vmatpush.bf16.xpose.msra.mxu0 0
        %3668 = vmatpush.bf16.xpose.msra.mxu0 %v3660
        %3669 = vmatpush.bf16.xpose.msra.mxu0 %v3657
        %3670 = vmatmul.bf16.gmra.mxu0 %v3651
        %v3671 = vpop.f32.mrf.mxu0
        %v3672 = vadd.f32 0.0, %v3671
        %v3673 = vpop.f32.mrf.mxu0
        %v3674 = vadd.f32 0.0, %v3673
        %3675 = vmatmul.bf16.gmra.mxu0 %v3654
        %v3676 = vpop.f32.mrf.mxu0
        %v3677 = vadd.f32 0.0, %v3676
        %v3678 = vpop.f32.mrf.mxu0
        %3679 = vdwg.mxu0
        %v3683 = vunpack.c.l.b16 %v3545
        %v3684 = vunpack.c.l.b16 %v3546
        %v3685 = vunpack.c.l.b16 %v3547
        %v3686 = vpack.c.b16 %v3684, %v3683
        %v3687 = vpack.c.b16 %v3685, %v3685
        %v3691 = vunpack.c.l.b16 %v3569
        %v3692 = vunpack.c.l.b16 %v3570
        %v3693 = vunpack.c.l.b16 %v3571
        %v3694 = vpack.c.b16 %v3692, %v3691
        %v3695 = vpack.c.b16 %v3693, %v3693
        %v3697 = vsel %vm3603, %v3686, 0
        %v3700 = vsel %vm3603, %v3687, 0
        %v3703 = vsel %vm3603, %v3694, 0
        %v3706 = vsel %vm3603, %v3695, 0
        %3708 = vmatpush.bf16.xpose.msra.mxu0 0
        %3709 = vmatpush.bf16.xpose.msra.mxu0 0
        %3710 = vmatpush.bf16.xpose.msra.mxu0 0
        %3711 = vmatpush.bf16.xpose.msra.mxu0 0
        %3712 = vmatpush.bf16.xpose.msra.mxu0 0
        %3713 = vmatpush.bf16.xpose.msra.mxu0 0
        %3714 = vmatpush.bf16.xpose.msra.mxu0 %v3706
        %3715 = vmatpush.bf16.xpose.msra.mxu0 %v3703
        %3716 = vmatmul.bf16.gmra.mxu0 %v3697
        %v3717 = vpop.f32.mrf.mxu0
        %v3718 = vadd.f32 0.0, %v3717
        %v3719 = vpop.f32.mrf.mxu0
        %v3720 = vadd.f32 0.0, %v3719
        %3721 = vmatmul.bf16.gmra.mxu0 %v3700
        %v3722 = vpop.f32.mrf.mxu0
        %v3723 = vadd.f32 0.0, %v3722
        %v3724 = vpop.f32.mrf.mxu0
        %3725 = vdwg.mxu0
        %v3729 = vunpack.c.l.b16 %v3548
        %v3730 = vunpack.c.l.b16 %v3549
        %v3731 = vunpack.c.l.b16 %v3550
        %v3732 = vpack.c.b16 %v3730, %v3729
        %v3733 = vpack.c.b16 %v3731, %v3731
        %v3737 = vunpack.c.l.b16 %v3572
        %v3738 = vunpack.c.l.b16 %v3573
        %v3739 = vunpack.c.l.b16 %v3574
        %v3740 = vpack.c.b16 %v3738, %v3737
        %v3741 = vpack.c.b16 %v3739, %v3739
        %v3743 = vsel %vm3603, %v3732, 0
        %v3746 = vsel %vm3603, %v3733, 0
        %v3749 = vsel %vm3603, %v3740, 0
        %v3752 = vsel %vm3603, %v3741, 0
        %3754 = vmatpush.bf16.xpose.msra.mxu0 0
        %3755 = vmatpush.bf16.xpose.msra.mxu0 0
        %3756 = vmatpush.bf16.xpose.msra.mxu0 0
        %3757 = vmatpush.bf16.xpose.msra.mxu0 0
        %3758 = vmatpush.bf16.xpose.msra.mxu0 0
        %3759 = vmatpush.bf16.xpose.msra.mxu0 0
        %3760 = vmatpush.bf16.xpose.msra.mxu0 %v3752
        %3761 = vmatpush.bf16.xpose.msra.mxu0 %v3749
        %3762 = vmatmul.bf16.gmra.mxu0 %v3743
        %v3763 = vpop.f32.mrf.mxu0
        %v3764 = vadd.f32 0.0, %v3763
        %v3765 = vpop.f32.mrf.mxu0
        %v3766 = vadd.f32 0.0, %v3765
        %3767 = vmatmul.bf16.gmra.mxu0 %v3746
        %v3768 = vpop.f32.mrf.mxu0
        %v3769 = vadd.f32 0.0, %v3768
        %v3770 = vpop.f32.mrf.mxu0
        %3771 = vdwg.mxu0
        %v3775 = vunpack.c.l.b16 %v3551
        %v3776 = vunpack.c.l.b16 %v3552
        %v3777 = vunpack.c.l.b16 %v3553
        %v3778 = vpack.c.b16 %v3776, %v3775
        %v3779 = vpack.c.b16 %v3777, %v3777
        %v3783 = vunpack.c.l.b16 %v3575
        %v3784 = vunpack.c.l.b16 %v3576
        %v3785 = vunpack.c.l.b16 %v3577
        %v3786 = vpack.c.b16 %v3784, %v3783
        %v3787 = vpack.c.b16 %v3785, %v3785
        %v3789 = vsel %vm3603, %v3778, 0
        %v3792 = vsel %vm3603, %v3779, 0
        %v3795 = vsel %vm3603, %v3786, 0
        %v3798 = vsel %vm3603, %v3787, 0
        %3800 = vmatpush.bf16.xpose.msra.mxu0 0
        %3801 = vmatpush.bf16.xpose.msra.mxu0 0
        %3802 = vmatpush.bf16.xpose.msra.mxu0 0
        %3803 = vmatpush.bf16.xpose.msra.mxu0 0
        %3804 = vmatpush.bf16.xpose.msra.mxu0 0
        %3805 = vmatpush.bf16.xpose.msra.mxu0 0
        %3806 = vmatpush.bf16.xpose.msra.mxu0 %v3798
        %3807 = vmatpush.bf16.xpose.msra.mxu0 %v3795
        %3808 = vmatmul.bf16.gmra.mxu0 %v3789
        %v3809 = vpop.f32.mrf.mxu0
        %v3810 = vadd.f32 0.0, %v3809
        %v3811 = vpop.f32.mrf.mxu0
        %v3812 = vadd.f32 0.0, %v3811
        %3813 = vmatmul.bf16.gmra.mxu0 %v3792
        %v3814 = vpop.f32.mrf.mxu0
        %v3815 = vadd.f32 0.0, %v3814
        %v3816 = vpop.f32.mrf.mxu0
        %3817 = vdwg.mxu0
        %v3821 = vunpack.c.l.b16 %v3554
        %v3822 = vunpack.c.l.b16 %v3555
        %v3823 = vunpack.c.l.b16 %v3556
        %v3824 = vpack.c.b16 %v3822, %v3821
        %v3825 = vpack.c.b16 %v3823, %v3823
        %v3829 = vunpack.c.l.b16 %v3578
        %v3830 = vunpack.c.l.b16 %v3579
        %v3831 = vunpack.c.l.b16 %v3580
        %v3832 = vpack.c.b16 %v3830, %v3829
        %v3833 = vpack.c.b16 %v3831, %v3831
        %v3835 = vsel %vm3603, %v3824, 0
        %v3838 = vsel %vm3603, %v3825, 0
        %v3841 = vsel %vm3603, %v3832, 0
        %v3844 = vsel %vm3603, %v3833, 0
        %3846 = vmatpush.bf16.xpose.msra.mxu0 0
        %3847 = vmatpush.bf16.xpose.msra.mxu0 0
        %3848 = vmatpush.bf16.xpose.msra.mxu0 0
        %3849 = vmatpush.bf16.xpose.msra.mxu0 0
        %3850 = vmatpush.bf16.xpose.msra.mxu0 0
        %3851 = vmatpush.bf16.xpose.msra.mxu0 0
        %3852 = vmatpush.bf16.xpose.msra.mxu0 %v3844
        %3853 = vmatpush.bf16.xpose.msra.mxu0 %v3841
        %3854 = vmatmul.bf16.gmra.mxu0 %v3835
        %v3855 = vpop.f32.mrf.mxu0
        %v3856 = vadd.f32 0.0, %v3855
        %v3857 = vpop.f32.mrf.mxu0
        %v3858 = vadd.f32 0.0, %v3857
        %3859 = vmatmul.bf16.gmra.mxu0 %v3838
        %v3860 = vpop.f32.mrf.mxu0
        %v3861 = vadd.f32 0.0, %v3860
        %v3862 = vpop.f32.mrf.mxu0
        %3863 = vdwg.mxu0
        %v3867 = vunpack.c.l.b16 %v3557
        %v3868 = vunpack.c.l.b16 %v3558
        %v3869 = vunpack.c.l.b16 %v3559
        %v3870 = vpack.c.b16 %v3868, %v3867
        %v3871 = vpack.c.b16 %v3869, %v3869
        %v3875 = vunpack.c.l.b16 %v3581
        %v3876 = vunpack.c.l.b16 %v3582
        %v3877 = vunpack.c.l.b16 %v3583
        %v3878 = vpack.c.b16 %v3876, %v3875
        %v3879 = vpack.c.b16 %v3877, %v3877
        %v3881 = vsel %vm3603, %v3870, 0
        %v3884 = vsel %vm3603, %v3871, 0
        %v3887 = vsel %vm3603, %v3878, 0
        %v3890 = vsel %vm3603, %v3879, 0
        %3892 = vmatpush.bf16.xpose.msra.mxu0 0
        %3893 = vmatpush.bf16.xpose.msra.mxu0 0
        %3894 = vmatpush.bf16.xpose.msra.mxu0 0
        %3895 = vmatpush.bf16.xpose.msra.mxu0 0
        %3896 = vmatpush.bf16.xpose.msra.mxu0 0
        %3897 = vmatpush.bf16.xpose.msra.mxu0 0
        %3898 = vmatpush.bf16.xpose.msra.mxu0 %v3890
        %3899 = vmatpush.bf16.xpose.msra.mxu0 %v3887
        %3900 = vmatmul.bf16.gmra.mxu0 %v3881
        %v3901 = vpop.f32.mrf.mxu0
        %v3902 = vadd.f32 0.0, %v3901
        %v3903 = vpop.f32.mrf.mxu0
        %v3904 = vadd.f32 0.0, %v3903
        %3905 = vmatmul.bf16.gmra.mxu0 %v3884
        %v3906 = vpop.f32.mrf.mxu0
        %v3907 = vadd.f32 0.0, %v3906
        %v3908 = vpop.f32.mrf.mxu0
        %3909 = vdwg.mxu0
        %v3913 = vunpack.c.l.b16 %v3560
        %v3914 = vunpack.c.l.b16 %v3561
        %v3915 = vunpack.c.l.b16 %v3562
        %v3916 = vpack.c.b16 %v3914, %v3913
        %v3917 = vpack.c.b16 %v3915, %v3915
        %v3921 = vunpack.c.l.b16 %v3584
        %v3922 = vunpack.c.l.b16 %v3585
        %v3923 = vunpack.c.l.b16 %v3586
        %v3924 = vpack.c.b16 %v3922, %v3921
        %v3925 = vpack.c.b16 %v3923, %v3923
        %v3927 = vsel %vm3603, %v3916, 0
        %v3930 = vsel %vm3603, %v3917, 0
        %v3933 = vsel %vm3603, %v3924, 0
        %v3936 = vsel %vm3603, %v3925, 0
        %3938 = vmatpush.bf16.xpose.msra.mxu0 0
        %3939 = vmatpush.bf16.xpose.msra.mxu0 0
        %3940 = vmatpush.bf16.xpose.msra.mxu0 0
        %3941 = vmatpush.bf16.xpose.msra.mxu0 0
        %3942 = vmatpush.bf16.xpose.msra.mxu0 0
        %3943 = vmatpush.bf16.xpose.msra.mxu0 0
        %3944 = vmatpush.bf16.xpose.msra.mxu0 %v3936
        %3945 = vmatpush.bf16.xpose.msra.mxu0 %v3933
        %3946 = vmatmul.bf16.gmra.mxu0 %v3927
        %v3947 = vpop.f32.mrf.mxu0
        %v3948 = vadd.f32 0.0, %v3947
        %v3949 = vpop.f32.mrf.mxu0
        %v3950 = vadd.f32 0.0, %v3949
        %3951 = vmatmul.bf16.gmra.mxu0 %v3930
        %v3952 = vpop.f32.mrf.mxu0
        %v3953 = vadd.f32 0.0, %v3952
        %v3954 = vpop.f32.mrf.mxu0
        %3955 = vdwg.mxu0
        %v3956 = vmul.f32 %v3626, 0.35355338
        %v3957 = vmul.f32 %v3628, 0.35355338
        %v3958 = vmul.f32 %v3631, 0.35355338
        %v3959 = vmul.f32 %v3672, 0.35355338
        %v3960 = vmul.f32 %v3674, 0.35355338
        %v3961 = vmul.f32 %v3677, 0.35355338
        %v3962 = vmul.f32 %v3718, 0.35355338
        %v3963 = vmul.f32 %v3720, 0.35355338
        %v3964 = vmul.f32 %v3723, 0.35355338
        %v3965 = vmul.f32 %v3764, 0.35355338
        %v3966 = vmul.f32 %v3766, 0.35355338
        %v3967 = vmul.f32 %v3769, 0.35355338
        %v3968 = vmul.f32 %v3810, 0.35355338
        %v3969 = vmul.f32 %v3812, 0.35355338
        %v3970 = vmul.f32 %v3815, 0.35355338
        %v3971 = vmul.f32 %v3856, 0.35355338
        %v3972 = vmul.f32 %v3858, 0.35355338
        %v3973 = vmul.f32 %v3861, 0.35355338
        %v3974 = vmul.f32 %v3902, 0.35355338
        %v3975 = vmul.f32 %v3904, 0.35355338
        %v3976 = vmul.f32 %v3907, 0.35355338
        %v3977 = vmul.f32 %v3948, 0.35355338
        %v3978 = vmul.f32 %v3950, 0.35355338
        %v3979 = vmul.f32 %v3953, 0.35355338
        %v3980 = vlaneseq
        %v3981 = vand.u32 %v3980, 127
        %vm3982 = vcmp.lt.s32.totalorder %v3981, 17
        %v3983 = vsel %vm3982, 1, 0
        %vm3984 = vcmp.eq.s32.totalorder %v3983, 1
        %v3985 = vsel %vm3984, %v3956, -1e+30
        %v3986 = vsel %vm3984, %v3957, -1e+30
        %v3987 = vsel %vm3984, %v3958, -1e+30
        %v3988 = vsel %vm3984, %v3959, -1e+30
        %v3989 = vsel %vm3984, %v3960, -1e+30
        %v3990 = vsel %vm3984, %v3961, -1e+30
        %v3991 = vsel %vm3984, %v3962, -1e+30
        %v3992 = vsel %vm3984, %v3963, -1e+30
        %v3993 = vsel %vm3984, %v3964, -1e+30
        %v3994 = vsel %vm3984, %v3965, -1e+30
        %v3995 = vsel %vm3984, %v3966, -1e+30
        %v3996 = vsel %vm3984, %v3967, -1e+30
        %v3997 = vsel %vm3984, %v3968, -1e+30
        %v3998 = vsel %vm3984, %v3969, -1e+30
        %v3999 = vsel %vm3984, %v3970, -1e+30
        %v4000 = vsel %vm3984, %v3971, -1e+30
        %v4001 = vsel %vm3984, %v3972, -1e+30
        %v4002 = vsel %vm3984, %v3973, -1e+30
        %v4003 = vsel %vm3984, %v3974, -1e+30
        %v4004 = vsel %vm3984, %v3975, -1e+30
        %v4005 = vsel %vm3984, %v3976, -1e+30
        %v4006 = vsel %vm3984, %v3977, -1e+30
        %v4007 = vsel %vm3984, %v3978, -1e+30
        %v4008 = vsel %vm3984, %v3979, -1e+30
        %vm4009 = vcmask 195584
        %v4010 = vsel %vm4009, %v3985, -inf
        %4011 = vmax.xlane.f32.xlu0 %v4010
        %v4012 = vpop.xlane.xlu0 %4011
        %v4013 = vsel %vm4009, %v3986, -inf
        %4014 = vmax.xlane.f32.xlu0 %v4013
        %v4015 = vpop.xlane.xlu0 %4014
        %v4016 = vsel %vm4009, %v3987, -inf
        %4017 = vmax.xlane.f32.xlu0 %v4016
        %v4018 = vpop.xlane.xlu0 %4017
        %v4019 = vsel %vm4009, %v3988, -inf
        %4020 = vmax.xlane.f32.xlu0 %v4019
        %v4021 = vpop.xlane.xlu0 %4020
        %v4022 = vsel %vm4009, %v3989, -inf
        %4023 = vmax.xlane.f32.xlu0 %v4022
        %v4024 = vpop.xlane.xlu0 %4023
        %v4025 = vsel %vm4009, %v3990, -inf
        %4026 = vmax.xlane.f32.xlu0 %v4025
        %v4027 = vpop.xlane.xlu0 %4026
        %v4028 = vsel %vm4009, %v3991, -inf
        %4029 = vmax.xlane.f32.xlu0 %v4028
        %v4030 = vpop.xlane.xlu0 %4029
        %v4031 = vsel %vm4009, %v3992, -inf
        %4032 = vmax.xlane.f32.xlu0 %v4031
        %v4033 = vpop.xlane.xlu0 %4032
        %v4034 = vsel %vm4009, %v3993, -inf
        %4035 = vmax.xlane.f32.xlu0 %v4034
        %v4036 = vpop.xlane.xlu0 %4035
        %v4037 = vsel %vm4009, %v3994, -inf
        %4038 = vmax.xlane.f32.xlu0 %v4037
        %v4039 = vpop.xlane.xlu0 %4038
        %v4040 = vsel %vm4009, %v3995, -inf
        %4041 = vmax.xlane.f32.xlu0 %v4040
        %v4042 = vpop.xlane.xlu0 %4041
        %v4043 = vsel %vm4009, %v3996, -inf
        %4044 = vmax.xlane.f32.xlu0 %v4043
        %v4045 = vpop.xlane.xlu0 %4044
        %v4046 = vsel %vm4009, %v3997, -inf
        %4047 = vmax.xlane.f32.xlu0 %v4046
        %v4048 = vpop.xlane.xlu0 %4047
        %v4049 = vsel %vm4009, %v3998, -inf
        %4050 = vmax.xlane.f32.xlu0 %v4049
        %v4051 = vpop.xlane.xlu0 %4050
        %v4052 = vsel %vm4009, %v3999, -inf
        %4053 = vmax.xlane.f32.xlu0 %v4052
        %v4054 = vpop.xlane.xlu0 %4053
        %v4055 = vsel %vm4009, %v4000, -inf
        %4056 = vmax.xlane.f32.xlu0 %v4055
        %v4057 = vpop.xlane.xlu0 %4056
        %v4058 = vsel %vm4009, %v4001, -inf
        %4059 = vmax.xlane.f32.xlu0 %v4058
        %v4060 = vpop.xlane.xlu0 %4059
        %v4061 = vsel %vm4009, %v4002, -inf
        %4062 = vmax.xlane.f32.xlu0 %v4061
        %v4063 = vpop.xlane.xlu0 %4062
        %v4064 = vsel %vm4009, %v4003, -inf
        %4065 = vmax.xlane.f32.xlu0 %v4064
        %v4066 = vpop.xlane.xlu0 %4065
        %v4067 = vsel %vm4009, %v4004, -inf
        %4068 = vmax.xlane.f32.xlu0 %v4067
        %v4069 = vpop.xlane.xlu0 %4068
        %v4070 = vsel %vm4009, %v4005, -inf
        %4071 = vmax.xlane.f32.xlu0 %v4070
        %v4072 = vpop.xlane.xlu0 %4071
        %v4073 = vsel %vm4009, %v4006, -inf
        %4074 = vmax.xlane.f32.xlu0 %v4073
        %v4075 = vpop.xlane.xlu0 %4074
        %v4076 = vsel %vm4009, %v4007, -inf
        %4077 = vmax.xlane.f32.xlu0 %v4076
        %v4078 = vpop.xlane.xlu0 %4077
        %v4079 = vsel %vm4009, %v4008, -inf
        %4080 = vmax.xlane.f32.xlu0 %v4079
        %v4081 = vpop.xlane.xlu0 %4080
        %v4082 = vsub.f32 %v3985, %v4012
        %v4083 = vsub.f32 %v3986, %v4015
        %v4084 = vsub.f32 %v3987, %v4018
        %v4085 = vsub.f32 %v3988, %v4021
        %v4086 = vsub.f32 %v3989, %v4024
        %v4087 = vsub.f32 %v3990, %v4027
        %v4088 = vsub.f32 %v3991, %v4030
        %v4089 = vsub.f32 %v3992, %v4033
        %v4090 = vsub.f32 %v3993, %v4036
        %v4091 = vsub.f32 %v3994, %v4039
        %v4092 = vsub.f32 %v3995, %v4042
        %v4093 = vsub.f32 %v3996, %v4045
        %v4094 = vsub.f32 %v3997, %v4048
        %v4095 = vsub.f32 %v3998, %v4051
        %v4096 = vsub.f32 %v3999, %v4054
        %v4097 = vsub.f32 %v4000, %v4057
        %v4098 = vsub.f32 %v4001, %v4060
        %v4099 = vsub.f32 %v4002, %v4063
        %v4100 = vsub.f32 %v4003, %v4066
        %v4101 = vsub.f32 %v4004, %v4069
        %v4102 = vsub.f32 %v4005, %v4072
        %v4103 = vsub.f32 %v4006, %v4075
        %v4104 = vsub.f32 %v4007, %v4078
        %v4105 = vsub.f32 %v4008, %v4081
        %v4106 = vmul.f32 %v4082, 1.442695
        %v4107 = vpow.pop %v4106
        %v4108 = vmul.f32 %v4083, 1.442695
        %v4109 = vpow.pop %v4108
        %v4110 = vmul.f32 %v4084, 1.442695
        %v4111 = vpow.pop %v4110
        %v4112 = vmul.f32 %v4085, 1.442695
        %v4113 = vpow.pop %v4112
        %v4114 = vmul.f32 %v4086, 1.442695
        %v4115 = vpow.pop %v4114
        %v4116 = vmul.f32 %v4087, 1.442695
        %v4117 = vpow.pop %v4116
        %v4118 = vmul.f32 %v4088, 1.442695
        %v4119 = vpow.pop %v4118
        %v4120 = vmul.f32 %v4089, 1.442695
        %v4121 = vpow.pop %v4120
        %v4122 = vmul.f32 %v4090, 1.442695
        %v4123 = vpow.pop %v4122
        %v4124 = vmul.f32 %v4091, 1.442695
        %v4125 = vpow.pop %v4124
        %v4126 = vmul.f32 %v4092, 1.442695
        %v4127 = vpow.pop %v4126
        %v4128 = vmul.f32 %v4093, 1.442695
        %v4129 = vpow.pop %v4128
        %v4130 = vmul.f32 %v4094, 1.442695
        %v4131 = vpow.pop %v4130
        %v4132 = vmul.f32 %v4095, 1.442695
        %v4133 = vpow.pop %v4132
        %v4134 = vmul.f32 %v4096, 1.442695
        %v4135 = vpow.pop %v4134
        %v4136 = vmul.f32 %v4097, 1.442695
        %v4137 = vpow.pop %v4136
        %v4138 = vmul.f32 %v4098, 1.442695
        %v4139 = vpow.pop %v4138
        %v4140 = vmul.f32 %v4099, 1.442695
        %v4141 = vpow.pop %v4140
        %v4142 = vmul.f32 %v4100, 1.442695
        %v4143 = vpow.pop %v4142
        %v4144 = vmul.f32 %v4101, 1.442695
        %v4145 = vpow.pop %v4144
        %v4146 = vmul.f32 %v4102, 1.442695
        %v4147 = vpow.pop %v4146
        %v4148 = vmul.f32 %v4103, 1.442695
        %v4149 = vpow.pop %v4148
        %v4150 = vmul.f32 %v4104, 1.442695
        %v4151 = vpow.pop %v4150
        %v4152 = vmul.f32 %v4105, 1.442695
        %v4153 = vpow.pop %v4152
        %v4154 = vsel %vm4009, %v4107, 0.0
        %4155 = vadd.xlane.f32.xlu0 %v4154
        %v4156 = vpop.xlane.xlu0 %4155
        %v4157 = vsel %vm4009, %v4109, 0.0
        %4158 = vadd.xlane.f32.xlu0 %v4157
        %v4159 = vpop.xlane.xlu0 %4158
        %v4160 = vsel %vm4009, %v4111, 0.0
        %4161 = vadd.xlane.f32.xlu0 %v4160
        %v4162 = vpop.xlane.xlu0 %4161
        %v4163 = vsel %vm4009, %v4113, 0.0
        %4164 = vadd.xlane.f32.xlu0 %v4163
        %v4165 = vpop.xlane.xlu0 %4164
        %v4166 = vsel %vm4009, %v4115, 0.0
        %4167 = vadd.xlane.f32.xlu0 %v4166
        %v4168 = vpop.xlane.xlu0 %4167
        %v4169 = vsel %vm4009, %v4117, 0.0
        %4170 = vadd.xlane.f32.xlu0 %v4169
        %v4171 = vpop.xlane.xlu0 %4170
        %v4172 = vsel %vm4009, %v4119, 0.0
        %4173 = vadd.xlane.f32.xlu0 %v4172
        %v4174 = vpop.xlane.xlu0 %4173
        %v4175 = vsel %vm4009, %v4121, 0.0
        %4176 = vadd.xlane.f32.xlu0 %v4175
        %v4177 = vpop.xlane.xlu0 %4176
        %v4178 = vsel %vm4009, %v4123, 0.0
        %4179 = vadd.xlane.f32.xlu0 %v4178
        %v4180 = vpop.xlane.xlu0 %4179
        %v4181 = vsel %vm4009, %v4125, 0.0
        %4182 = vadd.xlane.f32.xlu0 %v4181
        %v4183 = vpop.xlane.xlu0 %4182
        %v4184 = vsel %vm4009, %v4127, 0.0
        %4185 = vadd.xlane.f32.xlu0 %v4184
        %v4186 = vpop.xlane.xlu0 %4185
        %v4187 = vsel %vm4009, %v4129, 0.0
        %4188 = vadd.xlane.f32.xlu0 %v4187
        %v4189 = vpop.xlane.xlu0 %4188
        %v4190 = vsel %vm4009, %v4131, 0.0
        %4191 = vadd.xlane.f32.xlu0 %v4190
        %v4192 = vpop.xlane.xlu0 %4191
        %v4193 = vsel %vm4009, %v4133, 0.0
        %4194 = vadd.xlane.f32.xlu0 %v4193
        %v4195 = vpop.xlane.xlu0 %4194
        %v4196 = vsel %vm4009, %v4135, 0.0
        %4197 = vadd.xlane.f32.xlu0 %v4196
        %v4198 = vpop.xlane.xlu0 %4197
        %v4199 = vsel %vm4009, %v4137, 0.0
        %4200 = vadd.xlane.f32.xlu0 %v4199
        %v4201 = vpop.xlane.xlu0 %4200
        %v4202 = vsel %vm4009, %v4139, 0.0
        %4203 = vadd.xlane.f32.xlu0 %v4202
        %v4204 = vpop.xlane.xlu0 %4203
        %v4205 = vsel %vm4009, %v4141, 0.0
        %4206 = vadd.xlane.f32.xlu0 %v4205
        %v4207 = vpop.xlane.xlu0 %4206
        %v4208 = vsel %vm4009, %v4143, 0.0
        %4209 = vadd.xlane.f32.xlu0 %v4208
        %v4210 = vpop.xlane.xlu0 %4209
        %v4211 = vsel %vm4009, %v4145, 0.0
        %4212 = vadd.xlane.f32.xlu0 %v4211
        %v4213 = vpop.xlane.xlu0 %4212
        %v4214 = vsel %vm4009, %v4147, 0.0
        %4215 = vadd.xlane.f32.xlu0 %v4214
        %v4216 = vpop.xlane.xlu0 %4215
        %v4217 = vsel %vm4009, %v4149, 0.0
        %4218 = vadd.xlane.f32.xlu0 %v4217
        %v4219 = vpop.xlane.xlu0 %4218
        %v4220 = vsel %vm4009, %v4151, 0.0
        %4221 = vadd.xlane.f32.xlu0 %v4220
        %v4222 = vpop.xlane.xlu0 %4221
        %v4223 = vsel %vm4009, %v4153, 0.0
        %4224 = vadd.xlane.f32.xlu0 %v4223
        %v4225 = vpop.xlane.xlu0 %4224
        %v4226 = vrcp.pop %v4156
        %v4227 = vrcp.pop %v4159
        %v4228 = vrcp.pop %v4162
        %v4229 = vrcp.pop %v4165
        %v4230 = vrcp.pop %v4168
        %v4231 = vrcp.pop %v4171
        %v4232 = vrcp.pop %v4174
        %v4233 = vrcp.pop %v4177
        %v4234 = vrcp.pop %v4180
        %v4235 = vrcp.pop %v4183
        %v4236 = vrcp.pop %v4186
        %v4237 = vrcp.pop %v4189
        %v4238 = vrcp.pop %v4192
        %v4239 = vrcp.pop %v4195
        %v4240 = vrcp.pop %v4198
        %v4241 = vrcp.pop %v4201
        %v4242 = vrcp.pop %v4204
        %v4243 = vrcp.pop %v4207
        %v4244 = vrcp.pop %v4210
        %v4245 = vrcp.pop %v4213
        %v4246 = vrcp.pop %v4216
        %v4247 = vrcp.pop %v4219
        %v4248 = vrcp.pop %v4222
        %v4249 = vrcp.pop %v4225
        %v4250 = vmul.f32 %v4107, %v4226
        %v4251 = vmul.f32 %v4109, %v4227
        %v4252 = vmul.f32 %v4111, %v4228
        %v4253 = vmul.f32 %v4113, %v4229
        %v4254 = vmul.f32 %v4115, %v4230
        %v4255 = vmul.f32 %v4117, %v4231
        %v4256 = vmul.f32 %v4119, %v4232
        %v4257 = vmul.f32 %v4121, %v4233
        %v4258 = vmul.f32 %v4123, %v4234
        %v4259 = vmul.f32 %v4125, %v4235
        %v4260 = vmul.f32 %v4127, %v4236
        %v4261 = vmul.f32 %v4129, %v4237
        %v4262 = vmul.f32 %v4131, %v4238
        %v4263 = vmul.f32 %v4133, %v4239
        %v4264 = vmul.f32 %v4135, %v4240
        %v4265 = vmul.f32 %v4137, %v4241
        %v4266 = vmul.f32 %v4139, %v4242
        %v4267 = vmul.f32 %v4141, %v4243
        %v4268 = vmul.f32 %v4143, %v4244
        %v4269 = vmul.f32 %v4145, %v4245
        %v4270 = vmul.f32 %v4147, %v4246
        %v4271 = vmul.f32 %v4149, %v4247
        %v4272 = vmul.f32 %v4151, %v4248
        %v4273 = vmul.f32 %v4153, %v4249
        %v4274 = vpack.c.bf16 %v4250, %v4250
        %v4275 = vpack.c.bf16 %v4251, %v4251
        %v4276 = vpack.c.bf16 %v4252, %v4252
        %v4277 = vpack.c.bf16 %v4253, %v4253
        %v4278 = vpack.c.bf16 %v4254, %v4254
        %v4279 = vpack.c.bf16 %v4255, %v4255
        %v4280 = vpack.c.bf16 %v4256, %v4256
        %v4281 = vpack.c.bf16 %v4257, %v4257
        %v4282 = vpack.c.bf16 %v4258, %v4258
        %v4283 = vpack.c.bf16 %v4259, %v4259
        %v4284 = vpack.c.bf16 %v4260, %v4260
        %v4285 = vpack.c.bf16 %v4261, %v4261
        %v4286 = vpack.c.bf16 %v4262, %v4262
        %v4287 = vpack.c.bf16 %v4263, %v4263
        %v4288 = vpack.c.bf16 %v4264, %v4264
        %v4289 = vpack.c.bf16 %v4265, %v4265
        %v4290 = vpack.c.bf16 %v4266, %v4266
        %v4291 = vpack.c.bf16 %v4267, %v4267
        %v4292 = vpack.c.bf16 %v4268, %v4268
        %v4293 = vpack.c.bf16 %v4269, %v4269
        %v4294 = vpack.c.bf16 %v4270, %v4270
        %v4295 = vpack.c.bf16 %v4271, %v4271
        %v4296 = vpack.c.bf16 %v4272, %v4272
        %v4297 = vpack.c.bf16 %v4273, %v4273
        %v4298 = vpack.c.bf16 %v3262, %v3262
        %v4299 = vpack.c.bf16 %v3316, %v3316
        %v4300 = vpack.c.bf16 %v3370, %v3370
        %v4301 = vpack.c.bf16 %v3264, %v3264
        %v4302 = vpack.c.bf16 %v3318, %v3318
        %v4303 = vpack.c.bf16 %v3372, %v3372
        %v4304 = vpack.c.bf16 %v3266, %v3266
        %v4305 = vpack.c.bf16 %v3320, %v3320
        %v4306 = vpack.c.bf16 %v3374, %v3374
        %v4307 = vpack.c.bf16 %v3268, %v3268
        %v4308 = vpack.c.bf16 %v3322, %v3322
        %v4309 = vpack.c.bf16 %v3376, %v3376
        %v4310 = vpack.c.bf16 %v3424, %v3424
        %v4311 = vpack.c.bf16 %v3478, %v3478
        %v4312 = vpack.c.bf16 %v3532, %v3532
        %v4313 = vpack.c.bf16 %v3426, %v3426
        %v4314 = vpack.c.bf16 %v3480, %v3480
        %v4315 = vpack.c.bf16 %v3534, %v3534
        %v4316 = vpack.c.bf16 %v3428, %v3428
        %v4317 = vpack.c.bf16 %v3482, %v3482
        %v4318 = vpack.c.bf16 %v3536, %v3536
        %v4319 = vpack.c.bf16 %v3430, %v3430
        %v4320 = vpack.c.bf16 %v3484, %v3484
        %v4321 = vpack.c.bf16 %v3538, %v3538
        %v4325 = vunpack.c.l.b16 %v4274
        %v4326 = vunpack.c.l.b16 %v4275
        %v4327 = vunpack.c.l.b16 %v4276
        %v4328 = vpack.c.b16 %v4326, %v4325
        %v4329 = vpack.c.b16 %v4327, %v4327
        %v4333 = vunpack.c.l.b16 %v4298
        %v4334 = vunpack.c.l.b16 %v4299
        %v4335 = vunpack.c.l.b16 %v4300
        %v4336 = vpack.c.b16 %v4334, %v4333
        %v4337 = vpack.c.b16 %v4335, %v4335
        %v4340 = vsel %vm4009, %v4328, 0
        %v4343 = vsel %vm4009, %v4329, 0
        %vm4345 = vcmask 1043456
        %v4347 = vsel %vm4345, %v4337, 0
        %4349 = vmatpush.bf16.msra.mxu0 0
        %4350 = vmatpush.bf16.msra.mxu0 0
        %4351 = vmatpush.bf16.msra.mxu0 0
        %4352 = vmatpush.bf16.msra.mxu0 0
        %4353 = vmatpush.bf16.msra.mxu0 0
        %4354 = vmatpush.bf16.msra.mxu0 0
        %4355 = vmatpush.bf16.msra.mxu0 %v4347
        %4356 = vmatpush.bf16.msra.mxu0 %v4336
        %4357 = vmatmul.bf16.gmra.mxu0 %v4340
        %v4358 = vpop.f32.mrf.mxu0
        %v4359 = vadd.f32 0.0, %v4358
        %v4360 = vpop.f32.mrf.mxu0
        %v4361 = vadd.f32 0.0, %v4360
        %4362 = vmatmul.bf16.gmra.mxu0 %v4343
        %v4363 = vpop.f32.mrf.mxu0
        %v4364 = vadd.f32 0.0, %v4363
        %v4365 = vpop.f32.mrf.mxu0
        %4366 = vdwg.mxu0
        %v4370 = vunpack.c.l.b16 %v4277
        %v4371 = vunpack.c.l.b16 %v4278
        %v4372 = vunpack.c.l.b16 %v4279
        %v4373 = vpack.c.b16 %v4371, %v4370
        %v4374 = vpack.c.b16 %v4372, %v4372
        %v4378 = vunpack.c.l.b16 %v4301
        %v4379 = vunpack.c.l.b16 %v4302
        %v4380 = vunpack.c.l.b16 %v4303
        %v4381 = vpack.c.b16 %v4379, %v4378
        %v4382 = vpack.c.b16 %v4380, %v4380
        %v4385 = vsel %vm4009, %v4373, 0
        %v4388 = vsel %vm4009, %v4374, 0
        %v4391 = vsel %vm4345, %v4382, 0
        %4393 = vmatpush.bf16.msra.mxu0 0
        %4394 = vmatpush.bf16.msra.mxu0 0
        %4395 = vmatpush.bf16.msra.mxu0 0
        %4396 = vmatpush.bf16.msra.mxu0 0
        %4397 = vmatpush.bf16.msra.mxu0 0
        %4398 = vmatpush.bf16.msra.mxu0 0
        %4399 = vmatpush.bf16.msra.mxu0 %v4391
        %4400 = vmatpush.bf16.msra.mxu0 %v4381
        %4401 = vmatmul.bf16.gmra.mxu0 %v4385
        %v4402 = vpop.f32.mrf.mxu0
        %v4403 = vadd.f32 0.0, %v4402
        %v4404 = vpop.f32.mrf.mxu0
        %v4405 = vadd.f32 0.0, %v4404
        %4406 = vmatmul.bf16.gmra.mxu0 %v4388
        %v4407 = vpop.f32.mrf.mxu0
        %v4408 = vadd.f32 0.0, %v4407
        %v4409 = vpop.f32.mrf.mxu0
        %4410 = vdwg.mxu0
        %v4414 = vunpack.c.l.b16 %v4280
        %v4415 = vunpack.c.l.b16 %v4281
        %v4416 = vunpack.c.l.b16 %v4282
        %v4417 = vpack.c.b16 %v4415, %v4414
        %v4418 = vpack.c.b16 %v4416, %v4416
        %v4422 = vunpack.c.l.b16 %v4304
        %v4423 = vunpack.c.l.b16 %v4305
        %v4424 = vunpack.c.l.b16 %v4306
        %v4425 = vpack.c.b16 %v4423, %v4422
        %v4426 = vpack.c.b16 %v4424, %v4424
        %v4429 = vsel %vm4009, %v4417, 0
        %v4432 = vsel %vm4009, %v4418, 0
        %v4435 = vsel %vm4345, %v4426, 0
        %4437 = vmatpush.bf16.msra.mxu0 0
        %4438 = vmatpush.bf16.msra.mxu0 0
        %4439 = vmatpush.bf16.msra.mxu0 0
        %4440 = vmatpush.bf16.msra.mxu0 0
        %4441 = vmatpush.bf16.msra.mxu0 0
        %4442 = vmatpush.bf16.msra.mxu0 0
        %4443 = vmatpush.bf16.msra.mxu0 %v4435
        %4444 = vmatpush.bf16.msra.mxu0 %v4425
        %4445 = vmatmul.bf16.gmra.mxu0 %v4429
        %v4446 = vpop.f32.mrf.mxu0
        %v4447 = vadd.f32 0.0, %v4446
        %v4448 = vpop.f32.mrf.mxu0
        %v4449 = vadd.f32 0.0, %v4448
        %4450 = vmatmul.bf16.gmra.mxu0 %v4432
        %v4451 = vpop.f32.mrf.mxu0
        %v4452 = vadd.f32 0.0, %v4451
        %v4453 = vpop.f32.mrf.mxu0
        %4454 = vdwg.mxu0
        %v4458 = vunpack.c.l.b16 %v4283
        %v4459 = vunpack.c.l.b16 %v4284
        %v4460 = vunpack.c.l.b16 %v4285
        %v4461 = vpack.c.b16 %v4459, %v4458
        %v4462 = vpack.c.b16 %v4460, %v4460
        %v4466 = vunpack.c.l.b16 %v4307
        %v4467 = vunpack.c.l.b16 %v4308
        %v4468 = vunpack.c.l.b16 %v4309
        %v4469 = vpack.c.b16 %v4467, %v4466
        %v4470 = vpack.c.b16 %v4468, %v4468
        %v4473 = vsel %vm4009, %v4461, 0
        %v4476 = vsel %vm4009, %v4462, 0
        %v4479 = vsel %vm4345, %v4470, 0
        %4481 = vmatpush.bf16.msra.mxu0 0
        %4482 = vmatpush.bf16.msra.mxu0 0
        %4483 = vmatpush.bf16.msra.mxu0 0
        %4484 = vmatpush.bf16.msra.mxu0 0
        %4485 = vmatpush.bf16.msra.mxu0 0
        %4486 = vmatpush.bf16.msra.mxu0 0
        %4487 = vmatpush.bf16.msra.mxu0 %v4479
        %4488 = vmatpush.bf16.msra.mxu0 %v4469
        %4489 = vmatmul.bf16.gmra.mxu0 %v4473
        %v4490 = vpop.f32.mrf.mxu0
        %v4491 = vadd.f32 0.0, %v4490
        %v4492 = vpop.f32.mrf.mxu0
        %v4493 = vadd.f32 0.0, %v4492
        %4494 = vmatmul.bf16.gmra.mxu0 %v4476
        %v4495 = vpop.f32.mrf.mxu0
        %v4496 = vadd.f32 0.0, %v4495
        %v4497 = vpop.f32.mrf.mxu0
        %4498 = vdwg.mxu0
        %v4502 = vunpack.c.l.b16 %v4286
        %v4503 = vunpack.c.l.b16 %v4287
        %v4504 = vunpack.c.l.b16 %v4288
        %v4505 = vpack.c.b16 %v4503, %v4502
        %v4506 = vpack.c.b16 %v4504, %v4504
        %v4510 = vunpack.c.l.b16 %v4310
        %v4511 = vunpack.c.l.b16 %v4311
        %v4512 = vunpack.c.l.b16 %v4312
        %v4513 = vpack.c.b16 %v4511, %v4510
        %v4514 = vpack.c.b16 %v4512, %v4512
        %v4517 = vsel %vm4009, %v4505, 0
        %v4520 = vsel %vm4009, %v4506, 0
        %v4523 = vsel %vm4345, %v4514, 0
        %4525 = vmatpush.bf16.msra.mxu0 0
        %4526 = vmatpush.bf16.msra.mxu0 0
        %4527 = vmatpush.bf16.msra.mxu0 0
        %4528 = vmatpush.bf16.msra.mxu0 0
        %4529 = vmatpush.bf16.msra.mxu0 0
        %4530 = vmatpush.bf16.msra.mxu0 0
        %4531 = vmatpush.bf16.msra.mxu0 %v4523
        %4532 = vmatpush.bf16.msra.mxu0 %v4513
        %4533 = vmatmul.bf16.gmra.mxu0 %v4517
        %v4534 = vpop.f32.mrf.mxu0
        %v4535 = vadd.f32 0.0, %v4534
        %v4536 = vpop.f32.mrf.mxu0
        %v4537 = vadd.f32 0.0, %v4536
        %4538 = vmatmul.bf16.gmra.mxu0 %v4520
        %v4539 = vpop.f32.mrf.mxu0
        %v4540 = vadd.f32 0.0, %v4539
        %v4541 = vpop.f32.mrf.mxu0
        %4542 = vdwg.mxu0
        %v4546 = vunpack.c.l.b16 %v4289
        %v4547 = vunpack.c.l.b16 %v4290
        %v4548 = vunpack.c.l.b16 %v4291
        %v4549 = vpack.c.b16 %v4547, %v4546
        %v4550 = vpack.c.b16 %v4548, %v4548
        %v4554 = vunpack.c.l.b16 %v4313
        %v4555 = vunpack.c.l.b16 %v4314
        %v4556 = vunpack.c.l.b16 %v4315
        %v4557 = vpack.c.b16 %v4555, %v4554
        %v4558 = vpack.c.b16 %v4556, %v4556
        %v4561 = vsel %vm4009, %v4549, 0
        %v4564 = vsel %vm4009, %v4550, 0
        %v4567 = vsel %vm4345, %v4558, 0
        %4569 = vmatpush.bf16.msra.mxu0 0
        %4570 = vmatpush.bf16.msra.mxu0 0
        %4571 = vmatpush.bf16.msra.mxu0 0
        %4572 = vmatpush.bf16.msra.mxu0 0
        %4573 = vmatpush.bf16.msra.mxu0 0
        %4574 = vmatpush.bf16.msra.mxu0 0
        %4575 = vmatpush.bf16.msra.mxu0 %v4567
        %4576 = vmatpush.bf16.msra.mxu0 %v4557
        %4577 = vmatmul.bf16.gmra.mxu0 %v4561
        %v4578 = vpop.f32.mrf.mxu0
        %v4579 = vadd.f32 0.0, %v4578
        %v4580 = vpop.f32.mrf.mxu0
        %v4581 = vadd.f32 0.0, %v4580
        %4582 = vmatmul.bf16.gmra.mxu0 %v4564
        %v4583 = vpop.f32.mrf.mxu0
        %v4584 = vadd.f32 0.0, %v4583
        %v4585 = vpop.f32.mrf.mxu0
        %4586 = vdwg.mxu0
        %v4590 = vunpack.c.l.b16 %v4292
        %v4591 = vunpack.c.l.b16 %v4293
        %v4592 = vunpack.c.l.b16 %v4294
        %v4593 = vpack.c.b16 %v4591, %v4590
        %v4594 = vpack.c.b16 %v4592, %v4592
        %v4598 = vunpack.c.l.b16 %v4316
        %v4599 = vunpack.c.l.b16 %v4317
        %v4600 = vunpack.c.l.b16 %v4318
        %v4601 = vpack.c.b16 %v4599, %v4598
        %v4602 = vpack.c.b16 %v4600, %v4600
        %v4605 = vsel %vm4009, %v4593, 0
        %v4608 = vsel %vm4009, %v4594, 0
        %v4611 = vsel %vm4345, %v4602, 0
        %4613 = vmatpush.bf16.msra.mxu0 0
        %4614 = vmatpush.bf16.msra.mxu0 0
        %4615 = vmatpush.bf16.msra.mxu0 0
        %4616 = vmatpush.bf16.msra.mxu0 0
        %4617 = vmatpush.bf16.msra.mxu0 0
        %4618 = vmatpush.bf16.msra.mxu0 0
        %4619 = vmatpush.bf16.msra.mxu0 %v4611
        %4620 = vmatpush.bf16.msra.mxu0 %v4601
        %4621 = vmatmul.bf16.gmra.mxu0 %v4605
        %v4622 = vpop.f32.mrf.mxu0
        %v4623 = vadd.f32 0.0, %v4622
        %v4624 = vpop.f32.mrf.mxu0
        %v4625 = vadd.f32 0.0, %v4624
        %4626 = vmatmul.bf16.gmra.mxu0 %v4608
        %v4627 = vpop.f32.mrf.mxu0
        %v4628 = vadd.f32 0.0, %v4627
        %v4629 = vpop.f32.mrf.mxu0
        %4630 = vdwg.mxu0
        %v4634 = vunpack.c.l.b16 %v4295
        %v4635 = vunpack.c.l.b16 %v4296
        %v4636 = vunpack.c.l.b16 %v4297
        %v4637 = vpack.c.b16 %v4635, %v4634
        %v4638 = vpack.c.b16 %v4636, %v4636
        %v4642 = vunpack.c.l.b16 %v4319
        %v4643 = vunpack.c.l.b16 %v4320
        %v4644 = vunpack.c.l.b16 %v4321
        %v4645 = vpack.c.b16 %v4643, %v4642
        %v4646 = vpack.c.b16 %v4644, %v4644
        %v4649 = vsel %vm4009, %v4637, 0
        %v4652 = vsel %vm4009, %v4638, 0
        %v4655 = vsel %vm4345, %v4646, 0
        %4657 = vmatpush.bf16.msra.mxu0 0
        %4658 = vmatpush.bf16.msra.mxu0 0
        %4659 = vmatpush.bf16.msra.mxu0 0
        %4660 = vmatpush.bf16.msra.mxu0 0
        %4661 = vmatpush.bf16.msra.mxu0 0
        %4662 = vmatpush.bf16.msra.mxu0 0
        %4663 = vmatpush.bf16.msra.mxu0 %v4655
        %4664 = vmatpush.bf16.msra.mxu0 %v4645
        %4665 = vmatmul.bf16.gmra.mxu0 %v4649
        %v4666 = vpop.f32.mrf.mxu0
        %v4667 = vadd.f32 0.0, %v4666
        %v4668 = vpop.f32.mrf.mxu0
        %v4669 = vadd.f32 0.0, %v4668
        %4670 = vmatmul.bf16.gmra.mxu0 %v4652
        %v4671 = vpop.f32.mrf.mxu0
        %v4672 = vadd.f32 0.0, %v4671
        %v4673 = vpop.f32.mrf.mxu0
        %4674 = vdwg.mxu0
        %v4675 = vrot.slane %v4447, 4
        %v4676 = vsel %vm1439, %v4675, %v4359
        %v4677 = vrot.slane %v4359, 4
        %v4678 = vsel %vm1439, %v4447, %v4677
        %v4680 = vunpack.c.l.s4 1983009808
        %v4681 = vunpack.c.0.s8 %v4680
        %v4682 = vperm.slane %v4676, %v4681
        %v4684 = vunpack.c.l.s4 1983009808
        %v4685 = vunpack.c.0.s8 %v4684
        %v4686 = vperm.slane %v4678, %v4685
        %v4687 = vrot.slane %v4491, 4
        %v4688 = vsel %vm1439, %v4687, %v4403
        %v4689 = vrot.slane %v4403, 4
        %v4690 = vsel %vm1439, %v4491, %v4689
        %v4692 = vunpack.c.l.s4 1983009808
        %v4693 = vunpack.c.0.s8 %v4692
        %v4694 = vperm.slane %v4688, %v4693
        %v4696 = vunpack.c.l.s4 1983009808
        %v4697 = vunpack.c.0.s8 %v4696
        %v4698 = vperm.slane %v4690, %v4697
        %v4699 = vrot.slane %v4694, 4
        %v4700 = vsel %vm1439, %v4699, %v4682
        %v4701 = vrot.slane %v4682, 4
        %v4702 = vsel %vm1439, %v4694, %v4701
        %v4704 = vunpack.c.l.s4 1934713408
        %v4705 = vunpack.c.0.s8 %v4704
        %v4706 = vperm.slane %v4700, %v4705
        %v4708 = vunpack.c.l.s4 1934713408
        %v4709 = vunpack.c.0.s8 %v4708
        %v4710 = vperm.slane %v4702, %v4709
        %v4711 = vrot.slane %v4698, 4
        %v4712 = vsel %vm1439, %v4711, %v4686
        %v4713 = vrot.slane %v4686, 4
        %v4714 = vsel %vm1439, %v4698, %v4713
        %v4716 = vunpack.c.l.s4 1934713408
        %v4717 = vunpack.c.0.s8 %v4716
        %v4718 = vperm.slane %v4712, %v4717
        %v4720 = vunpack.c.l.s4 1934713408
        %v4721 = vunpack.c.0.s8 %v4720
        %v4722 = vperm.slane %v4714, %v4721
        %v4723 = vrot.slane %v4706, 4
        %v4724 = vsel %vm1439, 0.0, %v4723
        %v4725 = vrot.slane %v4710, 4
        %v4726 = vsel %vm1439, 0.0, %v4725
        %v4727 = vrot.slane %v4718, 4
        %v4728 = vsel %vm1439, 0.0, %v4727
        %v4729 = vrot.slane %v4722, 4
        %v4730 = vsel %vm1439, 0.0, %v4729
        %v4731 = vrot.slane %v4449, 4
        %v4732 = vsel %vm1439, %v4731, %v4361
        %v4733 = vrot.slane %v4361, 4
        %v4734 = vsel %vm1439, %v4449, %v4733
        %v4736 = vunpack.c.l.s4 1983009808
        %v4737 = vunpack.c.0.s8 %v4736
        %v4738 = vperm.slane %v4732, %v4737
        %v4740 = vunpack.c.l.s4 1983009808
        %v4741 = vunpack.c.0.s8 %v4740
        %v4742 = vperm.slane %v4734, %v4741
        %v4743 = vrot.slane %v4493, 4
        %v4744 = vsel %vm1439, %v4743, %v4405
        %v4745 = vrot.slane %v4405, 4
        %v4746 = vsel %vm1439, %v4493, %v4745
        %v4748 = vunpack.c.l.s4 1983009808
        %v4749 = vunpack.c.0.s8 %v4748
        %v4750 = vperm.slane %v4744, %v4749
        %v4752 = vunpack.c.l.s4 1983009808
        %v4753 = vunpack.c.0.s8 %v4752
        %v4754 = vperm.slane %v4746, %v4753
        %v4755 = vrot.slane %v4750, 4
        %v4756 = vsel %vm1439, %v4755, %v4738
        %v4757 = vrot.slane %v4738, 4
        %v4758 = vsel %vm1439, %v4750, %v4757
        %v4760 = vunpack.c.l.s4 1934713408
        %v4761 = vunpack.c.0.s8 %v4760
        %v4762 = vperm.slane %v4756, %v4761
        %v4764 = vunpack.c.l.s4 1934713408
        %v4765 = vunpack.c.0.s8 %v4764
        %v4766 = vperm.slane %v4758, %v4765
        %v4767 = vrot.slane %v4754, 4
        %v4768 = vsel %vm1439, %v4767, %v4742
        %v4769 = vrot.slane %v4742, 4
        %v4770 = vsel %vm1439, %v4754, %v4769
        %v4772 = vunpack.c.l.s4 1934713408
        %v4773 = vunpack.c.0.s8 %v4772
        %v4774 = vperm.slane %v4768, %v4773
        %v4776 = vunpack.c.l.s4 1934713408
        %v4777 = vunpack.c.0.s8 %v4776
        %v4778 = vperm.slane %v4770, %v4777
        %v4779 = vrot.slane %v4762, 4
        %v4780 = vsel %vm1439, 0.0, %v4779
        %v4781 = vrot.slane %v4766, 4
        %v4782 = vsel %vm1439, 0.0, %v4781
        %v4783 = vrot.slane %v4774, 4
        %v4784 = vsel %vm1439, 0.0, %v4783
        %v4785 = vrot.slane %v4778, 4
        %v4786 = vsel %vm1439, 0.0, %v4785
        %v4787 = vrot.slane %v4452, 4
        %v4788 = vsel %vm1439, %v4787, %v4364
        %v4789 = vrot.slane %v4364, 4
        %v4790 = vsel %vm1439, %v4452, %v4789
        %v4792 = vunpack.c.l.s4 1983009808
        %v4793 = vunpack.c.0.s8 %v4792
        %v4794 = vperm.slane %v4788, %v4793
        %v4796 = vunpack.c.l.s4 1983009808
        %v4797 = vunpack.c.0.s8 %v4796
        %v4798 = vperm.slane %v4790, %v4797
        %v4799 = vrot.slane %v4496, 4
        %v4800 = vsel %vm1439, %v4799, %v4408
        %v4801 = vrot.slane %v4408, 4
        %v4802 = vsel %vm1439, %v4496, %v4801
        %v4804 = vunpack.c.l.s4 1983009808
        %v4805 = vunpack.c.0.s8 %v4804
        %v4806 = vperm.slane %v4800, %v4805
        %v4808 = vunpack.c.l.s4 1983009808
        %v4809 = vunpack.c.0.s8 %v4808
        %v4810 = vperm.slane %v4802, %v4809
        %v4811 = vrot.slane %v4806, 4
        %v4812 = vsel %vm1439, %v4811, %v4794
        %v4813 = vrot.slane %v4794, 4
        %v4814 = vsel %vm1439, %v4806, %v4813
        %v4816 = vunpack.c.l.s4 1934713408
        %v4817 = vunpack.c.0.s8 %v4816
        %v4818 = vperm.slane %v4812, %v4817
        %v4820 = vunpack.c.l.s4 1934713408
        %v4821 = vunpack.c.0.s8 %v4820
        %v4822 = vperm.slane %v4814, %v4821
        %v4823 = vrot.slane %v4810, 4
        %v4824 = vsel %vm1439, %v4823, %v4798
        %v4825 = vrot.slane %v4798, 4
        %v4826 = vsel %vm1439, %v4810, %v4825
        %v4828 = vunpack.c.l.s4 1934713408
        %v4829 = vunpack.c.0.s8 %v4828
        %v4830 = vperm.slane %v4824, %v4829
        %v4832 = vunpack.c.l.s4 1934713408
        %v4833 = vunpack.c.0.s8 %v4832
        %v4834 = vperm.slane %v4826, %v4833
        %v4835 = vrot.slane %v4818, 4
        %v4836 = vsel %vm1439, 0.0, %v4835
        %v4837 = vrot.slane %v4822, 4
        %v4838 = vsel %vm1439, 0.0, %v4837
        %v4839 = vrot.slane %v4830, 4
        %v4840 = vsel %vm1439, 0.0, %v4839
        %v4841 = vrot.slane %v4834, 4
        %v4842 = vsel %vm1439, 0.0, %v4841
        %v4843 = vrot.slane %v4623, 4
        %v4844 = vsel %vm1439, %v4843, %v4535
        %v4845 = vrot.slane %v4535, 4
        %v4846 = vsel %vm1439, %v4623, %v4845
        %v4848 = vunpack.c.l.s4 1983009808
        %v4849 = vunpack.c.0.s8 %v4848
        %v4850 = vperm.slane %v4844, %v4849
        %v4852 = vunpack.c.l.s4 1983009808
        %v4853 = vunpack.c.0.s8 %v4852
        %v4854 = vperm.slane %v4846, %v4853
        %v4855 = vrot.slane %v4667, 4
        %v4856 = vsel %vm1439, %v4855, %v4579
        %v4857 = vrot.slane %v4579, 4
        %v4858 = vsel %vm1439, %v4667, %v4857
        %v4860 = vunpack.c.l.s4 1983009808
        %v4861 = vunpack.c.0.s8 %v4860
        %v4862 = vperm.slane %v4856, %v4861
        %v4864 = vunpack.c.l.s4 1983009808
        %v4865 = vunpack.c.0.s8 %v4864
        %v4866 = vperm.slane %v4858, %v4865
        %v4867 = vrot.slane %v4862, 4
        %v4868 = vsel %vm1439, %v4867, %v4850
        %v4869 = vrot.slane %v4850, 4
        %v4870 = vsel %vm1439, %v4862, %v4869
        %v4872 = vunpack.c.l.s4 1934713408
        %v4873 = vunpack.c.0.s8 %v4872
        %v4874 = vperm.slane %v4868, %v4873
        %v4876 = vunpack.c.l.s4 1934713408
        %v4877 = vunpack.c.0.s8 %v4876
        %v4878 = vperm.slane %v4870, %v4877
        %v4879 = vrot.slane %v4866, 4
        %v4880 = vsel %vm1439, %v4879, %v4854
        %v4881 = vrot.slane %v4854, 4
        %v4882 = vsel %vm1439, %v4866, %v4881
        %v4884 = vunpack.c.l.s4 1934713408
        %v4885 = vunpack.c.0.s8 %v4884
        %v4886 = vperm.slane %v4880, %v4885
        %v4888 = vunpack.c.l.s4 1934713408
        %v4889 = vunpack.c.0.s8 %v4888
        %v4890 = vperm.slane %v4882, %v4889
        %v4891 = vrot.slane %v4874, 4
        %v4892 = vsel %vm1439, 0.0, %v4891
        %v4893 = vrot.slane %v4878, 4
        %v4894 = vsel %vm1439, 0.0, %v4893
        %v4895 = vrot.slane %v4886, 4
        %v4896 = vsel %vm1439, 0.0, %v4895
        %v4897 = vrot.slane %v4890, 4
        %v4898 = vsel %vm1439, 0.0, %v4897
        %v4899 = vrot.slane %v4625, 4
        %v4900 = vsel %vm1439, %v4899, %v4537
        %v4901 = vrot.slane %v4537, 4
        %v4902 = vsel %vm1439, %v4625, %v4901
        %v4904 = vunpack.c.l.s4 1983009808
        %v4905 = vunpack.c.0.s8 %v4904
        %v4906 = vperm.slane %v4900, %v4905
        %v4908 = vunpack.c.l.s4 1983009808
        %v4909 = vunpack.c.0.s8 %v4908
        %v4910 = vperm.slane %v4902, %v4909
        %v4911 = vrot.slane %v4669, 4
        %v4912 = vsel %vm1439, %v4911, %v4581
        %v4913 = vrot.slane %v4581, 4
        %v4914 = vsel %vm1439, %v4669, %v4913
        %v4916 = vunpack.c.l.s4 1983009808
        %v4917 = vunpack.c.0.s8 %v4916
        %v4918 = vperm.slane %v4912, %v4917
        %v4920 = vunpack.c.l.s4 1983009808
        %v4921 = vunpack.c.0.s8 %v4920
        %v4922 = vperm.slane %v4914, %v4921
        %v4923 = vrot.slane %v4918, 4
        %v4924 = vsel %vm1439, %v4923, %v4906
        %v4925 = vrot.slane %v4906, 4
        %v4926 = vsel %vm1439, %v4918, %v4925
        %v4928 = vunpack.c.l.s4 1934713408
        %v4929 = vunpack.c.0.s8 %v4928
        %v4930 = vperm.slane %v4924, %v4929
        %v4932 = vunpack.c.l.s4 1934713408
        %v4933 = vunpack.c.0.s8 %v4932
        %v4934 = vperm.slane %v4926, %v4933
        %v4935 = vrot.slane %v4922, 4
        %v4936 = vsel %vm1439, %v4935, %v4910
        %v4937 = vrot.slane %v4910, 4
        %v4938 = vsel %vm1439, %v4922, %v4937
        %v4940 = vunpack.c.l.s4 1934713408
        %v4941 = vunpack.c.0.s8 %v4940
        %v4942 = vperm.slane %v4936, %v4941
        %v4944 = vunpack.c.l.s4 1934713408
        %v4945 = vunpack.c.0.s8 %v4944
        %v4946 = vperm.slane %v4938, %v4945
        %v4947 = vrot.slane %v4930, 4
        %v4948 = vsel %vm1439, 0.0, %v4947
        %v4949 = vrot.slane %v4934, 4
        %v4950 = vsel %vm1439, 0.0, %v4949
        %v4951 = vrot.slane %v4942, 4
        %v4952 = vsel %vm1439, 0.0, %v4951
        %v4953 = vrot.slane %v4946, 4
        %v4954 = vsel %vm1439, 0.0, %v4953
        %v4955 = vrot.slane %v4628, 4
        %v4956 = vsel %vm1439, %v4955, %v4540
        %v4957 = vrot.slane %v4540, 4
        %v4958 = vsel %vm1439, %v4628, %v4957
        %v4960 = vunpack.c.l.s4 1983009808
        %v4961 = vunpack.c.0.s8 %v4960
        %v4962 = vperm.slane %v4956, %v4961
        %v4964 = vunpack.c.l.s4 1983009808
        %v4965 = vunpack.c.0.s8 %v4964
        %v4966 = vperm.slane %v4958, %v4965
        %v4967 = vrot.slane %v4672, 4
        %v4968 = vsel %vm1439, %v4967, %v4584
        %v4969 = vrot.slane %v4584, 4
        %v4970 = vsel %vm1439, %v4672, %v4969
        %v4972 = vunpack.c.l.s4 1983009808
        %v4973 = vunpack.c.0.s8 %v4972
        %v4974 = vperm.slane %v4968, %v4973
        %v4976 = vunpack.c.l.s4 1983009808
        %v4977 = vunpack.c.0.s8 %v4976
        %v4978 = vperm.slane %v4970, %v4977
        %v4979 = vrot.slane %v4974, 4
        %v4980 = vsel %vm1439, %v4979, %v4962
        %v4981 = vrot.slane %v4962, 4
        %v4982 = vsel %vm1439, %v4974, %v4981
        %v4984 = vunpack.c.l.s4 1934713408
        %v4985 = vunpack.c.0.s8 %v4984
        %v4986 = vperm.slane %v4980, %v4985
        %v4988 = vunpack.c.l.s4 1934713408
        %v4989 = vunpack.c.0.s8 %v4988
        %v4990 = vperm.slane %v4982, %v4989
        %v4991 = vrot.slane %v4978, 4
        %v4992 = vsel %vm1439, %v4991, %v4966
        %v4993 = vrot.slane %v4966, 4
        %v4994 = vsel %vm1439, %v4978, %v4993
        %v4996 = vunpack.c.l.s4 1934713408
        %v4997 = vunpack.c.0.s8 %v4996
        %v4998 = vperm.slane %v4992, %v4997
        %v5000 = vunpack.c.l.s4 1934713408
        %v5001 = vunpack.c.0.s8 %v5000
        %v5002 = vperm.slane %v4994, %v5001
        %v5003 = vrot.slane %v4986, 4
        %v5004 = vsel %vm1439, 0.0, %v5003
        %v5005 = vrot.slane %v4990, 4
        %v5006 = vsel %vm1439, 0.0, %v5005
        %v5007 = vrot.slane %v4998, 4
        %v5008 = vsel %vm1439, 0.0, %v5007
        %v5009 = vrot.slane %v5002, 4
        %v5010 = vsel %vm1439, 0.0, %v5009
        %v5011 = vsel %vm1439, %v4725, %v4706
        %v5013 = vunpack.c.l.s4 1983009808
        %v5014 = vunpack.c.0.s8 %v5013
        %v5015 = vperm.slane %v5011, %v5014
        %v5016 = vrot.slane %v4726, 4
        %v5017 = vsel %vm1439, %v5016, %v4724
        %v5019 = vunpack.c.l.s4 1983009808
        %v5020 = vunpack.c.0.s8 %v5019
        %v5021 = vperm.slane %v5017, %v5020
        %v5022 = vsel %vm1439, %v4729, %v4718
        %v5024 = vunpack.c.l.s4 1983009808
        %v5025 = vunpack.c.0.s8 %v5024
        %v5026 = vperm.slane %v5022, %v5025
        %v5027 = vrot.slane %v4730, 4
        %v5028 = vsel %vm1439, %v5027, %v4728
        %v5030 = vunpack.c.l.s4 1983009808
        %v5031 = vunpack.c.0.s8 %v5030
        %v5032 = vperm.slane %v5028, %v5031
        %v5033 = vrot.slane %v5021, 4
        %v5034 = vsel %vm1439, %v5033, %v5015
        %v5035 = vrot.slane %v5015, 4
        %v5036 = vsel %vm1439, %v5021, %v5035
        %v5038 = vunpack.c.l.s4 1934713408
        %v5039 = vunpack.c.0.s8 %v5038
        %v5040 = vperm.slane %v5034, %v5039
        %v5042 = vunpack.c.l.s4 1934713408
        %v5043 = vunpack.c.0.s8 %v5042
        %v5044 = vperm.slane %v5036, %v5043
        %v5045 = vrot.slane %v5032, 4
        %v5046 = vsel %vm1439, %v5045, %v5026
        %v5047 = vrot.slane %v5026, 4
        %v5048 = vsel %vm1439, %v5032, %v5047
        %v5050 = vunpack.c.l.s4 1934713408
        %v5051 = vunpack.c.0.s8 %v5050
        %v5052 = vperm.slane %v5046, %v5051
        %v5054 = vunpack.c.l.s4 1934713408
        %v5055 = vunpack.c.0.s8 %v5054
        %v5056 = vperm.slane %v5048, %v5055
        %v5057 = vrot.slane %v5052, 4
        %v5058 = vsel %vm1439, %v5057, %v5040
        %v5059 = vrot.slane %v5040, 4
        %v5060 = vsel %vm1439, %v5052, %v5059
        %v5061 = vrot.slane %v5056, 4
        %v5062 = vsel %vm1439, %v5061, %v5044
        %v5063 = vrot.slane %v5044, 4
        %v5064 = vsel %vm1439, %v5056, %v5063
        %v5065 = vsel %vm1439, %v4781, %v4762
        %v5067 = vunpack.c.l.s4 1983009808
        %v5068 = vunpack.c.0.s8 %v5067
        %v5069 = vperm.slane %v5065, %v5068
        %v5070 = vrot.slane %v4782, 4
        %v5071 = vsel %vm1439, %v5070, %v4780
        %v5073 = vunpack.c.l.s4 1983009808
        %v5074 = vunpack.c.0.s8 %v5073
        %v5075 = vperm.slane %v5071, %v5074
        %v5076 = vsel %vm1439, %v4785, %v4774
        %v5078 = vunpack.c.l.s4 1983009808
        %v5079 = vunpack.c.0.s8 %v5078
        %v5080 = vperm.slane %v5076, %v5079
        %v5081 = vrot.slane %v4786, 4
        %v5082 = vsel %vm1439, %v5081, %v4784
        %v5084 = vunpack.c.l.s4 1983009808
        %v5085 = vunpack.c.0.s8 %v5084
        %v5086 = vperm.slane %v5082, %v5085
        %v5087 = vrot.slane %v5075, 4
        %v5088 = vsel %vm1439, %v5087, %v5069
        %v5089 = vrot.slane %v5069, 4
        %v5090 = vsel %vm1439, %v5075, %v5089
        %v5092 = vunpack.c.l.s4 1934713408
        %v5093 = vunpack.c.0.s8 %v5092
        %v5094 = vperm.slane %v5088, %v5093
        %v5096 = vunpack.c.l.s4 1934713408
        %v5097 = vunpack.c.0.s8 %v5096
        %v5098 = vperm.slane %v5090, %v5097
        %v5099 = vrot.slane %v5086, 4
        %v5100 = vsel %vm1439, %v5099, %v5080
        %v5101 = vrot.slane %v5080, 4
        %v5102 = vsel %vm1439, %v5086, %v5101
        %v5104 = vunpack.c.l.s4 1934713408
        %v5105 = vunpack.c.0.s8 %v5104
        %v5106 = vperm.slane %v5100, %v5105
        %v5108 = vunpack.c.l.s4 1934713408
        %v5109 = vunpack.c.0.s8 %v5108
        %v5110 = vperm.slane %v5102, %v5109
        %v5111 = vrot.slane %v5106, 4
        %v5112 = vsel %vm1439, %v5111, %v5094
        %v5113 = vrot.slane %v5094, 4
        %v5114 = vsel %vm1439, %v5106, %v5113
        %v5115 = vrot.slane %v5110, 4
        %v5116 = vsel %vm1439, %v5115, %v5098
        %v5117 = vrot.slane %v5098, 4
        %v5118 = vsel %vm1439, %v5110, %v5117
        %v5119 = vsel %vm1439, %v4837, %v4818
        %v5121 = vunpack.c.l.s4 1983009808
        %v5122 = vunpack.c.0.s8 %v5121
        %v5123 = vperm.slane %v5119, %v5122
        %v5124 = vrot.slane %v4838, 4
        %v5125 = vsel %vm1439, %v5124, %v4836
        %v5127 = vunpack.c.l.s4 1983009808
        %v5128 = vunpack.c.0.s8 %v5127
        %v5129 = vperm.slane %v5125, %v5128
        %v5130 = vsel %vm1439, %v4841, %v4830
        %v5132 = vunpack.c.l.s4 1983009808
        %v5133 = vunpack.c.0.s8 %v5132
        %v5134 = vperm.slane %v5130, %v5133
        %v5135 = vrot.slane %v4842, 4
        %v5136 = vsel %vm1439, %v5135, %v4840
        %v5138 = vunpack.c.l.s4 1983009808
        %v5139 = vunpack.c.0.s8 %v5138
        %v5140 = vperm.slane %v5136, %v5139
        %v5141 = vrot.slane %v5129, 4
        %v5142 = vsel %vm1439, %v5141, %v5123
        %v5143 = vrot.slane %v5123, 4
        %v5144 = vsel %vm1439, %v5129, %v5143
        %v5146 = vunpack.c.l.s4 1934713408
        %v5147 = vunpack.c.0.s8 %v5146
        %v5148 = vperm.slane %v5142, %v5147
        %v5150 = vunpack.c.l.s4 1934713408
        %v5151 = vunpack.c.0.s8 %v5150
        %v5152 = vperm.slane %v5144, %v5151
        %v5153 = vrot.slane %v5140, 4
        %v5154 = vsel %vm1439, %v5153, %v5134
        %v5155 = vrot.slane %v5134, 4
        %v5156 = vsel %vm1439, %v5140, %v5155
        %v5158 = vunpack.c.l.s4 1934713408
        %v5159 = vunpack.c.0.s8 %v5158
        %v5160 = vperm.slane %v5154, %v5159
        %v5162 = vunpack.c.l.s4 1934713408
        %v5163 = vunpack.c.0.s8 %v5162
        %v5164 = vperm.slane %v5156, %v5163
        %v5165 = vrot.slane %v5160, 4
        %v5166 = vsel %vm1439, %v5165, %v5148
        %v5167 = vrot.slane %v5148, 4
        %v5168 = vsel %vm1439, %v5160, %v5167
        %v5169 = vrot.slane %v5164, 4
        %v5170 = vsel %vm1439, %v5169, %v5152
        %v5171 = vrot.slane %v5152, 4
        %v5172 = vsel %vm1439, %v5164, %v5171
        %v5173 = vsel %vm1439, %v4893, %v4874
        %v5175 = vunpack.c.l.s4 1983009808
        %v5176 = vunpack.c.0.s8 %v5175
        %v5177 = vperm.slane %v5173, %v5176
        %v5178 = vrot.slane %v4894, 4
        %v5179 = vsel %vm1439, %v5178, %v4892
        %v5181 = vunpack.c.l.s4 1983009808
        %v5182 = vunpack.c.0.s8 %v5181
        %v5183 = vperm.slane %v5179, %v5182
        %v5184 = vsel %vm1439, %v4897, %v4886
        %v5186 = vunpack.c.l.s4 1983009808
        %v5187 = vunpack.c.0.s8 %v5186
        %v5188 = vperm.slane %v5184, %v5187
        %v5189 = vrot.slane %v4898, 4
        %v5190 = vsel %vm1439, %v5189, %v4896
        %v5192 = vunpack.c.l.s4 1983009808
        %v5193 = vunpack.c.0.s8 %v5192
        %v5194 = vperm.slane %v5190, %v5193
        %v5195 = vrot.slane %v5183, 4
        %v5196 = vsel %vm1439, %v5195, %v5177
        %v5197 = vrot.slane %v5177, 4
        %v5198 = vsel %vm1439, %v5183, %v5197
        %v5200 = vunpack.c.l.s4 1934713408
        %v5201 = vunpack.c.0.s8 %v5200
        %v5202 = vperm.slane %v5196, %v5201
        %v5204 = vunpack.c.l.s4 1934713408
        %v5205 = vunpack.c.0.s8 %v5204
        %v5206 = vperm.slane %v5198, %v5205
        %v5207 = vrot.slane %v5194, 4
        %v5208 = vsel %vm1439, %v5207, %v5188
        %v5209 = vrot.slane %v5188, 4
        %v5210 = vsel %vm1439, %v5194, %v5209
        %v5212 = vunpack.c.l.s4 1934713408
        %v5213 = vunpack.c.0.s8 %v5212
        %v5214 = vperm.slane %v5208, %v5213
        %v5216 = vunpack.c.l.s4 1934713408
        %v5217 = vunpack.c.0.s8 %v5216
        %v5218 = vperm.slane %v5210, %v5217
        %v5219 = vrot.slane %v5214, 4
        %v5220 = vsel %vm1439, %v5219, %v5202
        %v5221 = vrot.slane %v5202, 4
        %v5222 = vsel %vm1439, %v5214, %v5221
        %v5223 = vrot.slane %v5218, 4
        %v5224 = vsel %vm1439, %v5223, %v5206
        %v5225 = vrot.slane %v5206, 4
        %v5226 = vsel %vm1439, %v5218, %v5225
        %v5227 = vsel %vm1439, %v4949, %v4930
        %v5229 = vunpack.c.l.s4 1983009808
        %v5230 = vunpack.c.0.s8 %v5229
        %v5231 = vperm.slane %v5227, %v5230
        %v5232 = vrot.slane %v4950, 4
        %v5233 = vsel %vm1439, %v5232, %v4948
        %v5235 = vunpack.c.l.s4 1983009808
        %v5236 = vunpack.c.0.s8 %v5235
        %v5237 = vperm.slane %v5233, %v5236
        %v5238 = vsel %vm1439, %v4953, %v4942
        %v5240 = vunpack.c.l.s4 1983009808
        %v5241 = vunpack.c.0.s8 %v5240
        %v5242 = vperm.slane %v5238, %v5241
        %v5243 = vrot.slane %v4954, 4
        %v5244 = vsel %vm1439, %v5243, %v4952
        %v5246 = vunpack.c.l.s4 1983009808
        %v5247 = vunpack.c.0.s8 %v5246
        %v5248 = vperm.slane %v5244, %v5247
        %v5249 = vrot.slane %v5237, 4
        %v5250 = vsel %vm1439, %v5249, %v5231
        %v5251 = vrot.slane %v5231, 4
        %v5252 = vsel %vm1439, %v5237, %v5251
        %v5254 = vunpack.c.l.s4 1934713408
        %v5255 = vunpack.c.0.s8 %v5254
        %v5256 = vperm.slane %v5250, %v5255
        %v5258 = vunpack.c.l.s4 1934713408
        %v5259 = vunpack.c.0.s8 %v5258
        %v5260 = vperm.slane %v5252, %v5259
        %v5261 = vrot.slane %v5248, 4
        %v5262 = vsel %vm1439, %v5261, %v5242
        %v5263 = vrot.slane %v5242, 4
        %v5264 = vsel %vm1439, %v5248, %v5263
        %v5266 = vunpack.c.l.s4 1934713408
        %v5267 = vunpack.c.0.s8 %v5266
        %v5268 = vperm.slane %v5262, %v5267
        %v5270 = vunpack.c.l.s4 1934713408
        %v5271 = vunpack.c.0.s8 %v5270
        %v5272 = vperm.slane %v5264, %v5271
        %v5273 = vrot.slane %v5268, 4
        %v5274 = vsel %vm1439, %v5273, %v5256
        %v5275 = vrot.slane %v5256, 4
        %v5276 = vsel %vm1439, %v5268, %v5275
        %v5277 = vrot.slane %v5272, 4
        %v5278 = vsel %vm1439, %v5277, %v5260
        %v5279 = vrot.slane %v5260, 4
        %v5280 = vsel %vm1439, %v5272, %v5279
        %v5281 = vsel %vm1439, %v5005, %v4986
        %v5283 = vunpack.c.l.s4 1983009808
        %v5284 = vunpack.c.0.s8 %v5283
        %v5285 = vperm.slane %v5281, %v5284
        %v5286 = vrot.slane %v5006, 4
        %v5287 = vsel %vm1439, %v5286, %v5004
        %v5289 = vunpack.c.l.s4 1983009808
        %v5290 = vunpack.c.0.s8 %v5289
        %v5291 = vperm.slane %v5287, %v5290
        %v5292 = vsel %vm1439, %v5009, %v4998
        %v5294 = vunpack.c.l.s4 1983009808
        %v5295 = vunpack.c.0.s8 %v5294
        %v5296 = vperm.slane %v5292, %v5295
        %v5297 = vrot.slane %v5010, 4
        %v5298 = vsel %vm1439, %v5297, %v5008
        %v5300 = vunpack.c.l.s4 1983009808
        %v5301 = vunpack.c.0.s8 %v5300
        %v5302 = vperm.slane %v5298, %v5301
        %v5303 = vrot.slane %v5291, 4
        %v5304 = vsel %vm1439, %v5303, %v5285
        %v5305 = vrot.slane %v5285, 4
        %v5306 = vsel %vm1439, %v5291, %v5305
        %v5308 = vunpack.c.l.s4 1934713408
        %v5309 = vunpack.c.0.s8 %v5308
        %v5310 = vperm.slane %v5304, %v5309
        %v5312 = vunpack.c.l.s4 1934713408
        %v5313 = vunpack.c.0.s8 %v5312
        %v5314 = vperm.slane %v5306, %v5313
        %v5315 = vrot.slane %v5302, 4
        %v5316 = vsel %vm1439, %v5315, %v5296
        %v5317 = vrot.slane %v5296, 4
        %v5318 = vsel %vm1439, %v5302, %v5317
        %v5320 = vunpack.c.l.s4 1934713408
        %v5321 = vunpack.c.0.s8 %v5320
        %v5322 = vperm.slane %v5316, %v5321
        %v5324 = vunpack.c.l.s4 1934713408
        %v5325 = vunpack.c.0.s8 %v5324
        %v5326 = vperm.slane %v5318, %v5325
        %v5327 = vrot.slane %v5322, 4
        %v5328 = vsel %vm1439, %v5327, %v5310
        %v5329 = vrot.slane %v5310, 4
        %v5330 = vsel %vm1439, %v5322, %v5329
        %v5331 = vrot.slane %v5326, 4
        %v5332 = vsel %vm1439, %v5331, %v5314
        %v5333 = vrot.slane %v5314, 4
        %v5334 = vsel %vm1439, %v5326, %v5333
        %5341 = vrot.lane.b32.xlu0 %v5060, 8
        %v5342 = vpop.permute.xlu0 %5341
        %5343 = vrot.lane.b32.xlu0 %v5114, 8
        %v5344 = vpop.permute.xlu0 %5343
        %5345 = vrot.lane.b32.xlu0 %v5168, 8
        %v5346 = vpop.permute.xlu0 %5345
        %5347 = vrot.lane.b32.xlu0 %v5222, 8
        %v5348 = vpop.permute.xlu0 %5347
        %5349 = vrot.lane.b32.xlu0 %v5276, 8
        %v5350 = vpop.permute.xlu0 %5349
        %5351 = vrot.lane.b32.xlu0 %v5330, 8
        %v5352 = vpop.permute.xlu0 %5351
        %5365 = vrot.lane.b32.xlu0 %v5062, 16
        %v5366 = vpop.permute.xlu0 %5365
        %5367 = vrot.lane.b32.xlu0 %v5116, 16
        %v5368 = vpop.permute.xlu0 %5367
        %5369 = vrot.lane.b32.xlu0 %v5170, 16
        %v5370 = vpop.permute.xlu0 %5369
        %5371 = vrot.lane.b32.xlu0 %v5224, 16
        %v5372 = vpop.permute.xlu0 %5371
        %5373 = vrot.lane.b32.xlu0 %v5278, 16
        %v5374 = vpop.permute.xlu0 %5373
        %5375 = vrot.lane.b32.xlu0 %v5332, 16
        %v5376 = vpop.permute.xlu0 %5375
        %5389 = vrot.lane.b32.xlu0 %v5064, 24
        %v5390 = vpop.permute.xlu0 %5389
        %5391 = vrot.lane.b32.xlu0 %v5118, 24
        %v5392 = vpop.permute.xlu0 %5391
        %5393 = vrot.lane.b32.xlu0 %v5172, 24
        %v5394 = vpop.permute.xlu0 %5393
        %5395 = vrot.lane.b32.xlu0 %v5226, 24
        %v5396 = vpop.permute.xlu0 %5395
        %5397 = vrot.lane.b32.xlu0 %v5280, 24
        %v5398 = vpop.permute.xlu0 %5397
        %5399 = vrot.lane.b32.xlu0 %v5334, 24
        %v5400 = vpop.permute.xlu0 %5399
        %v5407 = vsel %vm3603, %v5058, %v5342
        %v5408 = vsel %vm3603, %v5112, %v5344
        %v5409 = vsel %vm3603, %v5166, %v5346
        %v5410 = vsel %vm3603, %v5220, %v5348
        %v5411 = vsel %vm3603, %v5274, %v5350
        %v5412 = vsel %vm3603, %v5328, %v5352
        %vm5413 = vcmask 130048
        %v5414 = vsel %vm5413, %v5407, %v5366
        %v5415 = vsel %vm5413, %v5408, %v5368
        %v5416 = vsel %vm5413, %v5409, %v5370
        %v5417 = vsel %vm5413, %v5410, %v5372
        %v5418 = vsel %vm5413, %v5411, %v5374
        %v5419 = vsel %vm5413, %v5412, %v5376
        %v5420 = vsel %vm4009, %v5414, %v5390
        %v5421 = vsel %vm4009, %v5415, %v5392
        %v5422 = vsel %vm4009, %v5416, %v5394
        %v5423 = vsel %vm4009, %v5417, %v5396
        %v5424 = vsel %vm4009, %v5418, %v5398
        %v5425 = vsel %vm4009, %v5419, %v5400
        %v5426 = vld [vmem:[%s953] sm:$0xf]
        %v5427 = vld [vmem:[%s953 + $0x4] sm:$0xf]
        %v5428 = vld [vmem:[%s953 + $0x8] sm:$0xf]
        %v5429 = vld [vmem:[%s953 + $0xc] sm:$0xf]
        %v5430 = vpack.c.bf16 %v5421, %v5420
        %v5431 = vpack.c.bf16 %v5423, %v5422
        %v5432 = vpack.c.bf16 %v5425, %v5424
        %v5437 = vunpack.c.l.b16 %v5426
        %v5438 = vunpack.c.l.b16 %v5427
        %v5439 = vunpack.c.l.b16 %v5428
        %v5440 = vunpack.c.l.b16 %v5429
        %v5441 = vpack.c.b16 %v5438, %v5437
        %v5442 = vpack.c.b16 %v5440, %v5439
        %v5446 = vsel %vm1076, %v5430, 0
        %v5449 = vsel %vm1076, %v5431, 0
        %v5452 = vsel %vm1076, %v5432, 0
        %5454 = vmatpush.bf16.msra.mxu0 0
        %5455 = vmatpush.bf16.msra.mxu0 0
        %5456 = vmatpush.bf16.msra.mxu0 0
        %5457 = vmatpush.bf16.msra.mxu0 0
        %5458 = vmatpush.bf16.msra.mxu0 0
        %5459 = vmatpush.bf16.msra.mxu0 0
        %5460 = vmatpush.bf16.msra.mxu0 %v5442
        %5461 = vmatpush.bf16.msra.mxu0 %v5441
        %5462 = vmatmul.bf16.gmra.mxu0 %v5446
        %v5463 = vpop.f32.mrf.mxu0
        %v5464 = vadd.f32 0.0, %v5463
        %v5465 = vpop.f32.mrf.mxu0
        %v5466 = vadd.f32 0.0, %v5465
        %5467 = vmatmul.bf16.gmra.mxu0 %v5449
        %v5468 = vpop.f32.mrf.mxu0
        %v5469 = vadd.f32 0.0, %v5468
        %v5470 = vpop.f32.mrf.mxu0
        %v5471 = vadd.f32 0.0, %v5470
        %5472 = vmatmul.bf16.gmra.mxu0 %v5452
        %v5473 = vpop.f32.mrf.mxu0
        %v5474 = vadd.f32 0.0, %v5473
        %v5475 = vpop.f32.mrf.mxu0
        %v5476 = vadd.f32 0.0, %v5475
        %5477 = vdwg.mxu0
        %v5478 = vadd.f32 %v1068, %v5464
        %v5479 = vadd.f32 %v1069, %v5466
        %v5480 = vadd.f32 %v1070, %v5469
        %v5481 = vadd.f32 %v1071, %v5471
        %v5482 = vadd.f32 %v1072, %v5474
        %v5483 = vadd.f32 %v1073, %v5476
        %v5484 = vld [vmem:[%s956] sm:$0x1]
        %v5486 = vperm.slane %v5484, 0
        %v5488 = vadd.f32 %v5478, %v5486
        %v5489 = vadd.f32 %v5479, %v5486
        %v5490 = vadd.f32 %v5480, %v5486
        %v5491 = vadd.f32 %v5481, %v5486
        %v5492 = vadd.f32 %v5482, %v5486
        %v5493 = vadd.f32 %v5483, %v5486
        %v5494 = vld [vmem:[%s959] sm:$0x1]
        %v5495 = vld [vmem:[%s962] sm:$0x1]
        %v5496 = vsel %vm1076, %v5488, 0.0
        %5497 = vadd.xlane.f32.xlu0 %v5496
        %v5498 = vpop.xlane.xlu0 %5497
        %v5499 = vsel %vm1076, %v5489, 0.0
        %5500 = vadd.xlane.f32.xlu0 %v5499
        %v5501 = vpop.xlane.xlu0 %5500
        %v5502 = vsel %vm1076, %v5490, 0.0
        %5503 = vadd.xlane.f32.xlu0 %v5502
        %v5504 = vpop.xlane.xlu0 %5503
        %v5505 = vsel %vm1076, %v5491, 0.0
        %5506 = vadd.xlane.f32.xlu0 %v5505
        %v5507 = vpop.xlane.xlu0 %5506
        %v5508 = vsel %vm1076, %v5492, 0.0
        %5509 = vadd.xlane.f32.xlu0 %v5508
        %v5510 = vpop.xlane.xlu0 %5509
        %v5511 = vsel %vm1076, %v5493, 0.0
        %5512 = vadd.xlane.f32.xlu0 %v5511
        %v5513 = vpop.xlane.xlu0 %5512
        %v5514 = vmul.f32 %v5498, %v1101
        %v5515 = vmul.f32 %v5501, %v1101
        %v5516 = vmul.f32 %v5504, %v1101
        %v5517 = vmul.f32 %v5507, %v1101
        %v5518 = vmul.f32 %v5510, %v1101
        %v5519 = vmul.f32 %v5513, %v1101
        %v5520 = vsub.f32 %v5488, %v5514
        %v5521 = vsub.f32 %v5489, %v5515
        %v5522 = vsub.f32 %v5490, %v5516
        %v5523 = vsub.f32 %v5491, %v5517
        %v5524 = vsub.f32 %v5492, %v5518
        %v5525 = vsub.f32 %v5493, %v5519
        %v5526 = vmul.f32 %v5520, %v5520
        %v5527 = vmul.f32 %v5521, %v5521
        %v5528 = vmul.f32 %v5522, %v5522
        %v5529 = vmul.f32 %v5523, %v5523
        %v5530 = vmul.f32 %v5524, %v5524
        %v5531 = vmul.f32 %v5525, %v5525
        %v5532 = vsel %vm1076, %v5526, 0.0
        %5533 = vadd.xlane.f32.xlu0 %v5532
        %v5534 = vpop.xlane.xlu0 %5533
        %v5535 = vsel %vm1076, %v5527, 0.0
        %5536 = vadd.xlane.f32.xlu0 %v5535
        %v5537 = vpop.xlane.xlu0 %5536
        %v5538 = vsel %vm1076, %v5528, 0.0
        %5539 = vadd.xlane.f32.xlu0 %v5538
        %v5540 = vpop.xlane.xlu0 %5539
        %v5541 = vsel %vm1076, %v5529, 0.0
        %5542 = vadd.xlane.f32.xlu0 %v5541
        %v5543 = vpop.xlane.xlu0 %5542
        %v5544 = vsel %vm1076, %v5530, 0.0
        %5545 = vadd.xlane.f32.xlu0 %v5544
        %v5546 = vpop.xlane.xlu0 %5545
        %v5547 = vsel %vm1076, %v5531, 0.0
        %5548 = vadd.xlane.f32.xlu0 %v5547
        %v5549 = vpop.xlane.xlu0 %5548
        %v5550 = vmul.f32 %v5534, %v1101
        %v5551 = vmul.f32 %v5537, %v1101
        %v5552 = vmul.f32 %v5540, %v1101
        %v5553 = vmul.f32 %v5543, %v1101
        %v5554 = vmul.f32 %v5546, %v1101
        %v5555 = vmul.f32 %v5549, %v1101
        %v5556 = vadd.f32 %v5550, 1e-05
        %v5557 = vadd.f32 %v5551, 1e-05
        %v5558 = vadd.f32 %v5552, 1e-05
        %v5559 = vadd.f32 %v5553, 1e-05
        %v5560 = vadd.f32 %v5554, 1e-05
        %v5561 = vadd.f32 %v5555, 1e-05
        %v5562 = vrsqrt.pop %v5556
        %v5563 = vmul.f32 %v5562, %v5556
        %v5564 = vmul.f32 %v5563, %v5562
        %v5565 = vmul.f32 0.5, %v5564
        %v5566 = vsub.f32 1.5, %v5565
        %v5567 = vmul.f32 %v5562, %v5566
        %vm5568 = vweird.f32 %v5556
        %vm5569 = vweird.f32 %v5562
        %vm5570 = vmor %vm5568, %vm5569
        %v5571 = vsel %vm5570, %v5562, %v5567
        %v5572 = vrsqrt.pop %v5557
        %v5573 = vmul.f32 %v5572, %v5557
        %v5574 = vmul.f32 %v5573, %v5572
        %v5575 = vmul.f32 0.5, %v5574
        %v5576 = vsub.f32 1.5, %v5575
        %v5577 = vmul.f32 %v5572, %v5576
        %vm5578 = vweird.f32 %v5557
        %vm5579 = vweird.f32 %v5572
        %vm5580 = vmor %vm5578, %vm5579
        %v5581 = vsel %vm5580, %v5572, %v5577
        %v5582 = vrsqrt.pop %v5558
        %v5583 = vmul.f32 %v5582, %v5558
        %v5584 = vmul.f32 %v5583, %v5582
        %v5585 = vmul.f32 0.5, %v5584
        %v5586 = vsub.f32 1.5, %v5585
        %v5587 = vmul.f32 %v5582, %v5586
        %vm5588 = vweird.f32 %v5558
        %vm5589 = vweird.f32 %v5582
        %vm5590 = vmor %vm5588, %vm5589
        %v5591 = vsel %vm5590, %v5582, %v5587
        %v5592 = vrsqrt.pop %v5559
        %v5593 = vmul.f32 %v5592, %v5559
        %v5594 = vmul.f32 %v5593, %v5592
        %v5595 = vmul.f32 0.5, %v5594
        %v5596 = vsub.f32 1.5, %v5595
        %v5597 = vmul.f32 %v5592, %v5596
        %vm5598 = vweird.f32 %v5559
        %vm5599 = vweird.f32 %v5592
        %vm5600 = vmor %vm5598, %vm5599
        %v5601 = vsel %vm5600, %v5592, %v5597
        %v5602 = vrsqrt.pop %v5560
        %v5603 = vmul.f32 %v5602, %v5560
        %v5604 = vmul.f32 %v5603, %v5602
        %v5605 = vmul.f32 0.5, %v5604
        %v5606 = vsub.f32 1.5, %v5605
        %v5607 = vmul.f32 %v5602, %v5606
        %vm5608 = vweird.f32 %v5560
        %vm5609 = vweird.f32 %v5602
        %vm5610 = vmor %vm5608, %vm5609
        %v5611 = vsel %vm5610, %v5602, %v5607
        %v5612 = vrsqrt.pop %v5561
        %v5613 = vmul.f32 %v5612, %v5561
        %v5614 = vmul.f32 %v5613, %v5612
        %v5615 = vmul.f32 0.5, %v5614
        %v5616 = vsub.f32 1.5, %v5615
        %v5617 = vmul.f32 %v5612, %v5616
        %vm5618 = vweird.f32 %v5561
        %vm5619 = vweird.f32 %v5612
        %vm5620 = vmor %vm5618, %vm5619
        %v5621 = vsel %vm5620, %v5612, %v5617
        %v5622 = vmul.f32 %v5520, %v5571
        %v5623 = vmul.f32 %v5521, %v5581
        %v5624 = vmul.f32 %v5522, %v5591
        %v5625 = vmul.f32 %v5523, %v5601
        %v5626 = vmul.f32 %v5524, %v5611
        %v5627 = vmul.f32 %v5525, %v5621
        %v5629 = vperm.slane %v5494, 0
        %v5631 = vmul.f32 %v5622, %v5629
        %v5632 = vmul.f32 %v5623, %v5629
        %v5633 = vmul.f32 %v5624, %v5629
        %v5634 = vmul.f32 %v5625, %v5629
        %v5635 = vmul.f32 %v5626, %v5629
        %v5636 = vmul.f32 %v5627, %v5629
        %v5638 = vperm.slane %v5495, 0
        %v5640 = vadd.f32 %v5631, %v5638
        %v5641 = vadd.f32 %v5632, %v5638
        %v5642 = vadd.f32 %v5633, %v5638
        %v5643 = vadd.f32 %v5634, %v5638
        %v5644 = vadd.f32 %v5635, %v5638
        %v5645 = vadd.f32 %v5636, %v5638
        %v5646 = vld [vmem:[%s967] sm:$0xf]
        %v5647 = vld [vmem:[%s967 + $0x4] sm:$0xf]
        %v5648 = vld [vmem:[%s967 + $0x8] sm:$0xf]
        %v5649 = vld [vmem:[%s967 + $0xc] sm:$0xf]
        %v5650 = vpack.c.bf16 %v5641, %v5640
        %v5651 = vpack.c.bf16 %v5643, %v5642
        %v5652 = vpack.c.bf16 %v5645, %v5644
        %v5653 = vld [vmem:[%s970] sm:$0x1]
        %v5655 = vperm.slane %v5653, 0
        %v5661 = vunpack.c.l.b16 %v5646
        %v5662 = vunpack.c.l.b16 %v5647
        %v5663 = vunpack.c.l.b16 %v5648
        %v5664 = vunpack.c.l.b16 %v5649
        %v5665 = vpack.c.b16 %v5662, %v5661
        %v5666 = vpack.c.b16 %v5664, %v5663
        %v5670 = vsel %vm1076, %v5650, 0
        %v5673 = vsel %vm1076, %v5651, 0
        %v5676 = vsel %vm1076, %v5652, 0
        %5678 = vmatpush.bf16.msra.mxu0 0
        %5679 = vmatpush.bf16.msra.mxu0 0
        %5680 = vmatpush.bf16.msra.mxu0 0
        %5681 = vmatpush.bf16.msra.mxu0 0
        %5682 = vmatpush.bf16.msra.mxu0 0
        %5683 = vmatpush.bf16.msra.mxu0 0
        %5684 = vmatpush.bf16.msra.mxu0 %v5666
        %5685 = vmatpush.bf16.msra.mxu0 %v5665
        %5686 = vmatmul.bf16.gmra.mxu0 %v5670
        %v5687 = vpop.f32.mrf.mxu0
        %v5688 = vadd.f32 %v5655, %v5687
        %v5689 = vpop.f32.mrf.mxu0
        %v5690 = vadd.f32 %v5655, %v5689
        %5691 = vmatmul.bf16.gmra.mxu0 %v5673
        %v5692 = vpop.f32.mrf.mxu0
        %v5693 = vadd.f32 %v5655, %v5692
        %v5694 = vpop.f32.mrf.mxu0
        %v5695 = vadd.f32 %v5655, %v5694
        %5696 = vmatmul.bf16.gmra.mxu0 %v5676
        %v5697 = vpop.f32.mrf.mxu0
        %v5698 = vadd.f32 %v5655, %v5697
        %v5699 = vpop.f32.mrf.mxu0
        %v5700 = vadd.f32 %v5655, %v5699
        %5701 = vdwg.mxu0
        %v5702 = vmul.f32 %v5688, %v5688
        %v5703 = vmul.f32 %v5690, %v5690
        %v5704 = vmul.f32 %v5693, %v5693
        %v5705 = vmul.f32 %v5695, %v5695
        %v5706 = vmul.f32 %v5698, %v5698
        %v5707 = vmul.f32 %v5700, %v5700
        %v5708 = vmul.f32 %v5688, %v5702
        %v5709 = vmul.f32 %v5690, %v5703
        %v5710 = vmul.f32 %v5693, %v5704
        %v5711 = vmul.f32 %v5695, %v5705
        %v5712 = vmul.f32 %v5698, %v5706
        %v5713 = vmul.f32 %v5700, %v5707
        %v5714 = vmul.f32 %v5708, 0.044715
        %v5715 = vmul.f32 %v5709, 0.044715
        %v5716 = vmul.f32 %v5710, 0.044715
        %v5717 = vmul.f32 %v5711, 0.044715
        %v5718 = vmul.f32 %v5712, 0.044715
        %v5719 = vmul.f32 %v5713, 0.044715
        %v5720 = vadd.f32 %v5688, %v5714
        %v5721 = vadd.f32 %v5690, %v5715
        %v5722 = vadd.f32 %v5693, %v5716
        %v5723 = vadd.f32 %v5695, %v5717
        %v5724 = vadd.f32 %v5698, %v5718
        %v5725 = vadd.f32 %v5700, %v5719
        %v5726 = vmul.f32 %v5720, 0.7978846
        %v5727 = vmul.f32 %v5721, 0.7978846
        %v5728 = vmul.f32 %v5722, 0.7978846
        %v5729 = vmul.f32 %v5723, 0.7978846
        %v5730 = vmul.f32 %v5724, 0.7978846
        %v5731 = vmul.f32 %v5725, 0.7978846
        %v5732 = vtanh.pop %v5726
        %v5733 = vtanh.pop %v5727
        %v5734 = vtanh.pop %v5728
        %v5735 = vtanh.pop %v5729
        %v5736 = vtanh.pop %v5730
        %v5737 = vtanh.pop %v5731
        %v5738 = vadd.f32 %v5732, 1.0
        %v5739 = vadd.f32 %v5733, 1.0
        %v5740 = vadd.f32 %v5734, 1.0
        %v5741 = vadd.f32 %v5735, 1.0
        %v5742 = vadd.f32 %v5736, 1.0
        %v5743 = vadd.f32 %v5737, 1.0
        %v5744 = vmul.f32 %v5738, 0.5
        %v5745 = vmul.f32 %v5739, 0.5
        %v5746 = vmul.f32 %v5740, 0.5
        %v5747 = vmul.f32 %v5741, 0.5
        %v5748 = vmul.f32 %v5742, 0.5
        %v5749 = vmul.f32 %v5743, 0.5
        %v5750 = vmul.f32 %v5688, %v5744
        %v5751 = vmul.f32 %v5690, %v5745
        %v5752 = vmul.f32 %v5693, %v5746
        %v5753 = vmul.f32 %v5695, %v5747
        %v5754 = vmul.f32 %v5698, %v5748
        %v5755 = vmul.f32 %v5700, %v5749
        %v5756 = vld [vmem:[%s975] sm:$0xf]
        %v5757 = vld [vmem:[%s975 + $0x4] sm:$0xf]
        %v5758 = vld [vmem:[%s975 + $0x8] sm:$0xf]
        %v5759 = vld [vmem:[%s975 + $0xc] sm:$0xf]
        %v5760 = vld [vmem:[%s975 + $0x10] sm:$0xf]
        %v5761 = vld [vmem:[%s975 + $0x14] sm:$0xf]
        %v5762 = vld [vmem:[%s975 + $0x18] sm:$0xf]
        %v5763 = vld [vmem:[%s975 + $0x1c] sm:$0xf]
        %v5764 = vpack.c.bf16 %v5751, %v5750
        %v5765 = vpack.c.bf16 %v5753, %v5752
        %v5766 = vpack.c.bf16 %v5755, %v5754
        %v5775 = vunpack.c.l.b16 %v5756
        %v5776 = vunpack.c.l.b16 %v5757
        %v5777 = vunpack.c.l.b16 %v5758
        %v5778 = vunpack.c.l.b16 %v5759
        %v5779 = vunpack.c.l.b16 %v5760
        %v5780 = vunpack.c.l.b16 %v5761
        %v5781 = vunpack.c.l.b16 %v5762
        %v5782 = vunpack.c.l.b16 %v5763
        %v5783 = vpack.c.b16 %v5776, %v5775
        %v5784 = vpack.c.b16 %v5778, %v5777
        %v5785 = vpack.c.b16 %v5780, %v5779
        %v5786 = vpack.c.b16 %v5782, %v5781
        %vm5791 = vcmask 523264
        %v5793 = vsel %vm5791, %v5764, 0
        %v5796 = vsel %vm5791, %v5765, 0
        %v5799 = vsel %vm5791, %v5766, 0
        %5801 = vmatpush.bf16.msra.mxu0 0
        %5802 = vmatpush.bf16.msra.mxu0 0
        %5803 = vmatpush.bf16.msra.mxu0 0
        %5804 = vmatpush.bf16.msra.mxu0 0
        %5805 = vmatpush.bf16.msra.mxu0 %v5786
        %5806 = vmatpush.bf16.msra.mxu0 %v5785
        %5807 = vmatpush.bf16.msra.mxu0 %v5784
        %5808 = vmatpush.bf16.msra.mxu0 %v5783
        %5809 = vmatmul.bf16.gmra.mxu0 %v5793
        %v5810 = vpop.f32.mrf.mxu0
        %v5811 = vadd.f32 0.0, %v5810
        %v5812 = vpop.f32.mrf.mxu0
        %v5813 = vadd.f32 0.0, %v5812
        %5814 = vmatmul.bf16.gmra.mxu0 %v5796
        %v5815 = vpop.f32.mrf.mxu0
        %v5816 = vadd.f32 0.0, %v5815
        %v5817 = vpop.f32.mrf.mxu0
        %v5818 = vadd.f32 0.0, %v5817
        %5819 = vmatmul.bf16.gmra.mxu0 %v5799
        %v5820 = vpop.f32.mrf.mxu0
        %v5821 = vadd.f32 0.0, %v5820
        %v5822 = vpop.f32.mrf.mxu0
        %v5823 = vadd.f32 0.0, %v5822
        %5824 = vdwg.mxu0
        %v5825 = vadd.f32 %v5488, %v5811
        %v5826 = vadd.f32 %v5489, %v5813
        %v5827 = vadd.f32 %v5490, %v5816
        %v5828 = vadd.f32 %v5491, %v5818
        %v5829 = vadd.f32 %v5492, %v5821
        %v5830 = vadd.f32 %v5493, %v5823
        %v5831 = vld [vmem:[%s978] sm:$0x1]
        %v5833 = vperm.slane %v5831, 0
        %v5835 = vadd.f32 %v5825, %v5833
        %v5836 = vadd.f32 %v5826, %v5833
        %v5837 = vadd.f32 %v5827, %v5833
        %v5838 = vadd.f32 %v5828, %v5833
        %v5839 = vadd.f32 %v5829, %v5833
        %v5840 = vadd.f32 %v5830, %v5833
        %5841 = vst.msk [vmem:[#allocation2] sm:$0xff] %vm1076, %v5835
        %5842 = vst.msk [vmem:[#allocation2 + $0x8] sm:$0xff] %vm1076, %v5836
        %5843 = vst.msk [vmem:[#allocation2 + $0x10] sm:$0xff] %vm1076, %v5837
        %5844 = vst.msk [vmem:[#allocation2 + $0x18] sm:$0xff] %vm1076, %v5838
        %5845 = vst.msk [vmem:[#allocation2 + $0x20] sm:$0xff] %vm1076, %v5839
        %5846 = vst.msk [vmem:[#allocation2 + $0x28] sm:$0xff] %vm1076, %v5840
        %p5847 = scmp.eq.s32.totalorder %s40, 1
        // Predicated region
        $region117: #{vit_forward.1} parent=111 // pred_check
          %p5848 = pneg %p5847
        $region118: #{vit_forward.1} parent=111 // pred_check_branch
          %5850 = sbr.rel (%p5848) target = $region120
        $region119: #{vit_forward.1} parent=111 // pred_region
          %v5851 = vld [vmem:[%s19] sm:$0x1]
          %v5852 = vld [vmem:[%s20] sm:$0x1]
          %v5855 = vrot.slane %v5838, 7
          %vm5856 = vcmask 1041409
          %v5857 = vsel %vm5856, %v5855, %v5835
          %vm5859 = vcmask 254976
          %v5860 = vsel %vm5859, %v5857, 0.0
          %5861 = vadd.xlane.f32.xlu0 %v5860
          %v5862 = vpop.xlane.xlu0 %5861
          %v5863 = vmul.f32 %v5862, %v1101
          %v5865 = vrot.slane %v5863, 1
          %v5868 = vsub.f32 %v5835, %v5863
          %v5869 = vsub.f32 %v5838, %v5865
          %v5870 = vmul.f32 %v5868, %v5868
          %v5871 = vmul.f32 %v5869, %v5869
          %v5874 = vrot.slane %v5871, 7
          %v5875 = vsel %vm5856, %v5874, %v5870
          %v5877 = vsel %vm5859, %v5875, 0.0
          %5878 = vadd.xlane.f32.xlu0 %v5877
          %v5879 = vpop.xlane.xlu0 %5878
          %v5880 = vmul.f32 %v5879, %v1101
          %v5881 = vadd.f32 %v5880, 1e-05
          %v5882 = vrsqrt.pop %v5881
          %v5883 = vmul.f32 %v5882, %v5881
          %v5884 = vmul.f32 %v5883, %v5882
          %v5885 = vmul.f32 0.5, %v5884
          %v5886 = vsub.f32 1.5, %v5885
          %v5887 = vmul.f32 %v5882, %v5886
          %vm5888 = vweird.f32 %v5881
          %vm5889 = vweird.f32 %v5882
          %vm5890 = vmor %vm5888, %vm5889
          %v5891 = vsel %vm5890, %v5882, %v5887
          %v5893 = vrot.slane %v5891, 1
          %v5896 = vmul.f32 %v5868, %v5891
          %v5897 = vmul.f32 %v5869, %v5893
          %v5899 = vperm.slane %v5851, 0
          %v5901 = vmul.f32 %v5896, %v5899
          %v5902 = vmul.f32 %v5897, %v5899
          %v5904 = vperm.slane %v5852, 0
          %v5906 = vadd.f32 %v5901, %v5904
          %v5907 = vadd.f32 %v5902, %v5904
          %v5908 = vld [vmem:[%s21] sm:$0xff]
          %v5909 = vld [vmem:[%s21 + $0x8] sm:$0xff]
          %v5910 = vld [vmem:[%s21 + $0x10] sm:$0xff]
          %v5911 = vld [vmem:[%s21 + $0x18] sm:$0xff]
          %v5912 = vld [vmem:[%s22] sm:$0x1]
          %v5914 = vperm.slane %v5912, 0
          %v5918 = vrot.slane %v5907, 7
          %v5919 = vsel %vm5856, %v5918, %v5906
          %v5920 = vsel %vm1076, %v5919, 0
          %5922 = vmatpush.msra.mxu0 0.0
          %5923 = vmatpush.msra.mxu0 0.0
          %5924 = vmatpush.msra.mxu0 0.0
          %5925 = vmatpush.msra.mxu0 0.0
          %5926 = vmatpush.msra.mxu0 0.0
          %5927 = vmatpush.msra.mxu0 0.0
          %5928 = vmatpush.msra.mxu0 0.0
          %5929 = vmatpush.msra.mxu0 0.0
          %5930 = vmatpush.msra.mxu0 0.0
          %5931 = vmatpush.msra.mxu0 0.0
          %5932 = vmatpush.msra.mxu0 0.0
          %5933 = vmatpush.msra.mxu0 0.0
          %5934 = vmatpush.msra.mxu0 %v5911
          %5935 = vmatpush.msra.mxu0 %v5910
          %5936 = vmatpush.msra.mxu0 %v5909
          %5937 = vmatpush.msra.mxu0 %v5908
          %5938 = vmatmul.f32.gmra.mxu0 %v5920
          %v5939 = vpop.f32.mrf.mxu0
          %v5940 = vadd.f32 %v5914, %v5939
          %5941 = vdwg.mxu0
          %5942 = vst [vmem:[#allocation3] sm:$0x3] %v5940
        $region120: #{vit_forward.1} parent=111 // pred_fallthru
          _
        // Predicated region
        $region121: #{vit_forward.1} parent=111 // pred_check
          %p5943 = pneg %p633
        $region122: #{vit_forward.1} parent=111 // pred_check_branch
          %5945 = sbr.rel (%p5943) target = $region124
        $region123: #{vit_forward.1} parent=111 // pred_region
          %5947 = vsyncadd [#allocation4], 0
          %s5948 = smul.addr %s39, 2
          %s5949 = scalar_lea.hbm %s23, %s5948
          %s5951 = sshll.u32 [#allocation3], 4
          %s5952 = int_to_ptr.vmem [resolvable:$true] %s5951
          %s5953 = sshll.u32 %s5949, 4
          %s5954 = int_to_ptr.hbm [resolvable:$true] %s5953
          %5956 = dma.vmem_to_hbm [thread:$0]  %s5952, 32, %s5954, [#allocation4]
        $region124: #{vit_forward.1} parent=111 // pred_fallthru
          _
        // Predicated region
        $region125: #{vit_forward.1} parent=111 // pred_check
          %p5957 = pneg %p633
        $region126: #{vit_forward.1} parent=111 // pred_check_branch
          %5959 = sbr.rel (%p5957) target = $region128
        $region127: #{vit_forward.1} parent=111 // pred_region
          %5961 = dma.done [#allocation4], 32
        $region128: #{vit_forward.1} parent=111 // pred_fallthru
          _
      $region112: #{vit_forward.1} parent=5 // pred_fallthru
        _
      %p5962 = scmp.le.s32.totalorder 2, %s30
      // Predicated region
      $region129: #{vit_forward.1} parent=5 // pred_check
        %p5963 = pneg %p5962
      $region130: #{vit_forward.1} parent=5 // pred_check_branch
        %5965 = sbr.rel (%p5963) target = $region132
      $region131: #{vit_forward.1} parent=5 // pred_region
        %s5966 = ssub.s32 %s30, 2
      $region132: #{vit_forward.1} parent=5 // pred_fallthru
        _
    $region6: #{vit_forward.1} parent=1 // loop_footer
      %s34 = sadd.s32 1, %s30
    $region7: #{vit_forward.1} parent=1 // loop_footer_branch
      %29 = sbr.rel target = $region3
    $region8: #{vit_forward.1} parent=1 // loop_exit
      _
    %5967 = vsyncpa [#allocation4], 1
    %s5968 = scalar_lea.sflag [#allocation4], 1
    %5969 = vsyncpa %s5968, 1

</llo_original>
